<compile_context>
chip_gen: v6e
topology: v6e:2x2x1
jax: 0.10.0
libtpu: 0.0.40
codegen_flags: <defaults>
</compile_context>

<pallas_src>
import jax
import jax.numpy as jnp
from jax.experimental import pallas as pl
from jax.experimental.pallas import tpu as pltpu


def _round_up(a, b):
    return -(-a // b) * b


def _vmem_capacity_bytes():
    try:
        info = pltpu.get_tpu_info()
        cap = getattr(info, "vmem_capacity_bytes", None)
        if cap:
            return int(cap)
    except Exception:
        pass
    return 64 * 1024 * 1024          # conservative fallback (v7x per-TC VMEM)


def _make_kernel(*, L, tile_L, tile_P, pool_step, filt_len, filt_order,
                 ch_in, ch_out, e0_rows, matmul_dtype):
    K = filt_len
    pad_l = (K - 1) // 2
    m0 = filt_order - 1

    def kernel(x_slab_ref, *rest):
        layer_refs = rest[:2 * filt_order]          # (w_folded, shift) per layer
        out_ref = rest[2 * filt_order]              # (c_total, tile_P) f32, channel-major
        act_scr = rest[2 * filt_order + 1]          # (e0_rows, ch_out) f32
        col_scr = rest[2 * filt_order + 2]          # (e0_rows, col_width) matmul dtype

        s = pl.program_id(1) * tile_L               # global start (pre-pool rows)

        def build_cols(read_tap, nrows, cin):
            # Lane-dense im2col: pack ceil(128/cin) taps per store so each
            # store is a (>=128 when possible) dense-lane slab, not a masked
            # cin-wide partial vst.
            g = max(1, 128 // cin)
            k = 0
            while k < K:
                gg = min(g, K - k)
                vals = [read_tap(k + t, nrows) for t in range(gg)]
                v = vals[0] if gg == 1 else jnp.concatenate(vals, axis=1)
                col_scr[0:nrows, k * cin:(k + gg) * cin] = v
                k += gg

        def store_act(a, base, nrows):
            # Zero rows whose global position lies outside [0, L): this matches
            # the zero 'same'-padding the next conv sees, and is max-neutral for
            # the ceil-mode pool tail ONLY because ReLU (>=0) precedes the max.
            # Interior tiles skip the mask entirely.
            need = jnp.logical_or(base < 0, base + nrows > L)

            @pl.when(need)
            def _():
                g = base + jax.lax.broadcasted_iota(jnp.int32, (nrows, 1), 0)
                act_scr[0:nrows, :] = jnp.where((g >= 0) & (g < L), a, 0.0)

            @pl.when(jnp.logical_not(need))
            def _():
                act_scr[0:nrows, :] = a

        def pool_and_store(li, row_off):
            # act_scr rows [row_off, row_off + tile_L) hold this layer's
            # activation for global positions [s, s + tile_L).
            if pool_step == 1:
                m = act_scr[row_off:row_off + tile_L, :]
            else:
                m = act_scr[pl.ds(row_off, tile_P, stride=pool_step), :]
                for p in range(1, pool_step):
                    m = jnp.maximum(
                        m, act_scr[pl.ds(row_off + p, tile_P, stride=pool_step), :])
            # Channel-major, lane-dense store: (tile_P, ch_out) -> (ch_out, tile_P).
            out_ref[li * ch_out:(li + 1) * ch_out, :] = jnp.transpose(
                jnp.maximum(m, 0.0))

        # ---- layer 0: in-kernel im2col from the raw halo slab + one matmul ----
        w0, sh0 = layer_refs[0], layer_refs[1]
        build_cols(lambda k, n: x_slab_ref[k:k + n, :], e0_rows, ch_in)
        a0 = jnp.dot(col_scr[0:e0_rows, 0:K * ch_in], w0[...],
                     preferred_element_type=jnp.float32) + sh0[...]
        store_act(a0, s - m0 * pad_l, e0_rows)
        pool_and_store(0, m0 * pad_l)

        # ---- layers >= 1: in-kernel im2col + single deep matmul each ----
        for li in range(1, filt_order):
            wl, shl = layer_refs[2 * li], layer_refs[2 * li + 1]
            m_l = filt_order - 1 - li
            e_l = tile_L + m_l * (K - 1)            # valid output rows this layer
            build_cols(lambda k, n: act_scr[k:k + n, :].astype(matmul_dtype),
                       e_l, ch_out)
            a = jnp.dot(col_scr[0:e_l, 0:K * ch_out], wl[...],
                        preferred_element_type=jnp.float32) + shl[...]
            store_act(a, s - m_l * pad_l, e_l)
            pool_and_store(li, m_l * pad_l)

    return kernel


def ingest_ecg_forward(x_ncl, params, *, filt_len, pool_step,
                       matmul_dtype=jnp.bfloat16, tile_pool_rows=None):
    """x_ncl: (N, C_in, L) float32 (PyTorch layout).
    Returns (N, filt_order*ch_out, ceil(L/pool_step)) float32."""
    N, C_in, L = x_ncl.shape
    filt_order = len(params)
    ch_out = params[0]["w"].shape[0]
    c_total = filt_order * ch_out
    K = filt_len
    pad_l = (K - 1) // 2
    m0 = filt_order - 1
    eps = 1e-5

    L_pool = -(-L // pool_step)                     # ceil_mode=True
    isz = jnp.dtype(matmul_dtype).itemsize
    sub = 8 * (4 // isz)                            # sublane packing for matmul dtype
    col_width = K * C_in if filt_order == 1 else max(K * C_in, K * ch_out)

    # ---- VMEM footprint estimate (per grid step, incl. double buffering) ----
    def footprint(tile_p):
        tile_l = tile_p * pool_step
        e0r = _round_up(tile_l + m0 * (K - 1), 8)
        slab = e0r + K - 1
        vm = 2 * _round_up(slab, 8) * _round_up(C_in, 128) * isz        # x slab
        vm += 2 * _round_up(c_total, 8) * _round_up(tile_p, 128) * 4    # out block
        vm += _round_up(e0r, 8) * _round_up(ch_out, 128) * 4            # act_scr
        vm += _round_up(e0r, sub) * _round_up(col_width, 128) * isz     # col_scr
        for l in range(filt_order):
            cin_l = C_in if l == 0 else ch_out
            vm += 2 * _round_up(K * cin_l, sub) * _round_up(ch_out, 128) * isz
            vm += 2 * 8 * 128 * 4                                       # shift
        return vm

    # ---- device-aware tile/VMEM budgets (v5e/v6e 128 MiB, v7x 64 MiB) ------
    vmem_cap = _vmem_capacity_bytes()
    tile_budget = int(0.40 * vmem_cap)

    if tile_pool_rows is None:
        tile_p = min(_round_up(L_pool, 128), 4096)  # lane-dense output tiles
        while footprint(tile_p) > tile_budget and tile_p > 128:
            tile_p = max(128, _round_up(tile_p // 2, 128))
        # Guarantee >= 2 "parallel" grid points when N == 1 (v7x has 2 cores).
        if N == 1 and L_pool > 128 and -(-L_pool // tile_p) < 2:
            tile_p = _round_up(-(-L_pool // 2), 128)
    else:
        tile_p = _round_up(tile_pool_rows, 128)

    tile_L = tile_p * pool_step
    n_tiles = -(-L_pool // tile_p)
    e0_rows = _round_up(tile_L + m0 * (K - 1), 8)   # layer-0 rows (incl. halo)
    slab_rows = e0_rows + K - 1                     # raw input rows per tile

    # ---- wrapper: halo-extended RAW slab only (no K-duplicated im2col) ------
    x_nlc = jnp.transpose(x_ncl, (0, 2, 1)).astype(matmul_dtype)   # (N, L, C_in)
    base_off = -(m0 * pad_l + pad_l)
    PL = -base_off
    max_idx = (n_tiles - 1) * tile_L + base_off + slab_rows - 1
    PR = max(0, max_idx - (L - 1))
    x_padded = jnp.pad(x_nlc, ((0, 0), (PL, PR), (0, 0)))
    idx = (jnp.arange(n_tiles)[:, None] * tile_L
           + jnp.arange(slab_rows)[None, :]
           + base_off + PL)                                        # (nt, slab_rows)
    x_slab = x_padded[:, idx, :]                                   # (N, nt, slab, C_in)

    # ---- fold BN (eval) scale into the conv weights; keep only the shift ----
    flat_inputs = [x_slab]
    in_specs = [pl.BlockSpec((None, None, slab_rows, C_in),
                             lambda b, j: (b, j, 0, 0))]
    for p in params:
        O, I, _ = p["w"].shape
        inv_std = 1.0 / jnp.sqrt(p["var"] + eps)
        scale = (p["gamma"] * inv_std).astype(jnp.float32)
        shift = (p["beta"] - p["mean"] * scale).reshape(1, O).astype(jnp.float32)
        wf = (jnp.transpose(p["w"], (2, 1, 0)).reshape(K * I, O)
              * scale[None, :]).astype(matmul_dtype)               # (K*I, O)
        flat_inputs += [wf, shift]
        in_specs += [pl.BlockSpec((K * I, O), lambda b, j: (0, 0)),
                     pl.BlockSpec((1, O), lambda b, j: (0, 0))]

    scratch_shapes = [pltpu.VMEM((e0_rows, ch_out), jnp.float32),
                      pltpu.VMEM((e0_rows, col_width), matmul_dtype)]

    kernel = _make_kernel(L=L, tile_L=tile_L, tile_P=tile_p, pool_step=pool_step,
                          filt_len=K, filt_order=filt_order, ch_in=C_in,
                          ch_out=ch_out, e0_rows=e0_rows,
                          matmul_dtype=matmul_dtype)

    flops = 2 * N * L * sum(K * (C_in if l == 0 else ch_out) * ch_out
                            for l in range(filt_order))
    bytes_accessed = int(x_slab.size * x_slab.dtype.itemsize
                         + sum(int(a.size) * a.dtype.itemsize
                               for a in flat_inputs[1:])
                         + N * c_total * n_tiles * tile_p * 4)

    fp = footprint(tile_p)
    vmem_limit = min(int(0.70 * vmem_cap), max(16 * 1024 * 1024, int(1.5 * fp)))
    vmem_limit = min(max(vmem_limit, fp + (2 << 20)), vmem_cap)

    out = pl.pallas_call(
        kernel,
        out_shape=jax.ShapeDtypeStruct((N, c_total, n_tiles * tile_p), jnp.float32),
        grid_spec=pltpu.PrefetchScalarGridSpec(
            num_scalar_prefetch=0,
            grid=(N, n_tiles),
            in_specs=in_specs,
            out_specs=pl.BlockSpec((None, c_total, tile_p),
                                   lambda b, j: (b, 0, j)),
            scratch_shapes=scratch_shapes),
        compiler_params=pltpu.CompilerParams(
            dimension_semantics=("parallel", "parallel"),
            vmem_limit_bytes=vmem_limit),
        cost_estimate=pl.CostEstimate(flops=flops, transcendentals=0,
                                      bytes_accessed=bytes_accessed),
    )(*flat_inputs)

    return out[:, :, :L_pool]                       # already PyTorch (N, C, L_pool)


def init_params(key, ch_in, ch_out, filt_len, filt_order):
    params = []
    c_in_l = ch_in
    for _ in range(filt_order):
        key, k1, k2, k3, k4, k5 = jax.random.split(key, 6)
        params.append(dict(
            w=0.1 * jax.random.normal(k1, (ch_out, c_in_l, filt_len), jnp.float32),
            gamma=1.0 + 0.1 * jax.random.normal(k2, (ch_out,), jnp.float32),
            beta=0.1 * jax.random.normal(k3, (ch_out,), jnp.float32),
            mean=0.1 * jax.random.normal(k4, (ch_out,), jnp.float32),
            var=jax.random.uniform(k5, (ch_out,), jnp.float32, 0.5, 1.5),
        ))
        c_in_l = ch_out
    return params


def reference(x_ncl, params, *, filt_len, pool_step, matmul_dtype=jnp.float32):
    """Pure-JAX reference mirroring the PyTorch forward (eval-mode BN).
    `matmul_dtype` sets the conv input/weight precision (BN scale folded into
    weights before the cast, as in the kernel); accumulation and all post-conv
    arithmetic stay float32."""
    eps = 1e-5
    pad_l = (filt_len - 1) // 2
    pad_r = (filt_len - 1) - pad_l
    cur = x_ncl.astype(jnp.float32)
    outs = []
    for p in params:
        inv_std = 1.0 / jnp.sqrt(p["var"] + eps)
        scale = p["gamma"] * inv_std
        shift = p["beta"] - p["mean"] * scale
        w_folded = (p["w"] * scale[:, None, None]).astype(matmul_dtype)
        y = jax.lax.conv_general_dilated(
            cur.astype(matmul_dtype), w_folded, window_strides=(1,),
            padding=[(pad_l, pad_r)], dimension_numbers=("NCH", "OIH", "NCH"),
            preferred_element_type=jnp.float32)
        y = y + shift[None, :, None]
        outs.append(y)
        cur = y
    out = outs[0] if len(outs) == 1 else jnp.concatenate(outs, axis=1)
    out = jnp.maximum(out, 0.0)
    Nb, C, Lx = out.shape
    L_pool = -(-Lx // pool_step)
    pad = L_pool * pool_step - Lx
    out = jnp.pad(out, ((0, 0), (0, 0), (0, pad)), constant_values=-jnp.inf)
    return out.reshape(Nb, C, L_pool, pool_step).max(axis=-1)


if __name__ == "__main__":
    key = jax.random.PRNGKey(0)
    # Small shapes consistent with the module: x is (N, ch_in, L) Conv1d input.
    N, C_in, L = 2, 4, 64
    ch_out, filt_len, filt_order, pool_step = 32, 8, 2, 2
    L_pool = -(-L // pool_step)

    key, kx = jax.random.split(key)
    x = jax.random.normal(kx, (N, C_in, L), jnp.float32)
    params = init_params(key, C_in, ch_out, filt_len, filt_order)

    # bf16 matmul path (v6e/v7x recommendation) vs quantization-mirrored reference.
    out_bf16 = jax.block_until_ready(
        ingest_ecg_forward(x, params, filt_len=filt_len, pool_step=pool_step,
                           matmul_dtype=jnp.bfloat16))
    ref_bf16 = reference(x, params, filt_len=filt_len, pool_step=pool_step,
                         matmul_dtype=jnp.bfloat16)
    assert out_bf16.shape == (N, filt_order * ch_out, L_pool), out_bf16.shape
    assert out_bf16.dtype == jnp.float32
    err_bf16 = float(jnp.max(jnp.abs(out_bf16 - ref_bf16)))
    assert err_bf16 < 1e-2, f"bf16 path mismatch vs reference: {err_bf16}"

    # f32 matmul path vs f32 reference (validates module semantics tightly).
    out_f32 = jax.block_until_ready(
        ingest_ecg_forward(x, params, filt_len=filt_len, pool_step=pool_step,
                           matmul_dtype=jnp.float32))
    ref_f32 = reference(x, params, filt_len=filt_len, pool_step=pool_step,
                        matmul_dtype=jnp.float32)
    err_f32 = float(jnp.max(jnp.abs(out_f32 - ref_f32)))
    assert err_f32 < 1e-3, f"f32 path mismatch vs reference: {err_f32}"

    print("KERNEL_OK")
</pallas_src>

<mosaic_0001>
module attributes {stable_mosaic.version = 11 : i64} {
  func.func @kernel(%arg0: i32, %arg1: i32, %arg2: memref<1x1x271x4xbf16, #tpu.memory_space<vmem>>, %arg3: memref<32x32xbf16, #tpu.memory_space<vmem>>, %arg4: memref<1x32xf32, #tpu.memory_space<vmem>>, %arg5: memref<256x32xbf16, #tpu.memory_space<vmem>>, %arg6: memref<1x32xf32, #tpu.memory_space<vmem>>, %arg7: memref<1x64x128xf32, #tpu.memory_space<vmem>>, %arg8: memref<264x32xf32, #tpu.memory_space<vmem>>, %arg9: memref<264x256xbf16, #tpu.memory_space<vmem>>) attributes {dimension_semantics = [#tpu.dimension_semantics<parallel>, #tpu.dimension_semantics<parallel>], iteration_bounds = array<i64: 2, 1>, scalar_prefetch = 0 : i64, scratch_operands = 2 : i64, tpu.core_type = #tpu.core_type<tc>, window_params = [{transform_indices = @transform_0, window_bounds = array<i64: 1, 1, 271, 4>}, {pipeline_mode = #tpu.pipeline_mode<synchronous>, transform_indices = @transform_1, window_bounds = array<i64: 32, 32>}, {pipeline_mode = #tpu.pipeline_mode<synchronous>, transform_indices = @transform_2, window_bounds = array<i64: 1, 32>}, {pipeline_mode = #tpu.pipeline_mode<synchronous>, transform_indices = @transform_3, window_bounds = array<i64: 256, 32>}, {pipeline_mode = #tpu.pipeline_mode<synchronous>, transform_indices = @transform_4, window_bounds = array<i64: 1, 32>}, {transform_indices = @transform_5, window_bounds = array<i64: 1, 64, 128>}]} {
    %c256_i32 = arith.constant 256 : i32
    %0 = arith.muli %arg1, %c256_i32 : i32
    %c0 = arith.constant 0 : index
    %c0_0 = arith.constant 0 : index
    %c0_1 = arith.constant 0 : index
    %c0_2 = arith.constant 0 : index
    %1 = vector.load %arg2[%c0, %c0_0, %c0_1, %c0_2] : memref<1x1x271x4xbf16, #tpu.memory_space<vmem>>, vector<1x1x264x4xbf16>
    %2 = vector.shape_cast %1 : vector<1x1x264x4xbf16> to vector<264x4xbf16>
    %c0_3 = arith.constant 0 : index
    %c0_4 = arith.constant 0 : index
    %c1 = arith.constant 1 : index
    %c0_5 = arith.constant 0 : index
    %3 = vector.load %arg2[%c0_3, %c0_4, %c1, %c0_5] : memref<1x1x271x4xbf16, #tpu.memory_space<vmem>>, vector<1x1x264x4xbf16>
    %4 = vector.shape_cast %3 : vector<1x1x264x4xbf16> to vector<264x4xbf16>
    %c0_6 = arith.constant 0 : index
    %c0_7 = arith.constant 0 : index
    %c2 = arith.constant 2 : index
    %c0_8 = arith.constant 0 : index
    %5 = vector.load %arg2[%c0_6, %c0_7, %c2, %c0_8] : memref<1x1x271x4xbf16, #tpu.memory_space<vmem>>, vector<1x1x264x4xbf16>
    %6 = vector.shape_cast %5 : vector<1x1x264x4xbf16> to vector<264x4xbf16>
    %c0_9 = arith.constant 0 : index
    %c0_10 = arith.constant 0 : index
    %c3 = arith.constant 3 : index
    %c0_11 = arith.constant 0 : index
    %7 = vector.load %arg2[%c0_9, %c0_10, %c3, %c0_11] : memref<1x1x271x4xbf16, #tpu.memory_space<vmem>>, vector<1x1x264x4xbf16>
    %8 = vector.shape_cast %7 : vector<1x1x264x4xbf16> to vector<264x4xbf16>
    %c0_12 = arith.constant 0 : index
    %c0_13 = arith.constant 0 : index
    %c4 = arith.constant 4 : index
    %c0_14 = arith.constant 0 : index
    %9 = vector.load %arg2[%c0_12, %c0_13, %c4, %c0_14] : memref<1x1x271x4xbf16, #tpu.memory_space<vmem>>, vector<1x1x264x4xbf16>
    %10 = vector.shape_cast %9 : vector<1x1x264x4xbf16> to vector<264x4xbf16>
    %c0_15 = arith.constant 0 : index
    %c0_16 = arith.constant 0 : index
    %c5 = arith.constant 5 : index
    %c0_17 = arith.constant 0 : index
    %11 = vector.load %arg2[%c0_15, %c0_16, %c5, %c0_17] : memref<1x1x271x4xbf16, #tpu.memory_space<vmem>>, vector<1x1x264x4xbf16>
    %12 = vector.shape_cast %11 : vector<1x1x264x4xbf16> to vector<264x4xbf16>
    %c0_18 = arith.constant 0 : index
    %c0_19 = arith.constant 0 : index
    %c6 = arith.constant 6 : index
    %c0_20 = arith.constant 0 : index
    %13 = vector.load %arg2[%c0_18, %c0_19, %c6, %c0_20] : memref<1x1x271x4xbf16, #tpu.memory_space<vmem>>, vector<1x1x264x4xbf16>
    %14 = vector.shape_cast %13 : vector<1x1x264x4xbf16> to vector<264x4xbf16>
    %c0_21 = arith.constant 0 : index
    %c0_22 = arith.constant 0 : index
    %c7 = arith.constant 7 : index
    %c0_23 = arith.constant 0 : index
    %15 = vector.load %arg2[%c0_21, %c0_22, %c7, %c0_23] : memref<1x1x271x4xbf16, #tpu.memory_space<vmem>>, vector<1x1x264x4xbf16>
    %16 = vector.shape_cast %15 : vector<1x1x264x4xbf16> to vector<264x4xbf16>
    %17 = tpu.concatenate %2, %4, %6, %8, %10, %12, %14, %16 in 1 : vector<264x4xbf16>, vector<264x4xbf16>, vector<264x4xbf16>, vector<264x4xbf16>, vector<264x4xbf16>, vector<264x4xbf16>, vector<264x4xbf16>, vector<264x4xbf16> -> vector<264x32xbf16>
    %c0_24 = arith.constant 0 : index
    %c0_25 = arith.constant 0 : index
    %18 = vector.load %arg9[%c0_24, %c0_25] : memref<264x256xbf16, #tpu.memory_space<vmem>>, vector<264x32xbf16>
    tpu.vector_store %arg9[%c0_24, %c0_25], %17 {strides = array<i32>} : memref<264x256xbf16, #tpu.memory_space<vmem>>, vector<264x32xbf16>,
    %c0_26 = arith.constant 0 : index
    %c0_27 = arith.constant 0 : index
    %19 = vector.load %arg9[%c0_26, %c0_27] : memref<264x256xbf16, #tpu.memory_space<vmem>>, vector<264x32xbf16>
    %c0_28 = arith.constant 0 : index
    %c0_29 = arith.constant 0 : index
    %20 = vector.load %arg3[%c0_28, %c0_29] : memref<32x32xbf16, #tpu.memory_space<vmem>>, vector<32x32xbf16>
    %cst = arith.constant dense<0.000000e+00> : vector<264x32xf32>
    %21 = tpu.matmul %19, %20, %cst {dimension_numbers = #tpu.dot_dimension_numbers<[1], [0], [0], [1], [0, 0, 1, 1], [], []>} : vector<264x32xbf16>, vector<32x32xbf16>, vector<264x32xf32> -> vector<264x32xf32>
    %c0_30 = arith.constant 0 : index
    %c0_31 = arith.constant 0 : index
    %22 = vector.load %arg4[%c0_30, %c0_31] : memref<1x32xf32, #tpu.memory_space<vmem>>, vector<1x32xf32>
    %23 = vector.broadcast %22 : vector<1x32xf32> to vector<264x32xf32>
    %24 = arith.addf %21, %23 : vector<264x32xf32>
    %c3_i32 = arith.constant 3 : i32
    %25 = arith.subi %0, %c3_i32 : i32
    %c0_i32 = arith.constant 0 : i32
    %26 = arith.cmpi slt, %25, %c0_i32 : i32
    %c264_i32 = arith.constant 264 : i32
    %27 = arith.addi %25, %c264_i32 : i32
    %c64_i32 = arith.constant 64 : i32
    %28 = arith.cmpi sgt, %27, %c64_i32 : i32
    %29 = arith.ori %26, %28 : i1
    %30 = arith.extui %29 : i1 to i32
    %c0_i32_32 = arith.constant 0 : i32
    %31 = arith.cmpi ne, %30, %c0_i32_32 : i32
    scf.if %31 {
      %89 = tpu.iota {dimensions = array<i32: 0>} : vector<264x1xi32>
      %90 = vector.broadcast %25 : i32 to vector<264x1xi32>
      %91 = arith.addi %90, %89 : vector<264x1xi32>
      %c0_i32_82 = arith.constant 0 : i32
      %92 = vector.broadcast %c0_i32_82 : i32 to vector<264x1xi32>
      %93 = arith.cmpi sge, %91, %92 : vector<264x1xi32>
      %c64_i32_83 = arith.constant 64 : i32
      %94 = vector.broadcast %c64_i32_83 : i32 to vector<264x1xi32>
      %95 = arith.cmpi slt, %91, %94 : vector<264x1xi32>
      %96 = arith.andi %93, %95 : vector<264x1xi1>
      %cst_84 = arith.constant 0.000000e+00 : f32
      %97 = vector.shape_cast %96 : vector<264x1xi1> to vector<264x1xi1>
      %98 = vector.broadcast %97 : vector<264x1xi1> to vector<264x32xi1>
      %99 = vector.broadcast %cst_84 : f32 to vector<264x32xf32>
      %100 = arith.select %98, %24, %99 : vector<264x32xi1>, vector<264x32xf32>
      %c0_85 = arith.constant 0 : index
      %c0_86 = arith.constant 0 : index
      %101 = vector.load %arg8[%c0_85, %c0_86] : memref<264x32xf32, #tpu.memory_space<vmem>>, vector<264x32xf32>
      tpu.vector_store %arg8[%c0_85, %c0_86], %100 {strides = array<i32>} : memref<264x32xf32, #tpu.memory_space<vmem>>, vector<264x32xf32>,
    } else {
    }
    %true = arith.constant true
    %32 = arith.xori %29, %true : i1
    %33 = arith.extui %32 : i1 to i32
    %c0_i32_33 = arith.constant 0 : i32
    %34 = arith.cmpi ne, %33, %c0_i32_33 : i32
    scf.if %34 {
      %c0_82 = arith.constant 0 : index
      %c0_83 = arith.constant 0 : index
      %89 = vector.load %arg8[%c0_82, %c0_83] : memref<264x32xf32, #tpu.memory_space<vmem>>, vector<264x32xf32>
      tpu.vector_store %arg8[%c0_82, %c0_83], %24 {strides = array<i32>} : memref<264x32xf32, #tpu.memory_space<vmem>>, vector<264x32xf32>,
    } else {
    }
    %c3_34 = arith.constant 3 : index
    %c0_35 = arith.constant 0 : index
    %35 = tpu.strided_load %arg8[%c3_34, %c0_35] {strides = array<i32: 2, 1>} : memref<264x32xf32, #tpu.memory_space<vmem>>, vector<128x32xf32>
    %c4_36 = arith.constant 4 : index
    %c0_37 = arith.constant 0 : index
    %36 = tpu.strided_load %arg8[%c4_36, %c0_37] {strides = array<i32: 2, 1>} : memref<264x32xf32, #tpu.memory_space<vmem>>, vector<128x32xf32>
    %37 = arith.maximumf %35, %36 : vector<128x32xf32>
    %cst_38 = arith.constant 0.000000e+00 : f32
    %38 = vector.broadcast %cst_38 : f32 to vector<128x32xf32>
    %39 = arith.maximumf %37, %38 : vector<128x32xf32>
    %40 = tpu.transpose %39, [1, 0] : vector<128x32xf32> -> vector<32x128xf32>
    %c0_39 = arith.constant 0 : index
    %c0_40 = arith.constant 0 : index
    %c0_41 = arith.constant 0 : index
    %41 = vector.load %arg7[%c0_39, %c0_40, %c0_41] : memref<1x64x128xf32, #tpu.memory_space<vmem>>, vector<1x32x128xf32>
    %42 = vector.shape_cast %41 : vector<1x32x128xf32> to vector<32x128xf32>
    %43 = vector.shape_cast %40 : vector<32x128xf32> to vector<1x32x128xf32>
    tpu.vector_store %arg7[%c0_39, %c0_40, %c0_41], %43 {strides = array<i32>} : memref<1x64x128xf32, #tpu.memory_space<vmem>>, vector<1x32x128xf32>,
    %c0_42 = arith.constant 0 : index
    %c0_43 = arith.constant 0 : index
    %44 = vector.load %arg8[%c0_42, %c0_43] : memref<264x32xf32, #tpu.memory_space<vmem>>, vector<256x32xf32>
    %45 = arith.truncf %44 : vector<256x32xf32> to vector<256x32xbf16>
    %c1_44 = arith.constant 1 : index
    %c0_45 = arith.constant 0 : index
    %46 = vector.load %arg8[%c1_44, %c0_45] : memref<264x32xf32, #tpu.memory_space<vmem>>, vector<256x32xf32>
    %47 = arith.truncf %46 : vector<256x32xf32> to vector<256x32xbf16>
    %c2_46 = arith.constant 2 : index
    %c0_47 = arith.constant 0 : index
    %48 = vector.load %arg8[%c2_46, %c0_47] : memref<264x32xf32, #tpu.memory_space<vmem>>, vector<256x32xf32>
    %49 = arith.truncf %48 : vector<256x32xf32> to vector<256x32xbf16>
    %c3_48 = arith.constant 3 : index
    %c0_49 = arith.constant 0 : index
    %50 = vector.load %arg8[%c3_48, %c0_49] : memref<264x32xf32, #tpu.memory_space<vmem>>, vector<256x32xf32>
    %51 = arith.truncf %50 : vector<256x32xf32> to vector<256x32xbf16>
    %52 = tpu.concatenate %45, %47, %49, %51 in 1 : vector<256x32xbf16>, vector<256x32xbf16>, vector<256x32xbf16>, vector<256x32xbf16> -> vector<256x128xbf16>
    %c0_50 = arith.constant 0 : index
    %c0_51 = arith.constant 0 : index
    %53 = vector.load %arg9[%c0_50, %c0_51] : memref<264x256xbf16, #tpu.memory_space<vmem>>, vector<256x128xbf16>
    tpu.vector_store %arg9[%c0_50, %c0_51], %52 {strides = array<i32>} : memref<264x256xbf16, #tpu.memory_space<vmem>>, vector<256x128xbf16>,
    %c4_52 = arith.constant 4 : index
    %c0_53 = arith.constant 0 : index
    %54 = vector.load %arg8[%c4_52, %c0_53] : memref<264x32xf32, #tpu.memory_space<vmem>>, vector<256x32xf32>
    %55 = arith.truncf %54 : vector<256x32xf32> to vector<256x32xbf16>
    %c5_54 = arith.constant 5 : index
    %c0_55 = arith.constant 0 : index
    %56 = vector.load %arg8[%c5_54, %c0_55] : memref<264x32xf32, #tpu.memory_space<vmem>>, vector<256x32xf32>
    %57 = arith.truncf %56 : vector<256x32xf32> to vector<256x32xbf16>
    %c6_56 = arith.constant 6 : index
    %c0_57 = arith.constant 0 : index
    %58 = vector.load %arg8[%c6_56, %c0_57] : memref<264x32xf32, #tpu.memory_space<vmem>>, vector<256x32xf32>
    %59 = arith.truncf %58 : vector<256x32xf32> to vector<256x32xbf16>
    %c7_58 = arith.constant 7 : index
    %c0_59 = arith.constant 0 : index
    %60 = vector.load %arg8[%c7_58, %c0_59] : memref<264x32xf32, #tpu.memory_space<vmem>>, vector<256x32xf32>
    %61 = arith.truncf %60 : vector<256x32xf32> to vector<256x32xbf16>
    %62 = tpu.concatenate %55, %57, %59, %61 in 1 : vector<256x32xbf16>, vector<256x32xbf16>, vector<256x32xbf16>, vector<256x32xbf16> -> vector<256x128xbf16>
    %c0_60 = arith.constant 0 : index
    %c128 = arith.constant 128 : index
    %63 = vector.load %arg9[%c0_60, %c128] : memref<264x256xbf16, #tpu.memory_space<vmem>>, vector<256x128xbf16>
    tpu.vector_store %arg9[%c0_60, %c128], %62 {strides = array<i32>} : memref<264x256xbf16, #tpu.memory_space<vmem>>, vector<256x128xbf16>,
    %c0_61 = arith.constant 0 : index
    %c0_62 = arith.constant 0 : index
    %64 = vector.load %arg9[%c0_61, %c0_62] : memref<264x256xbf16, #tpu.memory_space<vmem>>, vector<256x256xbf16>
    %c0_63 = arith.constant 0 : index
    %c0_64 = arith.constant 0 : index
    %65 = vector.load %arg5[%c0_63, %c0_64] : memref<256x32xbf16, #tpu.memory_space<vmem>>, vector<256x32xbf16>
    %cst_65 = arith.constant dense<0.000000e+00> : vector<256x32xf32>
    %66 = tpu.matmul %64, %65, %cst_65 {dimension_numbers = #tpu.dot_dimension_numbers<[1], [0], [0], [1], [0, 0, 1, 1], [], []>} : vector<256x256xbf16>, vector<256x32xbf16>, vector<256x32xf32> -> vector<256x32xf32>
    %c0_66 = arith.constant 0 : index
    %c0_67 = arith.constant 0 : index
    %67 = vector.load %arg6[%c0_66, %c0_67] : memref<1x32xf32, #tpu.memory_space<vmem>>, vector<1x32xf32>
    %68 = vector.broadcast %67 : vector<1x32xf32> to vector<256x32xf32>
    %69 = arith.addf %66, %68 : vector<256x32xf32>
    %c0_i32_68 = arith.constant 0 : i32
    %70 = arith.subi %0, %c0_i32_68 : i32
    %c0_i32_69 = arith.constant 0 : i32
    %71 = arith.cmpi slt, %70, %c0_i32_69 : i32
    %c256_i32_70 = arith.constant 256 : i32
    %72 = arith.addi %70, %c256_i32_70 : i32
    %c64_i32_71 = arith.constant 64 : i32
    %73 = arith.cmpi sgt, %72, %c64_i32_71 : i32
    %74 = arith.ori %71, %73 : i1
    %75 = arith.extui %74 : i1 to i32
    %c0_i32_72 = arith.constant 0 : i32
    %76 = arith.cmpi ne, %75, %c0_i32_72 : i32
    scf.if %76 {
      %89 = tpu.iota {dimensions = array<i32: 0>} : vector<256x1xi32>
      %90 = vector.broadcast %70 : i32 to vector<256x1xi32>
      %91 = arith.addi %90, %89 : vector<256x1xi32>
      %c0_i32_82 = arith.constant 0 : i32
      %92 = vector.broadcast %c0_i32_82 : i32 to vector<256x1xi32>
      %93 = arith.cmpi sge, %91, %92 : vector<256x1xi32>
      %c64_i32_83 = arith.constant 64 : i32
      %94 = vector.broadcast %c64_i32_83 : i32 to vector<256x1xi32>
      %95 = arith.cmpi slt, %91, %94 : vector<256x1xi32>
      %96 = arith.andi %93, %95 : vector<256x1xi1>
      %cst_84 = arith.constant 0.000000e+00 : f32
      %97 = vector.shape_cast %96 : vector<256x1xi1> to vector<256x1xi1>
      %98 = vector.broadcast %97 : vector<256x1xi1> to vector<256x32xi1>
      %99 = vector.broadcast %cst_84 : f32 to vector<256x32xf32>
      %100 = arith.select %98, %69, %99 : vector<256x32xi1>, vector<256x32xf32>
      %c0_85 = arith.constant 0 : index
      %c0_86 = arith.constant 0 : index
      %101 = vector.load %arg8[%c0_85, %c0_86] : memref<264x32xf32, #tpu.memory_space<vmem>>, vector<256x32xf32>
      tpu.vector_store %arg8[%c0_85, %c0_86], %100 {strides = array<i32>} : memref<264x32xf32, #tpu.memory_space<vmem>>, vector<256x32xf32>,
    } else {
    }
    %true_73 = arith.constant true
    %77 = arith.xori %74, %true_73 : i1
    %78 = arith.extui %77 : i1 to i32
    %c0_i32_74 = arith.constant 0 : i32
    %79 = arith.cmpi ne, %78, %c0_i32_74 : i32
    scf.if %79 {
      %c0_82 = arith.constant 0 : index
      %c0_83 = arith.constant 0 : index
      %89 = vector.load %arg8[%c0_82, %c0_83] : memref<264x32xf32, #tpu.memory_space<vmem>>, vector<256x32xf32>
      tpu.vector_store %arg8[%c0_82, %c0_83], %69 {strides = array<i32>} : memref<264x32xf32, #tpu.memory_space<vmem>>, vector<256x32xf32>,
    } else {
    }
    %c0_75 = arith.constant 0 : index
    %c0_76 = arith.constant 0 : index
    %80 = tpu.strided_load %arg8[%c0_75, %c0_76] {strides = array<i32: 2, 1>} : memref<264x32xf32, #tpu.memory_space<vmem>>, vector<128x32xf32>
    %c1_77 = arith.constant 1 : index
    %c0_78 = arith.constant 0 : index
    %81 = tpu.strided_load %arg8[%c1_77, %c0_78] {strides = array<i32: 2, 1>} : memref<264x32xf32, #tpu.memory_space<vmem>>, vector<128x32xf32>
    %82 = arith.maximumf %80, %81 : vector<128x32xf32>
    %cst_79 = arith.constant 0.000000e+00 : f32
    %83 = vector.broadcast %cst_79 : f32 to vector<128x32xf32>
    %84 = arith.maximumf %82, %83 : vector<128x32xf32>
    %85 = tpu.transpose %84, [1, 0] : vector<128x32xf32> -> vector<32x128xf32>
    %c0_80 = arith.constant 0 : index
    %c32 = arith.constant 32 : index
    %c0_81 = arith.constant 0 : index
    %86 = vector.load %arg7[%c0_80, %c32, %c0_81] : memref<1x64x128xf32, #tpu.memory_space<vmem>>, vector<1x32x128xf32>
    %87 = vector.shape_cast %86 : vector<1x32x128xf32> to vector<32x128xf32>
    %88 = vector.shape_cast %85 : vector<32x128xf32> to vector<1x32x128xf32>
    tpu.vector_store %arg7[%c0_80, %c32, %c0_81], %88 {strides = array<i32>} : memref<1x64x128xf32, #tpu.memory_space<vmem>>, vector<1x32x128xf32>,
    return
  }
  func.func @transform_0(%arg0: i32, %arg1: i32) -> (i32, i32, i32, i32) {
    %c0_i32 = arith.constant 0 : i32
    %c0_i32_0 = arith.constant 0 : i32
    %c0_i32_1 = arith.constant 0 : i32
    return %arg0, %arg1, %c0_i32, %c0_i32_0 : i32, i32, i32, i32
  }
  func.func @transform_1(%arg0: i32, %arg1: i32) -> (i32, i32) {
    %c0_i32 = arith.constant 0 : i32
    %c0_i32_0 = arith.constant 0 : i32
    %c0_i32_1 = arith.constant 0 : i32
    return %c0_i32, %c0_i32_0 : i32, i32
  }
  func.func @transform_2(%arg0: i32, %arg1: i32) -> (i32, i32) {
    %c0_i32 = arith.constant 0 : i32
    %c0_i32_0 = arith.constant 0 : i32
    %c0_i32_1 = arith.constant 0 : i32
    return %c0_i32, %c0_i32_0 : i32, i32
  }
  func.func @transform_3(%arg0: i32, %arg1: i32) -> (i32, i32) {
    %c0_i32 = arith.constant 0 : i32
    %c0_i32_0 = arith.constant 0 : i32
    %c0_i32_1 = arith.constant 0 : i32
    return %c0_i32, %c0_i32_0 : i32, i32
  }
  func.func @transform_4(%arg0: i32, %arg1: i32) -> (i32, i32) {
    %c0_i32 = arith.constant 0 : i32
    %c0_i32_0 = arith.constant 0 : i32
    %c0_i32_1 = arith.constant 0 : i32
    return %c0_i32, %c0_i32_0 : i32, i32
  }
  func.func @transform_5(%arg0: i32, %arg1: i32) -> (i32, i32, i32) {
    %c0_i32 = arith.constant 0 : i32
    %c0_i32_0 = arith.constant 0 : i32
    return %arg0, %c0_i32, %arg1 : i32, i32, i32
  }
}

</mosaic_0001>

<llo_original>
// kernel: tpu_custom_call.1
$region0: #{tpu_custom_call.1}
  #allocation0 [shape = 'u32[]', space=smem, size = 0x4, offset = 0x4, fixed_abs, tag = 'smem constant byte address 0x4 - core index']
  #allocation1 [shape = 'u32[144,128]{1,0:T(1,128)}', space=vmem, size = 0x12000, scoped, tag = 'internal scratch']
  #allocation2 [shape = 'f32[264,32]{1,0:T(8,128)}', space=vmem, size = 0x21000, scoped, tag = 'scratch operand']
  #allocation3 [shape = 'bf16[264,256]{1,0:T(8,128)(2,1)}', space=vmem, size = 0x21000, scoped, tag = 'scratch operand']
  %s0 = inlined_call_operand.vmem [shape: bf16[2,1,271,4], index: 0, kind: input, shape index: {}]
  %s1 = inlined_call_operand.vmem [shape: bf16[32,32], index: 1, kind: input, shape index: {}]
  %s2 = inlined_call_operand.vmem [shape: f32[1,32], index: 2, kind: input, shape index: {}]
  %s3 = inlined_call_operand.vmem [shape: bf16[256,32], index: 3, kind: input, shape index: {}]
  %s4 = inlined_call_operand.vmem [shape: f32[1,32], index: 4, kind: input, shape index: {}]
  %s5 = inlined_call_operand.hbm [shape: f32[2,64,128], index: 5, kind: output, shape index: {}]
  %s6 = sld [smem:[#allocation0]]
  $region69: #{tpu_custom_call.1} parent=0
    _
  %s8 = ssub.s32 1, %s6
  %s9 = scalar_select 0, %s8, %s6
  $region1: #{tpu_custom_call.1} parent=0
    #allocation4 [shape = 'u8[65536]{0}', space=vmem, size = 0x10000, scoped, tag = 'output window, operand 0']
    #allocation5 [shape = 's32[2]{0}', space=sflag, size = 0x8, scoped, tag = 'scoped memory for tpu_custom_call.1']
    %10 = vsyncpa [#allocation5], 0
    %s11 = scalar_lea.sflag [#allocation5], 1
    %12 = vsyncpa %s11, 0
    loop: start=0, step=1, limit=4
    $region2: #{tpu_custom_call.1} parent=1 // loop_pre_header
      _
    $region3: #{tpu_custom_call.1} parent=1 // loop_header
      %s14 = sphi 0, %s18
      %p15 = scmp.ge.s32.totalorder %s14, 4
      %s21 = sphi 0, %s33
      %s22 = sphi 0, %s29
      %s23 = sphi 0, %s21
      %s24 = sphi 0, %s22
      %s25 = sphi 0, %s23
      %s26 = sphi 0, %s24
      %s38 = sphi 0, %s40
      %s41 = sphi 0, %s38
      %s42 = sphi 0, %s41
      %s58 = sphi 0, %s42
      %s62 = sphi 0, %s62
      %s64 = sphi 0, %s62
      %s65 = sphi 0, %s64
      %s79 = sphi 0, %s65
      %s83 = sphi 0, %s83
      %s85 = sphi 0, %s83
      %s86 = sphi 0, %s85
      %s100 = sphi 0, %s86
      %s104 = sphi 0, %s104
      %s106 = sphi 0, %s104
      %s107 = sphi 0, %s106
      %s121 = sphi 0, %s107
      %s125 = sphi 0, %s125
      %s127 = sphi 0, %s125
      %s128 = sphi 0, %s127
      %s142 = sphi 0, %s128
      %s150 = sphi 0, %s152
      %s153 = sphi 0, %s150
      %s154 = sphi 0, %s153
      %s170 = sphi 0, %s154
    $region4: #{tpu_custom_call.1} parent=1 // loop_header_branch
      %17 = sbr.rel (%p15) target = $region8
    $region5: #{tpu_custom_call.1} parent=1 // loop_body
      %s19 = ssub.s32 %s14, 1
      %s20 = ssub.s32 %s14, 2
      %s27 = sadd.s32 1, %s22
      %p28 = scmp.ge.s32.totalorder %s27, 1
      %s29 = scalar_select %p28, 0, %s27
      %s30 = sadd.s32 1, %s21
      %s31 = scalar_select %p28, %s30, %s21
      %p32 = scmp.ge.s32.totalorder %s31, 2
      %s33 = scalar_select %p32, 0, %s31
      %s34 = ssub.s32 %s21, %s33
      %s35 = ssub.s32 %s22, %s29
      %s36 = sor.u32 %s34, %s35
      %p37 = scmp.eq.s32.totalorder %s36, 0
      %s39 = sadd.s32 %s38, 1
      %s40 = scalar_select %p37, %s38, %s39
      %p43 = pneg %p37
      %p44 = scmp.eq.s32.totalorder %s14, 1
      %p45 = por %p43, %p44
      %p46 = scmp.ne.s32.totalorder %s38, %s41
      %p47 = scmp.eq.s32.totalorder %s14, 0
      %p48 = por %p46, %p47
      %p49 = scmp.ne.s32.totalorder %s38, %s41
      %p50 = scmp.eq.s32.totalorder %s19, 1
      %p51 = por %p49, %p50
      %p52 = scmp.ne.s32.totalorder %s41, %s42
      %p53 = scmp.eq.s32.totalorder %s19, 0
      %p54 = por %p52, %p53
      %p55 = scmp.ne.s32.totalorder %s41, %s42
      %p56 = scmp.eq.s32.totalorder %s20, 1
      %p57 = por %p55, %p56
      %p59 = scmp.ne.s32.totalorder %s42, %s58
      %p60 = scmp.eq.s32.totalorder %s20, 0
      %p61 = por %p59, %p60
      %s63 = sadd.s32 %s62, 1
      %p66 = scmp.eq.s32.totalorder %s14, 1
      %p67 = scmp.ne.s32.totalorder %s62, %s64
      %p68 = scmp.eq.s32.totalorder %s14, 0
      %p69 = por %p67, %p68
      %p70 = scmp.ne.s32.totalorder %s62, %s64
      %p71 = scmp.eq.s32.totalorder %s19, 1
      %p72 = por %p70, %p71
      %p73 = scmp.ne.s32.totalorder %s64, %s65
      %p74 = scmp.eq.s32.totalorder %s19, 0
      %p75 = por %p73, %p74
      %p76 = scmp.ne.s32.totalorder %s64, %s65
      %p77 = scmp.eq.s32.totalorder %s20, 1
      %p78 = por %p76, %p77
      %p80 = scmp.ne.s32.totalorder %s65, %s79
      %p81 = scmp.eq.s32.totalorder %s20, 0
      %p82 = por %p80, %p81
      %s84 = sadd.s32 %s83, 1
      %p87 = scmp.eq.s32.totalorder %s14, 1
      %p88 = scmp.ne.s32.totalorder %s83, %s85
      %p89 = scmp.eq.s32.totalorder %s14, 0
      %p90 = por %p88, %p89
      %p91 = scmp.ne.s32.totalorder %s83, %s85
      %p92 = scmp.eq.s32.totalorder %s19, 1
      %p93 = por %p91, %p92
      %p94 = scmp.ne.s32.totalorder %s85, %s86
      %p95 = scmp.eq.s32.totalorder %s19, 0
      %p96 = por %p94, %p95
      %p97 = scmp.ne.s32.totalorder %s85, %s86
      %p98 = scmp.eq.s32.totalorder %s20, 1
      %p99 = por %p97, %p98
      %p101 = scmp.ne.s32.totalorder %s86, %s100
      %p102 = scmp.eq.s32.totalorder %s20, 0
      %p103 = por %p101, %p102
      %s105 = sadd.s32 %s104, 1
      %p108 = scmp.eq.s32.totalorder %s14, 1
      %p109 = scmp.ne.s32.totalorder %s104, %s106
      %p110 = scmp.eq.s32.totalorder %s14, 0
      %p111 = por %p109, %p110
      %p112 = scmp.ne.s32.totalorder %s104, %s106
      %p113 = scmp.eq.s32.totalorder %s19, 1
      %p114 = por %p112, %p113
      %p115 = scmp.ne.s32.totalorder %s106, %s107
      %p116 = scmp.eq.s32.totalorder %s19, 0
      %p117 = por %p115, %p116
      %p118 = scmp.ne.s32.totalorder %s106, %s107
      %p119 = scmp.eq.s32.totalorder %s20, 1
      %p120 = por %p118, %p119
      %p122 = scmp.ne.s32.totalorder %s107, %s121
      %p123 = scmp.eq.s32.totalorder %s20, 0
      %p124 = por %p122, %p123
      %s126 = sadd.s32 %s125, 1
      %p129 = scmp.eq.s32.totalorder %s14, 1
      %p130 = scmp.ne.s32.totalorder %s125, %s127
      %p131 = scmp.eq.s32.totalorder %s14, 0
      %p132 = por %p130, %p131
      %p133 = scmp.ne.s32.totalorder %s125, %s127
      %p134 = scmp.eq.s32.totalorder %s19, 1
      %p135 = por %p133, %p134
      %p136 = scmp.ne.s32.totalorder %s127, %s128
      %p137 = scmp.eq.s32.totalorder %s19, 0
      %p138 = por %p136, %p137
      %p139 = scmp.ne.s32.totalorder %s127, %s128
      %p140 = scmp.eq.s32.totalorder %s20, 1
      %p141 = por %p139, %p140
      %p143 = scmp.ne.s32.totalorder %s128, %s142
      %p144 = scmp.eq.s32.totalorder %s20, 0
      %p145 = por %p143, %p144
      %s146 = ssub.s32 %s21, %s33
      %s147 = ssub.s32 %s22, %s29
      %s148 = sor.u32 %s146, %s147
      %p149 = scmp.eq.s32.totalorder %s148, 0
      %s151 = sadd.s32 %s150, 1
      %s152 = scalar_select %p149, %s150, %s151
      %p155 = pneg %p149
      %p156 = scmp.eq.s32.totalorder %s14, 1
      %p157 = por %p155, %p156
      %p158 = scmp.ne.s32.totalorder %s150, %s153
      %p159 = scmp.eq.s32.totalorder %s14, 0
      %p160 = por %p158, %p159
      %p161 = scmp.ne.s32.totalorder %s150, %s153
      %p162 = scmp.eq.s32.totalorder %s19, 1
      %p163 = por %p161, %p162
      %p164 = scmp.ne.s32.totalorder %s153, %s154
      %p165 = scmp.eq.s32.totalorder %s19, 0
      %p166 = por %p164, %p165
      %p167 = scmp.ne.s32.totalorder %s153, %s154
      %p168 = scmp.eq.s32.totalorder %s20, 1
      %p169 = por %p167, %p168
      %p171 = scmp.ne.s32.totalorder %s154, %s170
      %p172 = scmp.eq.s32.totalorder %s20, 0
      %p173 = por %p171, %p172
      %p174 = scmp.le.s32.totalorder 1, %s14
      %p175 = scmp.lt.s32.totalorder %s14, 3
      %p176 = pnand %p174, %p175
      %p177 = pneg %p176
      // Predicated region
      $region9: #{tpu_custom_call.1} parent=5 // pred_check
        _
      $region10: #{tpu_custom_call.1} parent=5 // pred_check_branch
        %179 = sbr.rel (%p176) target = $region12
      $region11: #{tpu_custom_call.1} parent=5 // pred_region
        %s180 = ssub.s32 %s14, 1
        // Predicated region
        $region13: #{tpu_custom_call.1} parent=11 // pred_check
          %p181 = pneg %p75
        $region14: #{tpu_custom_call.1} parent=11 // pred_check_branch
          %183 = sbr.rel (%p181) target = $region16
        $region15: #{tpu_custom_call.1} parent=11 // pred_region
          _
        $region16: #{tpu_custom_call.1} parent=11 // pred_fallthru
          _
        // Predicated region
        $region17: #{tpu_custom_call.1} parent=11 // pred_check
          %p184 = pneg %p96
        $region18: #{tpu_custom_call.1} parent=11 // pred_check_branch
          %186 = sbr.rel (%p184) target = $region20
        $region19: #{tpu_custom_call.1} parent=11 // pred_region
          _
        $region20: #{tpu_custom_call.1} parent=11 // pred_fallthru
          _
        // Predicated region
        $region21: #{tpu_custom_call.1} parent=11 // pred_check
          %p187 = pneg %p117
        $region22: #{tpu_custom_call.1} parent=11 // pred_check_branch
          %189 = sbr.rel (%p187) target = $region24
        $region23: #{tpu_custom_call.1} parent=11 // pred_region
          _
        $region24: #{tpu_custom_call.1} parent=11 // pred_fallthru
          _
        // Predicated region
        $region25: #{tpu_custom_call.1} parent=11 // pred_check
          %p190 = pneg %p138
        $region26: #{tpu_custom_call.1} parent=11 // pred_check_branch
          %192 = sbr.rel (%p190) target = $region28
        $region27: #{tpu_custom_call.1} parent=11 // pred_region
          _
        $region28: #{tpu_custom_call.1} parent=11 // pred_fallthru
          _
      $region12: #{tpu_custom_call.1} parent=5 // pred_fallthru
        _
      %p193 = scmp.lt.s32.totalorder %s14, 2
      // Predicated region
      $region29: #{tpu_custom_call.1} parent=5 // pred_check
        %p194 = pneg %p193
      $region30: #{tpu_custom_call.1} parent=5 // pred_check_branch
        %196 = sbr.rel (%p194) target = $region32
      $region31: #{tpu_custom_call.1} parent=5 // pred_region
        // Predicated region
        $region33: #{tpu_custom_call.1} parent=31 // pred_check
          %p197 = pneg %p48
        $region34: #{tpu_custom_call.1} parent=31 // pred_check_branch
          %199 = sbr.rel (%p197) target = $region36
        $region35: #{tpu_custom_call.1} parent=31 // pred_region
          %p200 = scmp.lt.s32.totalorder %s21, 1
          %s201 = scalar_select %p200, %s21, 1
          %p202 = scmp.lt.s32.totalorder %s22, 0
          %s203 = scalar_select %p202, %s22, 0
          %s204 = smul.addr %s203, 34
          %s205 = smul.addr %s201, 34
          %s206 = sadd.s32 %s204, %s205
          %s207 = smul.addr %s206, 4
          %s208 = scalar_lea.vmem %s0, %s207
        $region36: #{tpu_custom_call.1} parent=31 // pred_fallthru
          _
      $region32: #{tpu_custom_call.1} parent=5 // pred_fallthru
        _
      %p209 = scmp.le.s32.totalorder 1, %s14
      %p210 = scmp.lt.s32.totalorder %s14, 3
      %p211 = pnand %p209, %p210
      %p212 = pneg %p211
      // Predicated region
      $region37: #{tpu_custom_call.1} parent=5 // pred_check
        _
      $region38: #{tpu_custom_call.1} parent=5 // pred_check_branch
        %214 = sbr.rel (%p211) target = $region40
      $region39: #{tpu_custom_call.1} parent=5 // pred_region
        %s215 = ssub.s32 %s14, 1
        %p216 = scmp.lt.s32.totalorder %s23, 1
        %s217 = scalar_select %p216, %s23, 1
        %p218 = scmp.lt.s32.totalorder %s24, 0
        %s219 = scalar_select %p218, %s24, 0
        %s220 = smul.addr %s219, 34
        %s221 = smul.addr %s217, 34
        %s222 = sadd.s32 %s220, %s221
        %s223 = smul.addr %s222, 4
        %s224 = scalar_lea.vmem %s0, %s223
        %p225 = pneg %p54
        %p226 = pneg %p51
        %p227 = pneg %p75
        %p228 = pneg %p72
        %p229 = pneg %p96
        %p230 = pneg %p93
        %p231 = pneg %p117
        %p232 = pneg %p114
        %p233 = pneg %p138
        %p234 = pneg %p135
        %p235 = pneg %p166
        %p236 = pneg %p163
        %s237 = sand.u32 %s153, 1
        %s238 = scalar_lea.sflag [#allocation5], %s237
        %s239 = sand.u32 %s153, 1
        %s240 = smul.addr %s239, 64
        %s241 = scalar_lea.vmem [#allocation4], %s240
        %p242 = scmp.lt.s32.totalorder %s23, 1
        %s243 = scalar_select %p242, %s23, 1
        %p244 = scmp.lt.s32.totalorder %s24, 0
        %s245 = scalar_select %p244, %s24, 0
        %s246 = smul.addr %s245, 34
        %s247 = smul.addr %s243, 34
        %s248 = sadd.s32 %s246, %s247
        %s249 = smul.addr %s248, 4
        %s250 = scalar_lea.vmem %s0, %s249
        %s252 = smul.u32 %s24, 256
        %v253 = vld [vmem:[%s250] sm:$0xf]
        %v254 = vld [vmem:[%s250 + $0x4] sm:$0xf]
        %v255 = vld [vmem:[%s250 + $0x8] sm:$0xf]
        %v256 = vld [vmem:[%s250 + $0xc] sm:$0xf]
        %v257 = vld [vmem:[%s250 + $0x10] sm:$0xf]
        %v258 = vld [vmem:[%s250 + $0x14] sm:$0xf]
        %v259 = vld [vmem:[%s250 + $0x18] sm:$0xf]
        %v260 = vld [vmem:[%s250 + $0x1c] sm:$0xf]
        %v261 = vld [vmem:[%s250 + $0x20] sm:$0xf]
        %v262 = vld [vmem:[%s250 + $0x24] sm:$0xf]
        %v263 = vld [vmem:[%s250 + $0x28] sm:$0xf]
        %v264 = vld [vmem:[%s250 + $0x2c] sm:$0xf]
        %v265 = vld [vmem:[%s250 + $0x30] sm:$0xf]
        %v266 = vld [vmem:[%s250 + $0x34] sm:$0xf]
        %v267 = vld [vmem:[%s250 + $0x38] sm:$0xf]
        %v268 = vld [vmem:[%s250 + $0x3c] sm:$0xf]
        %v269 = vld [vmem:[%s250 + $0x40] sm:$0xf]
        %v270 = vld [vmem:[%s250 + $0x44] sm:$0xf]
        %v271 = vld [vmem:[%s250 + $0x48] sm:$0xf]
        %v272 = vld [vmem:[%s250 + $0x4c] sm:$0xf]
        %v273 = vld [vmem:[%s250 + $0x50] sm:$0xf]
        %v274 = vld [vmem:[%s250 + $0x54] sm:$0xf]
        %v275 = vld [vmem:[%s250 + $0x58] sm:$0xf]
        %v276 = vld [vmem:[%s250 + $0x5c] sm:$0xf]
        %v277 = vld [vmem:[%s250 + $0x60] sm:$0xf]
        %v278 = vld [vmem:[%s250 + $0x64] sm:$0xf]
        %v279 = vld [vmem:[%s250 + $0x68] sm:$0xf]
        %v280 = vld [vmem:[%s250 + $0x6c] sm:$0xf]
        %v281 = vld [vmem:[%s250 + $0x70] sm:$0xf]
        %v282 = vld [vmem:[%s250 + $0x74] sm:$0xf]
        %v283 = vld [vmem:[%s250 + $0x78] sm:$0xf]
        %v284 = vld [vmem:[%s250 + $0x7c] sm:$0xf]
        %v285 = vld [vmem:[%s250 + $0x80] sm:$0xf]
        %v286 = vld [vmem:[%s250 + $0x84] sm:$0x1]
        %v287 = vld [vmem:[%s250] sm:$0xe]
        %v288 = vld [vmem:[%s250 + $0x84] sm:$0x3]
        %v289 = vld [vmem:[%s250] sm:$0xc]
        %v290 = vld [vmem:[%s250 + $0x84] sm:$0x7]
        %v291 = vld [vmem:[%s250] sm:$0x8]
        %v292 = vld [vmem:[%s250 + $0x84] sm:$0xf]
        %v326 = vunpack.c.l.b16 %v253
        %v327 = vunpack.c.l.b16 %v254
        %v328 = vunpack.c.l.b16 %v255
        %v329 = vunpack.c.l.b16 %v256
        %v330 = vunpack.c.l.b16 %v257
        %v331 = vunpack.c.l.b16 %v258
        %v332 = vunpack.c.l.b16 %v259
        %v333 = vunpack.c.l.b16 %v260
        %v334 = vunpack.c.l.b16 %v261
        %v335 = vunpack.c.l.b16 %v262
        %v336 = vunpack.c.l.b16 %v263
        %v337 = vunpack.c.l.b16 %v264
        %v338 = vunpack.c.l.b16 %v265
        %v339 = vunpack.c.l.b16 %v266
        %v340 = vunpack.c.l.b16 %v267
        %v341 = vunpack.c.l.b16 %v268
        %v342 = vunpack.c.l.b16 %v269
        %v343 = vunpack.c.l.b16 %v270
        %v344 = vunpack.c.l.b16 %v271
        %v345 = vunpack.c.l.b16 %v272
        %v346 = vunpack.c.l.b16 %v273
        %v347 = vunpack.c.l.b16 %v274
        %v348 = vunpack.c.l.b16 %v275
        %v349 = vunpack.c.l.b16 %v276
        %v350 = vunpack.c.l.b16 %v277
        %v351 = vunpack.c.l.b16 %v278
        %v352 = vunpack.c.l.b16 %v279
        %v353 = vunpack.c.l.b16 %v280
        %v354 = vunpack.c.l.b16 %v281
        %v355 = vunpack.c.l.b16 %v282
        %v356 = vunpack.c.l.b16 %v283
        %v357 = vunpack.c.l.b16 %v284
        %v358 = vunpack.c.l.b16 %v285
        %v359 = vpack.c.b16 %v327, %v326
        %v360 = vpack.c.b16 %v329, %v328
        %v361 = vpack.c.b16 %v331, %v330
        %v362 = vpack.c.b16 %v333, %v332
        %v363 = vpack.c.b16 %v335, %v334
        %v364 = vpack.c.b16 %v337, %v336
        %v365 = vpack.c.b16 %v339, %v338
        %v366 = vpack.c.b16 %v341, %v340
        %v367 = vpack.c.b16 %v343, %v342
        %v368 = vpack.c.b16 %v345, %v344
        %v369 = vpack.c.b16 %v347, %v346
        %v370 = vpack.c.b16 %v349, %v348
        %v371 = vpack.c.b16 %v351, %v350
        %v372 = vpack.c.b16 %v353, %v352
        %v373 = vpack.c.b16 %v355, %v354
        %v374 = vpack.c.b16 %v357, %v356
        %v375 = vpack.c.b16 %v358, %v358
        %v377 = vunpack.c.l.b16 %v286
        %v378 = vpack.c.b16 %v377, %v358
        %vm379 = vsmask.f32 7424
        %v381 = vshrl.u32 %v359, 16
        %v383 = vshll.u32 %v359, 16
        %v385 = vrot.slane %v383, 1
        %v386 = vor.u32 %v381, %v385
        %v388 = vshll.u32 %v360, 16
        %v390 = vrot.slane %v388, 1
        %v391 = vsel %vm379, %v386, %v390
        %v392 = vshrl.u32 %v360, 16
        %v394 = vor.u32 %v392, %v390
        %v396 = vshll.u32 %v361, 16
        %v398 = vrot.slane %v396, 1
        %v399 = vsel %vm379, %v394, %v398
        %v400 = vshrl.u32 %v361, 16
        %v402 = vor.u32 %v400, %v398
        %v404 = vshll.u32 %v362, 16
        %v406 = vrot.slane %v404, 1
        %v407 = vsel %vm379, %v402, %v406
        %v408 = vshrl.u32 %v362, 16
        %v410 = vor.u32 %v408, %v406
        %v412 = vshll.u32 %v363, 16
        %v414 = vrot.slane %v412, 1
        %v415 = vsel %vm379, %v410, %v414
        %v416 = vshrl.u32 %v363, 16
        %v418 = vor.u32 %v416, %v414
        %v420 = vshll.u32 %v364, 16
        %v422 = vrot.slane %v420, 1
        %v423 = vsel %vm379, %v418, %v422
        %v424 = vshrl.u32 %v364, 16
        %v426 = vor.u32 %v424, %v422
        %v428 = vshll.u32 %v365, 16
        %v430 = vrot.slane %v428, 1
        %v431 = vsel %vm379, %v426, %v430
        %v432 = vshrl.u32 %v365, 16
        %v434 = vor.u32 %v432, %v430
        %v436 = vshll.u32 %v366, 16
        %v438 = vrot.slane %v436, 1
        %v439 = vsel %vm379, %v434, %v438
        %v440 = vshrl.u32 %v366, 16
        %v442 = vor.u32 %v440, %v438
        %v444 = vshll.u32 %v367, 16
        %v446 = vrot.slane %v444, 1
        %v447 = vsel %vm379, %v442, %v446
        %v448 = vshrl.u32 %v367, 16
        %v450 = vor.u32 %v448, %v446
        %v452 = vshll.u32 %v368, 16
        %v454 = vrot.slane %v452, 1
        %v455 = vsel %vm379, %v450, %v454
        %v456 = vshrl.u32 %v368, 16
        %v458 = vor.u32 %v456, %v454
        %v460 = vshll.u32 %v369, 16
        %v462 = vrot.slane %v460, 1
        %v463 = vsel %vm379, %v458, %v462
        %v464 = vshrl.u32 %v369, 16
        %v466 = vor.u32 %v464, %v462
        %v468 = vshll.u32 %v370, 16
        %v470 = vrot.slane %v468, 1
        %v471 = vsel %vm379, %v466, %v470
        %v472 = vshrl.u32 %v370, 16
        %v474 = vor.u32 %v472, %v470
        %v476 = vshll.u32 %v371, 16
        %v478 = vrot.slane %v476, 1
        %v479 = vsel %vm379, %v474, %v478
        %v480 = vshrl.u32 %v371, 16
        %v482 = vor.u32 %v480, %v478
        %v484 = vshll.u32 %v372, 16
        %v486 = vrot.slane %v484, 1
        %v487 = vsel %vm379, %v482, %v486
        %v488 = vshrl.u32 %v372, 16
        %v490 = vor.u32 %v488, %v486
        %v492 = vshll.u32 %v373, 16
        %v494 = vrot.slane %v492, 1
        %v495 = vsel %vm379, %v490, %v494
        %v496 = vshrl.u32 %v373, 16
        %v498 = vor.u32 %v496, %v494
        %v500 = vshll.u32 %v374, 16
        %v502 = vrot.slane %v500, 1
        %v503 = vsel %vm379, %v498, %v502
        %v504 = vshrl.u32 %v374, 16
        %v506 = vor.u32 %v504, %v502
        %v508 = vshll.u32 %v378, 16
        %v510 = vrot.slane %v508, 1
        %v511 = vsel %vm379, %v506, %v510
        %v512 = vshrl.u32 %v378, 16
        %v514 = vor.u32 %v512, %v510
        %515 = vrot.lane.b32.xlu0 %v391, 4
        %v516 = vpop.permute.xlu0 %515
        %517 = vrot.lane.b32.xlu0 %v399, 4
        %v518 = vpop.permute.xlu0 %517
        %519 = vrot.lane.b32.xlu0 %v407, 4
        %v520 = vpop.permute.xlu0 %519
        %521 = vrot.lane.b32.xlu0 %v415, 4
        %v522 = vpop.permute.xlu0 %521
        %523 = vrot.lane.b32.xlu0 %v423, 4
        %v524 = vpop.permute.xlu0 %523
        %525 = vrot.lane.b32.xlu0 %v431, 4
        %v526 = vpop.permute.xlu0 %525
        %527 = vrot.lane.b32.xlu0 %v439, 4
        %v528 = vpop.permute.xlu0 %527
        %529 = vrot.lane.b32.xlu0 %v447, 4
        %v530 = vpop.permute.xlu0 %529
        %531 = vrot.lane.b32.xlu0 %v455, 4
        %v532 = vpop.permute.xlu0 %531
        %533 = vrot.lane.b32.xlu0 %v463, 4
        %v534 = vpop.permute.xlu0 %533
        %535 = vrot.lane.b32.xlu0 %v471, 4
        %v536 = vpop.permute.xlu0 %535
        %537 = vrot.lane.b32.xlu0 %v479, 4
        %v538 = vpop.permute.xlu0 %537
        %539 = vrot.lane.b32.xlu0 %v487, 4
        %v540 = vpop.permute.xlu0 %539
        %541 = vrot.lane.b32.xlu0 %v495, 4
        %v542 = vpop.permute.xlu0 %541
        %543 = vrot.lane.b32.xlu0 %v503, 4
        %v544 = vpop.permute.xlu0 %543
        %545 = vrot.lane.b32.xlu0 %v511, 4
        %v546 = vpop.permute.xlu0 %545
        %547 = vrot.lane.b32.xlu0 %v514, 4
        %v548 = vpop.permute.xlu0 %547
        %v550 = vunpack.c.l.b16 %v287
        %v551 = vpack.c.b16 %v327, %v550
        %vm552 = vcmask 1046528
        %v553 = vrot.slane %v551, 1
        %v554 = vrot.slane %v360, 1
        %v555 = vsel %vm552, %v553, %v554
        %v556 = vrot.slane %v361, 1
        %v557 = vsel %vm552, %v554, %v556
        %v558 = vrot.slane %v362, 1
        %v559 = vsel %vm552, %v556, %v558
        %v560 = vrot.slane %v363, 1
        %v561 = vsel %vm552, %v558, %v560
        %v562 = vrot.slane %v364, 1
        %v563 = vsel %vm552, %v560, %v562
        %v564 = vrot.slane %v365, 1
        %v565 = vsel %vm552, %v562, %v564
        %v566 = vrot.slane %v366, 1
        %v567 = vsel %vm552, %v564, %v566
        %v568 = vrot.slane %v367, 1
        %v569 = vsel %vm552, %v566, %v568
        %v570 = vrot.slane %v368, 1
        %v571 = vsel %vm552, %v568, %v570
        %v572 = vrot.slane %v369, 1
        %v573 = vsel %vm552, %v570, %v572
        %v574 = vrot.slane %v370, 1
        %v575 = vsel %vm552, %v572, %v574
        %v576 = vrot.slane %v371, 1
        %v577 = vsel %vm552, %v574, %v576
        %v578 = vrot.slane %v372, 1
        %v579 = vsel %vm552, %v576, %v578
        %v580 = vrot.slane %v373, 1
        %v581 = vsel %vm552, %v578, %v580
        %v582 = vrot.slane %v374, 1
        %v583 = vsel %vm552, %v580, %v582
        %v584 = vrot.slane %v378, 1
        %v585 = vsel %vm552, %v582, %v584
        %586 = vrot.lane.b32.xlu0 %v555, 8
        %v587 = vpop.permute.xlu0 %586
        %588 = vrot.lane.b32.xlu0 %v557, 8
        %v589 = vpop.permute.xlu0 %588
        %590 = vrot.lane.b32.xlu0 %v559, 8
        %v591 = vpop.permute.xlu0 %590
        %592 = vrot.lane.b32.xlu0 %v561, 8
        %v593 = vpop.permute.xlu0 %592
        %594 = vrot.lane.b32.xlu0 %v563, 8
        %v595 = vpop.permute.xlu0 %594
        %596 = vrot.lane.b32.xlu0 %v565, 8
        %v597 = vpop.permute.xlu0 %596
        %598 = vrot.lane.b32.xlu0 %v567, 8
        %v599 = vpop.permute.xlu0 %598
        %600 = vrot.lane.b32.xlu0 %v569, 8
        %v601 = vpop.permute.xlu0 %600
        %602 = vrot.lane.b32.xlu0 %v571, 8
        %v603 = vpop.permute.xlu0 %602
        %604 = vrot.lane.b32.xlu0 %v573, 8
        %v605 = vpop.permute.xlu0 %604
        %606 = vrot.lane.b32.xlu0 %v575, 8
        %v607 = vpop.permute.xlu0 %606
        %608 = vrot.lane.b32.xlu0 %v577, 8
        %v609 = vpop.permute.xlu0 %608
        %610 = vrot.lane.b32.xlu0 %v579, 8
        %v611 = vpop.permute.xlu0 %610
        %612 = vrot.lane.b32.xlu0 %v581, 8
        %v613 = vpop.permute.xlu0 %612
        %614 = vrot.lane.b32.xlu0 %v583, 8
        %v615 = vpop.permute.xlu0 %614
        %616 = vrot.lane.b32.xlu0 %v585, 8
        %v617 = vpop.permute.xlu0 %616
        %618 = vrot.lane.b32.xlu0 %v584, 8
        %v619 = vpop.permute.xlu0 %618
        %v621 = vunpack.c.l.b16 %v288
        %v622 = vpack.c.b16 %v621, %v358
        %vm623 = vsmask.f32 6400
        %v625 = vshrl.u32 %v551, 16
        %v627 = vrot.slane %v625, 1
        %v628 = vshll.u32 %v551, 16
        %v630 = vrot.slane %v628, 2
        %v631 = vor.u32 %v627, %v630
        %v632 = vrot.slane %v392, 1
        %v633 = vrot.slane %v388, 2
        %v634 = vor.u32 %v632, %v633
        %v635 = vsel %vm623, %v631, %v634
        %v636 = vrot.slane %v400, 1
        %v637 = vrot.slane %v396, 2
        %v638 = vor.u32 %v636, %v637
        %v639 = vsel %vm623, %v634, %v638
        %v640 = vrot.slane %v408, 1
        %v641 = vrot.slane %v404, 2
        %v642 = vor.u32 %v640, %v641
        %v643 = vsel %vm623, %v638, %v642
        %v644 = vrot.slane %v416, 1
        %v645 = vrot.slane %v412, 2
        %v646 = vor.u32 %v644, %v645
        %v647 = vsel %vm623, %v642, %v646
        %v648 = vrot.slane %v424, 1
        %v649 = vrot.slane %v420, 2
        %v650 = vor.u32 %v648, %v649
        %v651 = vsel %vm623, %v646, %v650
        %v652 = vrot.slane %v432, 1
        %v653 = vrot.slane %v428, 2
        %v654 = vor.u32 %v652, %v653
        %v655 = vsel %vm623, %v650, %v654
        %v656 = vrot.slane %v440, 1
        %v657 = vrot.slane %v436, 2
        %v658 = vor.u32 %v656, %v657
        %v659 = vsel %vm623, %v654, %v658
        %v660 = vrot.slane %v448, 1
        %v661 = vrot.slane %v444, 2
        %v662 = vor.u32 %v660, %v661
        %v663 = vsel %vm623, %v658, %v662
        %v664 = vrot.slane %v456, 1
        %v665 = vrot.slane %v452, 2
        %v666 = vor.u32 %v664, %v665
        %v667 = vsel %vm623, %v662, %v666
        %v668 = vrot.slane %v464, 1
        %v669 = vrot.slane %v460, 2
        %v670 = vor.u32 %v668, %v669
        %v671 = vsel %vm623, %v666, %v670
        %v672 = vrot.slane %v472, 1
        %v673 = vrot.slane %v468, 2
        %v674 = vor.u32 %v672, %v673
        %v675 = vsel %vm623, %v670, %v674
        %v676 = vrot.slane %v480, 1
        %v677 = vrot.slane %v476, 2
        %v678 = vor.u32 %v676, %v677
        %v679 = vsel %vm623, %v674, %v678
        %v680 = vrot.slane %v488, 1
        %v681 = vrot.slane %v484, 2
        %v682 = vor.u32 %v680, %v681
        %v683 = vsel %vm623, %v678, %v682
        %v684 = vrot.slane %v496, 1
        %v685 = vrot.slane %v492, 2
        %v686 = vor.u32 %v684, %v685
        %v687 = vsel %vm623, %v682, %v686
        %v688 = vrot.slane %v504, 1
        %v689 = vrot.slane %v500, 2
        %v690 = vor.u32 %v688, %v689
        %v691 = vsel %vm623, %v686, %v690
        %v693 = vshrl.u32 %v622, 16
        %v695 = vrot.slane %v693, 1
        %v696 = vshll.u32 %v622, 16
        %v698 = vrot.slane %v696, 2
        %v699 = vor.u32 %v695, %v698
        %v700 = vsel %vm623, %v690, %v699
        %701 = vrot.lane.b32.xlu0 %v635, 12
        %v702 = vpop.permute.xlu0 %701
        %703 = vrot.lane.b32.xlu0 %v639, 12
        %v704 = vpop.permute.xlu0 %703
        %705 = vrot.lane.b32.xlu0 %v643, 12
        %v706 = vpop.permute.xlu0 %705
        %707 = vrot.lane.b32.xlu0 %v647, 12
        %v708 = vpop.permute.xlu0 %707
        %709 = vrot.lane.b32.xlu0 %v651, 12
        %v710 = vpop.permute.xlu0 %709
        %711 = vrot.lane.b32.xlu0 %v655, 12
        %v712 = vpop.permute.xlu0 %711
        %713 = vrot.lane.b32.xlu0 %v659, 12
        %v714 = vpop.permute.xlu0 %713
        %715 = vrot.lane.b32.xlu0 %v663, 12
        %v716 = vpop.permute.xlu0 %715
        %717 = vrot.lane.b32.xlu0 %v667, 12
        %v718 = vpop.permute.xlu0 %717
        %719 = vrot.lane.b32.xlu0 %v671, 12
        %v720 = vpop.permute.xlu0 %719
        %721 = vrot.lane.b32.xlu0 %v675, 12
        %v722 = vpop.permute.xlu0 %721
        %723 = vrot.lane.b32.xlu0 %v679, 12
        %v724 = vpop.permute.xlu0 %723
        %725 = vrot.lane.b32.xlu0 %v683, 12
        %v726 = vpop.permute.xlu0 %725
        %727 = vrot.lane.b32.xlu0 %v687, 12
        %v728 = vpop.permute.xlu0 %727
        %729 = vrot.lane.b32.xlu0 %v691, 12
        %v730 = vpop.permute.xlu0 %729
        %731 = vrot.lane.b32.xlu0 %v700, 12
        %v732 = vpop.permute.xlu0 %731
        %733 = vrot.lane.b32.xlu0 %v699, 12
        %v734 = vpop.permute.xlu0 %733
        %v736 = vunpack.c.l.b16 %v289
        %v737 = vpack.c.b16 %v327, %v736
        %vm738 = vcmask 1045504
        %v739 = vrot.slane %v737, 2
        %v740 = vrot.slane %v360, 2
        %v741 = vsel %vm738, %v739, %v740
        %v742 = vrot.slane %v361, 2
        %v743 = vsel %vm738, %v740, %v742
        %v744 = vrot.slane %v362, 2
        %v745 = vsel %vm738, %v742, %v744
        %v746 = vrot.slane %v363, 2
        %v747 = vsel %vm738, %v744, %v746
        %v748 = vrot.slane %v364, 2
        %v749 = vsel %vm738, %v746, %v748
        %v750 = vrot.slane %v365, 2
        %v751 = vsel %vm738, %v748, %v750
        %v752 = vrot.slane %v366, 2
        %v753 = vsel %vm738, %v750, %v752
        %v754 = vrot.slane %v367, 2
        %v755 = vsel %vm738, %v752, %v754
        %v756 = vrot.slane %v368, 2
        %v757 = vsel %vm738, %v754, %v756
        %v758 = vrot.slane %v369, 2
        %v759 = vsel %vm738, %v756, %v758
        %v760 = vrot.slane %v370, 2
        %v761 = vsel %vm738, %v758, %v760
        %v762 = vrot.slane %v371, 2
        %v763 = vsel %vm738, %v760, %v762
        %v764 = vrot.slane %v372, 2
        %v765 = vsel %vm738, %v762, %v764
        %v766 = vrot.slane %v373, 2
        %v767 = vsel %vm738, %v764, %v766
        %v768 = vrot.slane %v374, 2
        %v769 = vsel %vm738, %v766, %v768
        %v770 = vrot.slane %v622, 2
        %v771 = vsel %vm738, %v768, %v770
        %772 = vrot.lane.b32.xlu0 %v741, 16
        %v773 = vpop.permute.xlu0 %772
        %774 = vrot.lane.b32.xlu0 %v743, 16
        %v775 = vpop.permute.xlu0 %774
        %776 = vrot.lane.b32.xlu0 %v745, 16
        %v777 = vpop.permute.xlu0 %776
        %778 = vrot.lane.b32.xlu0 %v747, 16
        %v779 = vpop.permute.xlu0 %778
        %780 = vrot.lane.b32.xlu0 %v749, 16
        %v781 = vpop.permute.xlu0 %780
        %782 = vrot.lane.b32.xlu0 %v751, 16
        %v783 = vpop.permute.xlu0 %782
        %784 = vrot.lane.b32.xlu0 %v753, 16
        %v785 = vpop.permute.xlu0 %784
        %786 = vrot.lane.b32.xlu0 %v755, 16
        %v787 = vpop.permute.xlu0 %786
        %788 = vrot.lane.b32.xlu0 %v757, 16
        %v789 = vpop.permute.xlu0 %788
        %790 = vrot.lane.b32.xlu0 %v759, 16
        %v791 = vpop.permute.xlu0 %790
        %792 = vrot.lane.b32.xlu0 %v761, 16
        %v793 = vpop.permute.xlu0 %792
        %794 = vrot.lane.b32.xlu0 %v763, 16
        %v795 = vpop.permute.xlu0 %794
        %796 = vrot.lane.b32.xlu0 %v765, 16
        %v797 = vpop.permute.xlu0 %796
        %798 = vrot.lane.b32.xlu0 %v767, 16
        %v799 = vpop.permute.xlu0 %798
        %800 = vrot.lane.b32.xlu0 %v769, 16
        %v801 = vpop.permute.xlu0 %800
        %802 = vrot.lane.b32.xlu0 %v771, 16
        %v803 = vpop.permute.xlu0 %802
        %804 = vrot.lane.b32.xlu0 %v770, 16
        %v805 = vpop.permute.xlu0 %804
        %v807 = vunpack.c.l.b16 %v290
        %v808 = vpack.c.b16 %v807, %v358
        %vm809 = vsmask.f32 5376
        %v811 = vshrl.u32 %v737, 16
        %v813 = vrot.slane %v811, 2
        %v814 = vshll.u32 %v737, 16
        %v816 = vrot.slane %v814, 3
        %v817 = vor.u32 %v813, %v816
        %v818 = vrot.slane %v392, 2
        %v819 = vrot.slane %v388, 3
        %v820 = vor.u32 %v818, %v819
        %v821 = vsel %vm809, %v817, %v820
        %v822 = vrot.slane %v400, 2
        %v823 = vrot.slane %v396, 3
        %v824 = vor.u32 %v822, %v823
        %v825 = vsel %vm809, %v820, %v824
        %v826 = vrot.slane %v408, 2
        %v827 = vrot.slane %v404, 3
        %v828 = vor.u32 %v826, %v827
        %v829 = vsel %vm809, %v824, %v828
        %v830 = vrot.slane %v416, 2
        %v831 = vrot.slane %v412, 3
        %v832 = vor.u32 %v830, %v831
        %v833 = vsel %vm809, %v828, %v832
        %v834 = vrot.slane %v424, 2
        %v835 = vrot.slane %v420, 3
        %v836 = vor.u32 %v834, %v835
        %v837 = vsel %vm809, %v832, %v836
        %v838 = vrot.slane %v432, 2
        %v839 = vrot.slane %v428, 3
        %v840 = vor.u32 %v838, %v839
        %v841 = vsel %vm809, %v836, %v840
        %v842 = vrot.slane %v440, 2
        %v843 = vrot.slane %v436, 3
        %v844 = vor.u32 %v842, %v843
        %v845 = vsel %vm809, %v840, %v844
        %v846 = vrot.slane %v448, 2
        %v847 = vrot.slane %v444, 3
        %v848 = vor.u32 %v846, %v847
        %v849 = vsel %vm809, %v844, %v848
        %v850 = vrot.slane %v456, 2
        %v851 = vrot.slane %v452, 3
        %v852 = vor.u32 %v850, %v851
        %v853 = vsel %vm809, %v848, %v852
        %v854 = vrot.slane %v464, 2
        %v855 = vrot.slane %v460, 3
        %v856 = vor.u32 %v854, %v855
        %v857 = vsel %vm809, %v852, %v856
        %v858 = vrot.slane %v472, 2
        %v859 = vrot.slane %v468, 3
        %v860 = vor.u32 %v858, %v859
        %v861 = vsel %vm809, %v856, %v860
        %v862 = vrot.slane %v480, 2
        %v863 = vrot.slane %v476, 3
        %v864 = vor.u32 %v862, %v863
        %v865 = vsel %vm809, %v860, %v864
        %v866 = vrot.slane %v488, 2
        %v867 = vrot.slane %v484, 3
        %v868 = vor.u32 %v866, %v867
        %v869 = vsel %vm809, %v864, %v868
        %v870 = vrot.slane %v496, 2
        %v871 = vrot.slane %v492, 3
        %v872 = vor.u32 %v870, %v871
        %v873 = vsel %vm809, %v868, %v872
        %v874 = vrot.slane %v504, 2
        %v875 = vrot.slane %v500, 3
        %v876 = vor.u32 %v874, %v875
        %v877 = vsel %vm809, %v872, %v876
        %v879 = vshrl.u32 %v808, 16
        %v881 = vrot.slane %v879, 2
        %v882 = vshll.u32 %v808, 16
        %v884 = vrot.slane %v882, 3
        %v885 = vor.u32 %v881, %v884
        %v886 = vsel %vm809, %v876, %v885
        %887 = vrot.lane.b32.xlu0 %v821, 20
        %v888 = vpop.permute.xlu0 %887
        %889 = vrot.lane.b32.xlu0 %v825, 20
        %v890 = vpop.permute.xlu0 %889
        %891 = vrot.lane.b32.xlu0 %v829, 20
        %v892 = vpop.permute.xlu0 %891
        %893 = vrot.lane.b32.xlu0 %v833, 20
        %v894 = vpop.permute.xlu0 %893
        %895 = vrot.lane.b32.xlu0 %v837, 20
        %v896 = vpop.permute.xlu0 %895
        %897 = vrot.lane.b32.xlu0 %v841, 20
        %v898 = vpop.permute.xlu0 %897
        %899 = vrot.lane.b32.xlu0 %v845, 20
        %v900 = vpop.permute.xlu0 %899
        %901 = vrot.lane.b32.xlu0 %v849, 20
        %v902 = vpop.permute.xlu0 %901
        %903 = vrot.lane.b32.xlu0 %v853, 20
        %v904 = vpop.permute.xlu0 %903
        %905 = vrot.lane.b32.xlu0 %v857, 20
        %v906 = vpop.permute.xlu0 %905
        %907 = vrot.lane.b32.xlu0 %v861, 20
        %v908 = vpop.permute.xlu0 %907
        %909 = vrot.lane.b32.xlu0 %v865, 20
        %v910 = vpop.permute.xlu0 %909
        %911 = vrot.lane.b32.xlu0 %v869, 20
        %v912 = vpop.permute.xlu0 %911
        %913 = vrot.lane.b32.xlu0 %v873, 20
        %v914 = vpop.permute.xlu0 %913
        %915 = vrot.lane.b32.xlu0 %v877, 20
        %v916 = vpop.permute.xlu0 %915
        %917 = vrot.lane.b32.xlu0 %v886, 20
        %v918 = vpop.permute.xlu0 %917
        %919 = vrot.lane.b32.xlu0 %v885, 20
        %v920 = vpop.permute.xlu0 %919
        %v922 = vunpack.c.l.b16 %v291
        %v923 = vpack.c.b16 %v327, %v922
        %vm924 = vcmask 1044480
        %v925 = vrot.slane %v923, 3
        %v926 = vrot.slane %v360, 3
        %v927 = vsel %vm924, %v925, %v926
        %v928 = vrot.slane %v361, 3
        %v929 = vsel %vm924, %v926, %v928
        %v930 = vrot.slane %v362, 3
        %v931 = vsel %vm924, %v928, %v930
        %v932 = vrot.slane %v363, 3
        %v933 = vsel %vm924, %v930, %v932
        %v934 = vrot.slane %v364, 3
        %v935 = vsel %vm924, %v932, %v934
        %v936 = vrot.slane %v365, 3
        %v937 = vsel %vm924, %v934, %v936
        %v938 = vrot.slane %v366, 3
        %v939 = vsel %vm924, %v936, %v938
        %v940 = vrot.slane %v367, 3
        %v941 = vsel %vm924, %v938, %v940
        %v942 = vrot.slane %v368, 3
        %v943 = vsel %vm924, %v940, %v942
        %v944 = vrot.slane %v369, 3
        %v945 = vsel %vm924, %v942, %v944
        %v946 = vrot.slane %v370, 3
        %v947 = vsel %vm924, %v944, %v946
        %v948 = vrot.slane %v371, 3
        %v949 = vsel %vm924, %v946, %v948
        %v950 = vrot.slane %v372, 3
        %v951 = vsel %vm924, %v948, %v950
        %v952 = vrot.slane %v373, 3
        %v953 = vsel %vm924, %v950, %v952
        %v954 = vrot.slane %v374, 3
        %v955 = vsel %vm924, %v952, %v954
        %v956 = vrot.slane %v808, 3
        %v957 = vsel %vm924, %v954, %v956
        %958 = vrot.lane.b32.xlu0 %v927, 24
        %v959 = vpop.permute.xlu0 %958
        %960 = vrot.lane.b32.xlu0 %v929, 24
        %v961 = vpop.permute.xlu0 %960
        %962 = vrot.lane.b32.xlu0 %v931, 24
        %v963 = vpop.permute.xlu0 %962
        %964 = vrot.lane.b32.xlu0 %v933, 24
        %v965 = vpop.permute.xlu0 %964
        %966 = vrot.lane.b32.xlu0 %v935, 24
        %v967 = vpop.permute.xlu0 %966
        %968 = vrot.lane.b32.xlu0 %v937, 24
        %v969 = vpop.permute.xlu0 %968
        %970 = vrot.lane.b32.xlu0 %v939, 24
        %v971 = vpop.permute.xlu0 %970
        %972 = vrot.lane.b32.xlu0 %v941, 24
        %v973 = vpop.permute.xlu0 %972
        %974 = vrot.lane.b32.xlu0 %v943, 24
        %v975 = vpop.permute.xlu0 %974
        %976 = vrot.lane.b32.xlu0 %v945, 24
        %v977 = vpop.permute.xlu0 %976
        %978 = vrot.lane.b32.xlu0 %v947, 24
        %v979 = vpop.permute.xlu0 %978
        %980 = vrot.lane.b32.xlu0 %v949, 24
        %v981 = vpop.permute.xlu0 %980
        %982 = vrot.lane.b32.xlu0 %v951, 24
        %v983 = vpop.permute.xlu0 %982
        %984 = vrot.lane.b32.xlu0 %v953, 24
        %v985 = vpop.permute.xlu0 %984
        %986 = vrot.lane.b32.xlu0 %v955, 24
        %v987 = vpop.permute.xlu0 %986
        %988 = vrot.lane.b32.xlu0 %v957, 24
        %v989 = vpop.permute.xlu0 %988
        %990 = vrot.lane.b32.xlu0 %v956, 24
        %v991 = vpop.permute.xlu0 %990
        %v993 = vunpack.c.l.b16 %v292
        %v994 = vpack.c.b16 %v993, %v358
        %vm995 = vsmask.f32 4352
        %v997 = vshrl.u32 %v923, 16
        %v999 = vrot.slane %v997, 3
        %v1000 = vshll.u32 %v923, 16
        %v1002 = vrot.slane %v1000, 4
        %v1003 = vor.u32 %v999, %v1002
        %v1004 = vrot.slane %v392, 3
        %v1005 = vrot.slane %v388, 4
        %v1006 = vor.u32 %v1004, %v1005
        %v1007 = vsel %vm995, %v1003, %v1006
        %v1008 = vrot.slane %v400, 3
        %v1009 = vrot.slane %v396, 4
        %v1010 = vor.u32 %v1008, %v1009
        %v1011 = vsel %vm995, %v1006, %v1010
        %v1012 = vrot.slane %v408, 3
        %v1013 = vrot.slane %v404, 4
        %v1014 = vor.u32 %v1012, %v1013
        %v1015 = vsel %vm995, %v1010, %v1014
        %v1016 = vrot.slane %v416, 3
        %v1017 = vrot.slane %v412, 4
        %v1018 = vor.u32 %v1016, %v1017
        %v1019 = vsel %vm995, %v1014, %v1018
        %v1020 = vrot.slane %v424, 3
        %v1021 = vrot.slane %v420, 4
        %v1022 = vor.u32 %v1020, %v1021
        %v1023 = vsel %vm995, %v1018, %v1022
        %v1024 = vrot.slane %v432, 3
        %v1025 = vrot.slane %v428, 4
        %v1026 = vor.u32 %v1024, %v1025
        %v1027 = vsel %vm995, %v1022, %v1026
        %v1028 = vrot.slane %v440, 3
        %v1029 = vrot.slane %v436, 4
        %v1030 = vor.u32 %v1028, %v1029
        %v1031 = vsel %vm995, %v1026, %v1030
        %v1032 = vrot.slane %v448, 3
        %v1033 = vrot.slane %v444, 4
        %v1034 = vor.u32 %v1032, %v1033
        %v1035 = vsel %vm995, %v1030, %v1034
        %v1036 = vrot.slane %v456, 3
        %v1037 = vrot.slane %v452, 4
        %v1038 = vor.u32 %v1036, %v1037
        %v1039 = vsel %vm995, %v1034, %v1038
        %v1040 = vrot.slane %v464, 3
        %v1041 = vrot.slane %v460, 4
        %v1042 = vor.u32 %v1040, %v1041
        %v1043 = vsel %vm995, %v1038, %v1042
        %v1044 = vrot.slane %v472, 3
        %v1045 = vrot.slane %v468, 4
        %v1046 = vor.u32 %v1044, %v1045
        %v1047 = vsel %vm995, %v1042, %v1046
        %v1048 = vrot.slane %v480, 3
        %v1049 = vrot.slane %v476, 4
        %v1050 = vor.u32 %v1048, %v1049
        %v1051 = vsel %vm995, %v1046, %v1050
        %v1052 = vrot.slane %v488, 3
        %v1053 = vrot.slane %v484, 4
        %v1054 = vor.u32 %v1052, %v1053
        %v1055 = vsel %vm995, %v1050, %v1054
        %v1056 = vrot.slane %v496, 3
        %v1057 = vrot.slane %v492, 4
        %v1058 = vor.u32 %v1056, %v1057
        %v1059 = vsel %vm995, %v1054, %v1058
        %v1060 = vrot.slane %v504, 3
        %v1061 = vrot.slane %v500, 4
        %v1062 = vor.u32 %v1060, %v1061
        %v1063 = vsel %vm995, %v1058, %v1062
        %v1065 = vshrl.u32 %v994, 16
        %v1067 = vrot.slane %v1065, 3
        %v1068 = vshll.u32 %v994, 16
        %v1070 = vrot.slane %v1068, 4
        %v1071 = vor.u32 %v1067, %v1070
        %v1072 = vsel %vm995, %v1062, %v1071
        %1073 = vrot.lane.b32.xlu0 %v1007, 28
        %v1074 = vpop.permute.xlu0 %1073
        %1075 = vrot.lane.b32.xlu0 %v1011, 28
        %v1076 = vpop.permute.xlu0 %1075
        %1077 = vrot.lane.b32.xlu0 %v1015, 28
        %v1078 = vpop.permute.xlu0 %1077
        %1079 = vrot.lane.b32.xlu0 %v1019, 28
        %v1080 = vpop.permute.xlu0 %1079
        %1081 = vrot.lane.b32.xlu0 %v1023, 28
        %v1082 = vpop.permute.xlu0 %1081
        %1083 = vrot.lane.b32.xlu0 %v1027, 28
        %v1084 = vpop.permute.xlu0 %1083
        %1085 = vrot.lane.b32.xlu0 %v1031, 28
        %v1086 = vpop.permute.xlu0 %1085
        %1087 = vrot.lane.b32.xlu0 %v1035, 28
        %v1088 = vpop.permute.xlu0 %1087
        %1089 = vrot.lane.b32.xlu0 %v1039, 28
        %v1090 = vpop.permute.xlu0 %1089
        %1091 = vrot.lane.b32.xlu0 %v1043, 28
        %v1092 = vpop.permute.xlu0 %1091
        %1093 = vrot.lane.b32.xlu0 %v1047, 28
        %v1094 = vpop.permute.xlu0 %1093
        %1095 = vrot.lane.b32.xlu0 %v1051, 28
        %v1096 = vpop.permute.xlu0 %1095
        %1097 = vrot.lane.b32.xlu0 %v1055, 28
        %v1098 = vpop.permute.xlu0 %1097
        %1099 = vrot.lane.b32.xlu0 %v1059, 28
        %v1100 = vpop.permute.xlu0 %1099
        %1101 = vrot.lane.b32.xlu0 %v1063, 28
        %v1102 = vpop.permute.xlu0 %1101
        %1103 = vrot.lane.b32.xlu0 %v1072, 28
        %v1104 = vpop.permute.xlu0 %1103
        %1105 = vrot.lane.b32.xlu0 %v1071, 28
        %v1106 = vpop.permute.xlu0 %1105
        %vm1107 = vcmask 31744
        %v1109 = vsel %vm1107, %v359, %v516
        %v1111 = vsel %vm1107, %v360, %v518
        %v1113 = vsel %vm1107, %v361, %v520
        %v1115 = vsel %vm1107, %v362, %v522
        %v1117 = vsel %vm1107, %v363, %v524
        %v1119 = vsel %vm1107, %v364, %v526
        %v1121 = vsel %vm1107, %v365, %v528
        %v1123 = vsel %vm1107, %v366, %v530
        %v1125 = vsel %vm1107, %v367, %v532
        %v1127 = vsel %vm1107, %v368, %v534
        %v1129 = vsel %vm1107, %v369, %v536
        %v1131 = vsel %vm1107, %v370, %v538
        %v1133 = vsel %vm1107, %v371, %v540
        %v1135 = vsel %vm1107, %v372, %v542
        %v1137 = vsel %vm1107, %v373, %v544
        %v1139 = vsel %vm1107, %v374, %v546
        %v1142 = vsel %vm1107, %v375, %v548
        %vm1143 = vcmask 64512
        %v1145 = vsel %vm1143, %v1109, %v587
        %v1147 = vsel %vm1143, %v1111, %v589
        %v1149 = vsel %vm1143, %v1113, %v591
        %v1151 = vsel %vm1143, %v1115, %v593
        %v1153 = vsel %vm1143, %v1117, %v595
        %v1155 = vsel %vm1143, %v1119, %v597
        %v1157 = vsel %vm1143, %v1121, %v599
        %v1159 = vsel %vm1143, %v1123, %v601
        %v1161 = vsel %vm1143, %v1125, %v603
        %v1163 = vsel %vm1143, %v1127, %v605
        %v1165 = vsel %vm1143, %v1129, %v607
        %v1167 = vsel %vm1143, %v1131, %v609
        %v1169 = vsel %vm1143, %v1133, %v611
        %v1171 = vsel %vm1143, %v1135, %v613
        %v1173 = vsel %vm1143, %v1137, %v615
        %v1175 = vsel %vm1143, %v1139, %v617
        %v1177 = vsel %vm1143, %v1142, %v619
        %vm1178 = vcmask 97280
        %v1180 = vsel %vm1178, %v1145, %v702
        %v1182 = vsel %vm1178, %v1147, %v704
        %v1184 = vsel %vm1178, %v1149, %v706
        %v1186 = vsel %vm1178, %v1151, %v708
        %v1188 = vsel %vm1178, %v1153, %v710
        %v1190 = vsel %vm1178, %v1155, %v712
        %v1192 = vsel %vm1178, %v1157, %v714
        %v1194 = vsel %vm1178, %v1159, %v716
        %v1196 = vsel %vm1178, %v1161, %v718
        %v1198 = vsel %vm1178, %v1163, %v720
        %v1200 = vsel %vm1178, %v1165, %v722
        %v1202 = vsel %vm1178, %v1167, %v724
        %v1204 = vsel %vm1178, %v1169, %v726
        %v1206 = vsel %vm1178, %v1171, %v728
        %v1208 = vsel %vm1178, %v1173, %v730
        %v1210 = vsel %vm1178, %v1175, %v732
        %v1212 = vsel %vm1178, %v1177, %v734
        %vm1213 = vcmask 130048
        %v1215 = vsel %vm1213, %v1180, %v773
        %v1217 = vsel %vm1213, %v1182, %v775
        %v1219 = vsel %vm1213, %v1184, %v777
        %v1221 = vsel %vm1213, %v1186, %v779
        %v1223 = vsel %vm1213, %v1188, %v781
        %v1225 = vsel %vm1213, %v1190, %v783
        %v1227 = vsel %vm1213, %v1192, %v785
        %v1229 = vsel %vm1213, %v1194, %v787
        %v1231 = vsel %vm1213, %v1196, %v789
        %v1233 = vsel %vm1213, %v1198, %v791
        %v1235 = vsel %vm1213, %v1200, %v793
        %v1237 = vsel %vm1213, %v1202, %v795
        %v1239 = vsel %vm1213, %v1204, %v797
        %v1241 = vsel %vm1213, %v1206, %v799
        %v1243 = vsel %vm1213, %v1208, %v801
        %v1245 = vsel %vm1213, %v1210, %v803
        %v1247 = vsel %vm1213, %v1212, %v805
        %vm1248 = vcmask 162816
        %v1250 = vsel %vm1248, %v1215, %v888
        %v1252 = vsel %vm1248, %v1217, %v890
        %v1254 = vsel %vm1248, %v1219, %v892
        %v1256 = vsel %vm1248, %v1221, %v894
        %v1258 = vsel %vm1248, %v1223, %v896
        %v1260 = vsel %vm1248, %v1225, %v898
        %v1262 = vsel %vm1248, %v1227, %v900
        %v1264 = vsel %vm1248, %v1229, %v902
        %v1266 = vsel %vm1248, %v1231, %v904
        %v1268 = vsel %vm1248, %v1233, %v906
        %v1270 = vsel %vm1248, %v1235, %v908
        %v1272 = vsel %vm1248, %v1237, %v910
        %v1274 = vsel %vm1248, %v1239, %v912
        %v1276 = vsel %vm1248, %v1241, %v914
        %v1278 = vsel %vm1248, %v1243, %v916
        %v1280 = vsel %vm1248, %v1245, %v918
        %v1282 = vsel %vm1248, %v1247, %v920
        %vm1283 = vcmask 195584
        %v1285 = vsel %vm1283, %v1250, %v959
        %v1287 = vsel %vm1283, %v1252, %v961
        %v1289 = vsel %vm1283, %v1254, %v963
        %v1291 = vsel %vm1283, %v1256, %v965
        %v1293 = vsel %vm1283, %v1258, %v967
        %v1295 = vsel %vm1283, %v1260, %v969
        %v1297 = vsel %vm1283, %v1262, %v971
        %v1299 = vsel %vm1283, %v1264, %v973
        %v1301 = vsel %vm1283, %v1266, %v975
        %v1303 = vsel %vm1283, %v1268, %v977
        %v1305 = vsel %vm1283, %v1270, %v979
        %v1307 = vsel %vm1283, %v1272, %v981
        %v1309 = vsel %vm1283, %v1274, %v983
        %v1311 = vsel %vm1283, %v1276, %v985
        %v1313 = vsel %vm1283, %v1278, %v987
        %v1315 = vsel %vm1283, %v1280, %v989
        %v1317 = vsel %vm1283, %v1282, %v991
        %vm1318 = vcmask 228352
        %v1320 = vsel %vm1318, %v1285, %v1074
        %v1322 = vsel %vm1318, %v1287, %v1076
        %v1324 = vsel %vm1318, %v1289, %v1078
        %v1326 = vsel %vm1318, %v1291, %v1080
        %v1328 = vsel %vm1318, %v1293, %v1082
        %v1330 = vsel %vm1318, %v1295, %v1084
        %v1332 = vsel %vm1318, %v1297, %v1086
        %v1334 = vsel %vm1318, %v1299, %v1088
        %v1336 = vsel %vm1318, %v1301, %v1090
        %v1338 = vsel %vm1318, %v1303, %v1092
        %v1340 = vsel %vm1318, %v1305, %v1094
        %v1342 = vsel %vm1318, %v1307, %v1096
        %v1344 = vsel %vm1318, %v1309, %v1098
        %v1346 = vsel %vm1318, %v1311, %v1100
        %v1348 = vsel %vm1318, %v1313, %v1102
        %v1350 = vsel %vm1318, %v1315, %v1104
        %v1352 = vsel %vm1318, %v1317, %v1106
        %v1370 = vunpack.c.l.b16 %v1320
        %v1371 = vunpack.c.h.b16 %v1320
        %v1372 = vunpack.c.l.b16 %v1322
        %v1373 = vunpack.c.h.b16 %v1322
        %v1374 = vunpack.c.l.b16 %v1324
        %v1375 = vunpack.c.h.b16 %v1324
        %v1376 = vunpack.c.l.b16 %v1326
        %v1377 = vunpack.c.h.b16 %v1326
        %v1378 = vunpack.c.l.b16 %v1328
        %v1379 = vunpack.c.h.b16 %v1328
        %v1380 = vunpack.c.l.b16 %v1330
        %v1381 = vunpack.c.h.b16 %v1330
        %v1382 = vunpack.c.l.b16 %v1332
        %v1383 = vunpack.c.h.b16 %v1332
        %v1384 = vunpack.c.l.b16 %v1334
        %v1385 = vunpack.c.h.b16 %v1334
        %v1386 = vunpack.c.l.b16 %v1336
        %v1387 = vunpack.c.h.b16 %v1336
        %v1388 = vunpack.c.l.b16 %v1338
        %v1389 = vunpack.c.h.b16 %v1338
        %v1390 = vunpack.c.l.b16 %v1340
        %v1391 = vunpack.c.h.b16 %v1340
        %v1392 = vunpack.c.l.b16 %v1342
        %v1393 = vunpack.c.h.b16 %v1342
        %v1394 = vunpack.c.l.b16 %v1344
        %v1395 = vunpack.c.h.b16 %v1344
        %v1396 = vunpack.c.l.b16 %v1346
        %v1397 = vunpack.c.h.b16 %v1346
        %v1398 = vunpack.c.l.b16 %v1348
        %v1399 = vunpack.c.h.b16 %v1348
        %v1400 = vunpack.c.l.b16 %v1350
        %v1401 = vunpack.c.h.b16 %v1350
        %v1402 = vunpack.c.l.b16 %v1352
        %v1403 = vpack.c.b16 %v1370, %v1370
        %v1404 = vpack.c.b16 %v1371, %v1371
        %v1405 = vpack.c.b16 %v1372, %v1372
        %v1406 = vpack.c.b16 %v1373, %v1373
        %v1407 = vpack.c.b16 %v1374, %v1374
        %v1408 = vpack.c.b16 %v1375, %v1375
        %v1409 = vpack.c.b16 %v1376, %v1376
        %v1410 = vpack.c.b16 %v1377, %v1377
        %v1411 = vpack.c.b16 %v1378, %v1378
        %v1412 = vpack.c.b16 %v1379, %v1379
        %v1413 = vpack.c.b16 %v1380, %v1380
        %v1414 = vpack.c.b16 %v1381, %v1381
        %v1415 = vpack.c.b16 %v1382, %v1382
        %v1416 = vpack.c.b16 %v1383, %v1383
        %v1417 = vpack.c.b16 %v1384, %v1384
        %v1418 = vpack.c.b16 %v1385, %v1385
        %v1419 = vpack.c.b16 %v1386, %v1386
        %v1420 = vpack.c.b16 %v1387, %v1387
        %v1421 = vpack.c.b16 %v1388, %v1388
        %v1422 = vpack.c.b16 %v1389, %v1389
        %v1423 = vpack.c.b16 %v1390, %v1390
        %v1424 = vpack.c.b16 %v1391, %v1391
        %v1425 = vpack.c.b16 %v1392, %v1392
        %v1426 = vpack.c.b16 %v1393, %v1393
        %v1427 = vpack.c.b16 %v1394, %v1394
        %v1428 = vpack.c.b16 %v1395, %v1395
        %v1429 = vpack.c.b16 %v1396, %v1396
        %v1430 = vpack.c.b16 %v1397, %v1397
        %v1431 = vpack.c.b16 %v1398, %v1398
        %v1432 = vpack.c.b16 %v1399, %v1399
        %v1433 = vpack.c.b16 %v1400, %v1400
        %v1434 = vpack.c.b16 %v1401, %v1401
        %v1435 = vpack.c.b16 %v1402, %v1402
        %vm1469 = vcmask 257024
        %1470 = vst.msk [vmem:[#allocation3] sm:$0xf] %vm1469, %v1403
        %1471 = vst.msk [vmem:[#allocation3 + $0x8] sm:$0xf] %vm1469, %v1404
        %1472 = vst.msk [vmem:[#allocation3 + $0x10] sm:$0xf] %vm1469, %v1405
        %1473 = vst.msk [vmem:[#allocation3 + $0x18] sm:$0xf] %vm1469, %v1406
        %1474 = vst.msk [vmem:[#allocation3 + $0x20] sm:$0xf] %vm1469, %v1407
        %1475 = vst.msk [vmem:[#allocation3 + $0x28] sm:$0xf] %vm1469, %v1408
        %1476 = vst.msk [vmem:[#allocation3 + $0x30] sm:$0xf] %vm1469, %v1409
        %1477 = vst.msk [vmem:[#allocation3 + $0x38] sm:$0xf] %vm1469, %v1410
        %1478 = vst.msk [vmem:[#allocation3 + $0x40] sm:$0xf] %vm1469, %v1411
        %1479 = vst.msk [vmem:[#allocation3 + $0x48] sm:$0xf] %vm1469, %v1412
        %1480 = vst.msk [vmem:[#allocation3 + $0x50] sm:$0xf] %vm1469, %v1413
        %1481 = vst.msk [vmem:[#allocation3 + $0x58] sm:$0xf] %vm1469, %v1414
        %1482 = vst.msk [vmem:[#allocation3 + $0x60] sm:$0xf] %vm1469, %v1415
        %1483 = vst.msk [vmem:[#allocation3 + $0x68] sm:$0xf] %vm1469, %v1416
        %1484 = vst.msk [vmem:[#allocation3 + $0x70] sm:$0xf] %vm1469, %v1417
        %1485 = vst.msk [vmem:[#allocation3 + $0x78] sm:$0xf] %vm1469, %v1418
        %1486 = vst.msk [vmem:[#allocation3 + $0x80] sm:$0xf] %vm1469, %v1419
        %1487 = vst.msk [vmem:[#allocation3 + $0x88] sm:$0xf] %vm1469, %v1420
        %1488 = vst.msk [vmem:[#allocation3 + $0x90] sm:$0xf] %vm1469, %v1421
        %1489 = vst.msk [vmem:[#allocation3 + $0x98] sm:$0xf] %vm1469, %v1422
        %1490 = vst.msk [vmem:[#allocation3 + $0xa0] sm:$0xf] %vm1469, %v1423
        %1491 = vst.msk [vmem:[#allocation3 + $0xa8] sm:$0xf] %vm1469, %v1424
        %1492 = vst.msk [vmem:[#allocation3 + $0xb0] sm:$0xf] %vm1469, %v1425
        %1493 = vst.msk [vmem:[#allocation3 + $0xb8] sm:$0xf] %vm1469, %v1426
        %1494 = vst.msk [vmem:[#allocation3 + $0xc0] sm:$0xf] %vm1469, %v1427
        %1495 = vst.msk [vmem:[#allocation3 + $0xc8] sm:$0xf] %vm1469, %v1428
        %1496 = vst.msk [vmem:[#allocation3 + $0xd0] sm:$0xf] %vm1469, %v1429
        %1497 = vst.msk [vmem:[#allocation3 + $0xd8] sm:$0xf] %vm1469, %v1430
        %1498 = vst.msk [vmem:[#allocation3 + $0xe0] sm:$0xf] %vm1469, %v1431
        %1499 = vst.msk [vmem:[#allocation3 + $0xe8] sm:$0xf] %vm1469, %v1432
        %1500 = vst.msk [vmem:[#allocation3 + $0xf0] sm:$0xf] %vm1469, %v1433
        %1501 = vst.msk [vmem:[#allocation3 + $0xf8] sm:$0xf] %vm1469, %v1434
        %1502 = vst.msk [vmem:[#allocation3 + $0x100] sm:$0xf] %vm1469, %v1435
        %v1503 = vld [vmem:[#allocation3] sm:$0xf]
        %v1504 = vld [vmem:[#allocation3 + $0x8] sm:$0xf]
        %v1505 = vld [vmem:[#allocation3 + $0x10] sm:$0xf]
        %v1506 = vld [vmem:[#allocation3 + $0x18] sm:$0xf]
        %v1507 = vld [vmem:[#allocation3 + $0x20] sm:$0xf]
        %v1508 = vld [vmem:[#allocation3 + $0x28] sm:$0xf]
        %v1509 = vld [vmem:[#allocation3 + $0x30] sm:$0xf]
        %v1510 = vld [vmem:[#allocation3 + $0x38] sm:$0xf]
        %v1511 = vld [vmem:[#allocation3 + $0x40] sm:$0xf]
        %v1512 = vld [vmem:[#allocation3 + $0x48] sm:$0xf]
        %v1513 = vld [vmem:[#allocation3 + $0x50] sm:$0xf]
        %v1514 = vld [vmem:[#allocation3 + $0x58] sm:$0xf]
        %v1515 = vld [vmem:[#allocation3 + $0x60] sm:$0xf]
        %v1516 = vld [vmem:[#allocation3 + $0x68] sm:$0xf]
        %v1517 = vld [vmem:[#allocation3 + $0x70] sm:$0xf]
        %v1518 = vld [vmem:[#allocation3 + $0x78] sm:$0xf]
        %v1519 = vld [vmem:[#allocation3 + $0x80] sm:$0xf]
        %v1520 = vld [vmem:[#allocation3 + $0x88] sm:$0xf]
        %v1521 = vld [vmem:[#allocation3 + $0x90] sm:$0xf]
        %v1522 = vld [vmem:[#allocation3 + $0x98] sm:$0xf]
        %v1523 = vld [vmem:[#allocation3 + $0xa0] sm:$0xf]
        %v1524 = vld [vmem:[#allocation3 + $0xa8] sm:$0xf]
        %v1525 = vld [vmem:[#allocation3 + $0xb0] sm:$0xf]
        %v1526 = vld [vmem:[#allocation3 + $0xb8] sm:$0xf]
        %v1527 = vld [vmem:[#allocation3 + $0xc0] sm:$0xf]
        %v1528 = vld [vmem:[#allocation3 + $0xc8] sm:$0xf]
        %v1529 = vld [vmem:[#allocation3 + $0xd0] sm:$0xf]
        %v1530 = vld [vmem:[#allocation3 + $0xd8] sm:$0xf]
        %v1531 = vld [vmem:[#allocation3 + $0xe0] sm:$0xf]
        %v1532 = vld [vmem:[#allocation3 + $0xe8] sm:$0xf]
        %v1533 = vld [vmem:[#allocation3 + $0xf0] sm:$0xf]
        %v1534 = vld [vmem:[#allocation3 + $0xf8] sm:$0xf]
        %v1535 = vld [vmem:[#allocation3 + $0x100] sm:$0xf]
        %v1536 = vld [vmem:[%s1] sm:$0xf]
        %v1537 = vld [vmem:[%s1 + $0x4] sm:$0xf]
        %v1538 = vld [vmem:[%s1 + $0x8] sm:$0xf]
        %v1539 = vld [vmem:[%s1 + $0xc] sm:$0xf]
        %v1540 = vld [vmem:[%s2] sm:$0x1]
        %v1542 = vlaneseq
        %v1543 = vshrl.u32 %v1542, 7
        %v1544 = vsub.s32 0, %v1543
        %v1545 = vrot.slane %v1540, %v1544
        %v1580 = vunpack.c.l.b16 %v1503
        %v1581 = vunpack.c.l.b16 %v1504
        %v1582 = vunpack.c.l.b16 %v1505
        %v1583 = vunpack.c.l.b16 %v1506
        %v1584 = vunpack.c.l.b16 %v1507
        %v1585 = vunpack.c.l.b16 %v1508
        %v1586 = vunpack.c.l.b16 %v1509
        %v1587 = vunpack.c.l.b16 %v1510
        %v1588 = vunpack.c.l.b16 %v1511
        %v1589 = vunpack.c.l.b16 %v1512
        %v1590 = vunpack.c.l.b16 %v1513
        %v1591 = vunpack.c.l.b16 %v1514
        %v1592 = vunpack.c.l.b16 %v1515
        %v1593 = vunpack.c.l.b16 %v1516
        %v1594 = vunpack.c.l.b16 %v1517
        %v1595 = vunpack.c.l.b16 %v1518
        %v1596 = vunpack.c.l.b16 %v1519
        %v1597 = vunpack.c.l.b16 %v1520
        %v1598 = vunpack.c.l.b16 %v1521
        %v1599 = vunpack.c.l.b16 %v1522
        %v1600 = vunpack.c.l.b16 %v1523
        %v1601 = vunpack.c.l.b16 %v1524
        %v1602 = vunpack.c.l.b16 %v1525
        %v1603 = vunpack.c.l.b16 %v1526
        %v1604 = vunpack.c.l.b16 %v1527
        %v1605 = vunpack.c.l.b16 %v1528
        %v1606 = vunpack.c.l.b16 %v1529
        %v1607 = vunpack.c.l.b16 %v1530
        %v1608 = vunpack.c.l.b16 %v1531
        %v1609 = vunpack.c.l.b16 %v1532
        %v1610 = vunpack.c.l.b16 %v1533
        %v1611 = vunpack.c.l.b16 %v1534
        %v1612 = vunpack.c.l.b16 %v1535
        %v1613 = vpack.c.b16 %v1581, %v1580
        %v1614 = vpack.c.b16 %v1583, %v1582
        %v1615 = vpack.c.b16 %v1585, %v1584
        %v1616 = vpack.c.b16 %v1587, %v1586
        %v1617 = vpack.c.b16 %v1589, %v1588
        %v1618 = vpack.c.b16 %v1591, %v1590
        %v1619 = vpack.c.b16 %v1593, %v1592
        %v1620 = vpack.c.b16 %v1595, %v1594
        %v1621 = vpack.c.b16 %v1597, %v1596
        %v1622 = vpack.c.b16 %v1599, %v1598
        %v1623 = vpack.c.b16 %v1601, %v1600
        %v1624 = vpack.c.b16 %v1603, %v1602
        %v1625 = vpack.c.b16 %v1605, %v1604
        %v1626 = vpack.c.b16 %v1607, %v1606
        %v1627 = vpack.c.b16 %v1609, %v1608
        %v1628 = vpack.c.b16 %v1611, %v1610
        %v1629 = vpack.c.b16 %v1612, %v1612
        %v1634 = vunpack.c.l.b16 %v1536
        %v1635 = vunpack.c.l.b16 %v1537
        %v1636 = vunpack.c.l.b16 %v1538
        %v1637 = vunpack.c.l.b16 %v1539
        %v1638 = vpack.c.b16 %v1635, %v1634
        %v1639 = vpack.c.b16 %v1637, %v1636
        %vm1642 = vcmask 261120
        %v1644 = vsel %vm1642, %v1613, 0
        %v1647 = vsel %vm1642, %v1614, 0
        %v1650 = vsel %vm1642, %v1615, 0
        %v1653 = vsel %vm1642, %v1616, 0
        %v1656 = vsel %vm1642, %v1617, 0
        %v1659 = vsel %vm1642, %v1618, 0
        %v1662 = vsel %vm1642, %v1619, 0
        %v1665 = vsel %vm1642, %v1620, 0
        %v1668 = vsel %vm1642, %v1621, 0
        %v1671 = vsel %vm1642, %v1622, 0
        %v1674 = vsel %vm1642, %v1623, 0
        %v1677 = vsel %vm1642, %v1624, 0
        %v1680 = vsel %vm1642, %v1625, 0
        %v1683 = vsel %vm1642, %v1626, 0
        %v1686 = vsel %vm1642, %v1627, 0
        %v1689 = vsel %vm1642, %v1628, 0
        %v1692 = vsel %vm1642, %v1629, 0
        %1694 = vmatprep.subr.bf16.mxu0 0
        %1695 = vmatpush1.bf16.msra.mxu0 0
        %1696 = vmatprep.subr.bf16.mxu0 0
        %1697 = vmatpush1.bf16.msra.mxu0 0
        %1698 = vmatprep.subr.bf16.mxu0 0
        %1699 = vmatpush1.bf16.msra.mxu0 0
        %1700 = vmatprep.subr.bf16.mxu0 0
        %1701 = vmatpush1.bf16.msra.mxu0 0
        %1702 = vmatprep.subr.bf16.mxu0 0
        %1703 = vmatpush1.bf16.msra.mxu0 0
        %1704 = vmatprep.subr.bf16.mxu0 0
        %1705 = vmatpush1.bf16.msra.mxu0 0
        %1706 = vmatprep.subr.bf16.mxu0 0
        %1707 = vmatpush1.bf16.msra.mxu0 %v1639
        %1708 = vmatprep.subr.bf16.mxu0 0
        %1709 = vmatpush1.bf16.msra.mxu0 %v1638
        %1710 = vmatprep.subr.bf16.mxu0 0
        %1711 = vmatpush2.bf16.msra.mxu0 0
        %1712 = vmatprep.subr.bf16.mxu0 0
        %1713 = vmatpush2.bf16.msra.mxu0 0
        %1714 = vmatprep.subr.bf16.mxu0 0
        %1715 = vmatpush2.bf16.msra.mxu0 0
        %1716 = vmatprep.subr.bf16.mxu0 0
        %1717 = vmatpush2.bf16.msra.mxu0 0
        %1718 = vmatprep.subr.bf16.mxu0 0
        %1719 = vmatpush2.bf16.msra.mxu0 0
        %1720 = vmatprep.subr.bf16.mxu0 0
        %1721 = vmatpush2.bf16.msra.mxu0 0
        %1722 = vmatprep.subr.bf16.mxu0 0
        %1723 = vmatpush2.bf16.msra.mxu0 0
        %1724 = vmatprep.subr.bf16.mxu0 0
        %1725 = vmatpush2.bf16.msra.mxu0 0
        %1726 = vmatprep.mubr.bf16.mxu0 0
        %1727 = vmatmul.mubr.bf16.gmra.mxu0 %v1644
        %v1728 = vpop.f32.mrf.mxu0
        %v1729 = vadd.f32 %v1545, %v1728
        %v1730 = vpop.f32.mrf.mxu0
        %v1731 = vpop.f32.mrf.mxu0
        %v1732 = vadd.f32 %v1545, %v1731
        %v1733 = vpop.f32.mrf.mxu0
        %1734 = vmatprep.mubr.bf16.mxu0 0
        %1735 = vmatmul.mubr.bf16.gmra.mxu0 %v1647
        %v1736 = vpop.f32.mrf.mxu0
        %v1737 = vadd.f32 %v1545, %v1736
        %v1738 = vpop.f32.mrf.mxu0
        %v1739 = vpop.f32.mrf.mxu0
        %v1740 = vadd.f32 %v1545, %v1739
        %v1741 = vpop.f32.mrf.mxu0
        %1742 = vmatprep.mubr.bf16.mxu0 0
        %1743 = vmatmul.mubr.bf16.gmra.mxu0 %v1650
        %v1744 = vpop.f32.mrf.mxu0
        %v1745 = vadd.f32 %v1545, %v1744
        %v1746 = vpop.f32.mrf.mxu0
        %v1747 = vpop.f32.mrf.mxu0
        %v1748 = vadd.f32 %v1545, %v1747
        %v1749 = vpop.f32.mrf.mxu0
        %1750 = vmatprep.mubr.bf16.mxu0 0
        %1751 = vmatmul.mubr.bf16.gmra.mxu0 %v1653
        %v1752 = vpop.f32.mrf.mxu0
        %v1753 = vadd.f32 %v1545, %v1752
        %v1754 = vpop.f32.mrf.mxu0
        %v1755 = vpop.f32.mrf.mxu0
        %v1756 = vadd.f32 %v1545, %v1755
        %v1757 = vpop.f32.mrf.mxu0
        %1758 = vmatprep.mubr.bf16.mxu0 0
        %1759 = vmatmul.mubr.bf16.gmra.mxu0 %v1656
        %v1760 = vpop.f32.mrf.mxu0
        %v1761 = vadd.f32 %v1545, %v1760
        %v1762 = vpop.f32.mrf.mxu0
        %v1763 = vpop.f32.mrf.mxu0
        %v1764 = vadd.f32 %v1545, %v1763
        %v1765 = vpop.f32.mrf.mxu0
        %1766 = vmatprep.mubr.bf16.mxu0 0
        %1767 = vmatmul.mubr.bf16.gmra.mxu0 %v1659
        %v1768 = vpop.f32.mrf.mxu0
        %v1769 = vadd.f32 %v1545, %v1768
        %v1770 = vpop.f32.mrf.mxu0
        %v1771 = vpop.f32.mrf.mxu0
        %v1772 = vadd.f32 %v1545, %v1771
        %v1773 = vpop.f32.mrf.mxu0
        %1774 = vmatprep.mubr.bf16.mxu0 0
        %1775 = vmatmul.mubr.bf16.gmra.mxu0 %v1662
        %v1776 = vpop.f32.mrf.mxu0
        %v1777 = vadd.f32 %v1545, %v1776
        %v1778 = vpop.f32.mrf.mxu0
        %v1779 = vpop.f32.mrf.mxu0
        %v1780 = vadd.f32 %v1545, %v1779
        %v1781 = vpop.f32.mrf.mxu0
        %1782 = vmatprep.mubr.bf16.mxu0 0
        %1783 = vmatmul.mubr.bf16.gmra.mxu0 %v1665
        %v1784 = vpop.f32.mrf.mxu0
        %v1785 = vadd.f32 %v1545, %v1784
        %v1786 = vpop.f32.mrf.mxu0
        %v1787 = vpop.f32.mrf.mxu0
        %v1788 = vadd.f32 %v1545, %v1787
        %v1789 = vpop.f32.mrf.mxu0
        %1790 = vmatprep.mubr.bf16.mxu0 0
        %1791 = vmatmul.mubr.bf16.gmra.mxu0 %v1668
        %v1792 = vpop.f32.mrf.mxu0
        %v1793 = vadd.f32 %v1545, %v1792
        %v1794 = vpop.f32.mrf.mxu0
        %v1795 = vpop.f32.mrf.mxu0
        %v1796 = vadd.f32 %v1545, %v1795
        %v1797 = vpop.f32.mrf.mxu0
        %1798 = vmatprep.mubr.bf16.mxu0 0
        %1799 = vmatmul.mubr.bf16.gmra.mxu0 %v1671
        %v1800 = vpop.f32.mrf.mxu0
        %v1801 = vadd.f32 %v1545, %v1800
        %v1802 = vpop.f32.mrf.mxu0
        %v1803 = vpop.f32.mrf.mxu0
        %v1804 = vadd.f32 %v1545, %v1803
        %v1805 = vpop.f32.mrf.mxu0
        %1806 = vmatprep.mubr.bf16.mxu0 0
        %1807 = vmatmul.mubr.bf16.gmra.mxu0 %v1674
        %v1808 = vpop.f32.mrf.mxu0
        %v1809 = vadd.f32 %v1545, %v1808
        %v1810 = vpop.f32.mrf.mxu0
        %v1811 = vpop.f32.mrf.mxu0
        %v1812 = vadd.f32 %v1545, %v1811
        %v1813 = vpop.f32.mrf.mxu0
        %1814 = vmatprep.mubr.bf16.mxu0 0
        %1815 = vmatmul.mubr.bf16.gmra.mxu0 %v1677
        %v1816 = vpop.f32.mrf.mxu0
        %v1817 = vadd.f32 %v1545, %v1816
        %v1818 = vpop.f32.mrf.mxu0
        %v1819 = vpop.f32.mrf.mxu0
        %v1820 = vadd.f32 %v1545, %v1819
        %v1821 = vpop.f32.mrf.mxu0
        %1822 = vmatprep.mubr.bf16.mxu0 0
        %1823 = vmatmul.mubr.bf16.gmra.mxu0 %v1680
        %v1824 = vpop.f32.mrf.mxu0
        %v1825 = vadd.f32 %v1545, %v1824
        %v1826 = vpop.f32.mrf.mxu0
        %v1827 = vpop.f32.mrf.mxu0
        %v1828 = vadd.f32 %v1545, %v1827
        %v1829 = vpop.f32.mrf.mxu0
        %1830 = vmatprep.mubr.bf16.mxu0 0
        %1831 = vmatmul.mubr.bf16.gmra.mxu0 %v1683
        %v1832 = vpop.f32.mrf.mxu0
        %v1833 = vadd.f32 %v1545, %v1832
        %v1834 = vpop.f32.mrf.mxu0
        %v1835 = vpop.f32.mrf.mxu0
        %v1836 = vadd.f32 %v1545, %v1835
        %v1837 = vpop.f32.mrf.mxu0
        %1838 = vmatprep.mubr.bf16.mxu0 0
        %1839 = vmatmul.mubr.bf16.gmra.mxu0 %v1686
        %v1840 = vpop.f32.mrf.mxu0
        %v1841 = vadd.f32 %v1545, %v1840
        %v1842 = vpop.f32.mrf.mxu0
        %v1843 = vpop.f32.mrf.mxu0
        %v1844 = vadd.f32 %v1545, %v1843
        %v1845 = vpop.f32.mrf.mxu0
        %1846 = vmatprep.mubr.bf16.mxu0 0
        %1847 = vmatmul.mubr.bf16.gmra.mxu0 %v1689
        %v1848 = vpop.f32.mrf.mxu0
        %v1849 = vadd.f32 %v1545, %v1848
        %v1850 = vpop.f32.mrf.mxu0
        %v1851 = vpop.f32.mrf.mxu0
        %v1852 = vadd.f32 %v1545, %v1851
        %v1853 = vpop.f32.mrf.mxu0
        %1854 = vmatprep.mubr.bf16.mxu0 0
        %1855 = vmatmul.mubr.bf16.gmra.mxu0 %v1692
        %v1856 = vpop.f32.mrf.mxu0
        %v1857 = vadd.f32 %v1545, %v1856
        %v1858 = vpop.f32.mrf.mxu0
        %v1859 = vpop.f32.mrf.mxu0
        %v1860 = vpop.f32.mrf.mxu0
        %1861 = vdwg.mxu0
        %s1862 = ssub.s32 %s252, 3
        %p1863 = scmp.lt.s32.totalorder %s1862, 0
        %s1864 = sadd.s32 %s252, 261
        %p1865 = scmp.gt.s32.totalorder %s1864, 64
        %p1866 = por %p1863, %p1865
        // Predicated region
        $region41: #{tpu_custom_call.1} parent=39 // pred_check
          %p1867 = pneg %p1866
        $region42: #{tpu_custom_call.1} parent=39 // pred_check_branch
          %1869 = sbr.rel (%p1867) target = $region44
        $region43: #{tpu_custom_call.1} parent=39 // pred_region
          %v1870 = vlaneseq
          %v1871 = vshrl.u32 %v1870, 7
          %v1872 = vadd.s32 %v1871, 8
          %v1873 = vadd.s32 %v1871, 16
          %v1874 = vadd.s32 %v1871, 24
          %v1875 = vadd.s32 %v1871, 32
          %v1876 = vadd.s32 %v1871, 40
          %v1877 = vadd.s32 %v1871, 48
          %v1878 = vadd.s32 %v1871, 56
          %v1879 = vadd.s32 %v1871, 64
          %v1880 = vadd.s32 %v1871, 72
          %v1881 = vadd.s32 %v1871, 80
          %v1882 = vadd.s32 %v1871, 88
          %v1883 = vadd.s32 %v1871, 96
          %v1884 = vadd.s32 %v1871, 104
          %v1885 = vadd.s32 %v1871, 112
          %v1886 = vadd.s32 %v1871, 120
          %v1887 = vadd.s32 %v1871, 128
          %v1888 = vadd.s32 %v1871, 136
          %v1889 = vadd.s32 %v1871, 144
          %v1890 = vadd.s32 %v1871, 152
          %v1891 = vadd.s32 %v1871, 160
          %v1892 = vadd.s32 %v1871, 168
          %v1893 = vadd.s32 %v1871, 176
          %v1894 = vadd.s32 %v1871, 184
          %v1895 = vadd.s32 %v1871, 192
          %v1896 = vadd.s32 %v1871, 200
          %v1897 = vadd.s32 %v1871, 208
          %v1898 = vadd.s32 %v1871, 216
          %v1899 = vadd.s32 %v1871, 224
          %v1900 = vadd.s32 %v1871, 232
          %v1901 = vadd.s32 %v1871, 240
          %v1902 = vadd.s32 %v1871, 248
          %v1903 = vadd.s32 %v1871, 256
          %v1904 = vstv %s1862
          %v1905 = vadd.s32 %v1904, %v1871
          %v1906 = vadd.s32 %v1904, %v1872
          %v1907 = vadd.s32 %v1904, %v1873
          %v1908 = vadd.s32 %v1904, %v1874
          %v1909 = vadd.s32 %v1904, %v1875
          %v1910 = vadd.s32 %v1904, %v1876
          %v1911 = vadd.s32 %v1904, %v1877
          %v1912 = vadd.s32 %v1904, %v1878
          %v1913 = vadd.s32 %v1904, %v1879
          %v1914 = vadd.s32 %v1904, %v1880
          %v1915 = vadd.s32 %v1904, %v1881
          %v1916 = vadd.s32 %v1904, %v1882
          %v1917 = vadd.s32 %v1904, %v1883
          %v1918 = vadd.s32 %v1904, %v1884
          %v1919 = vadd.s32 %v1904, %v1885
          %v1920 = vadd.s32 %v1904, %v1886
          %v1921 = vadd.s32 %v1904, %v1887
          %v1922 = vadd.s32 %v1904, %v1888
          %v1923 = vadd.s32 %v1904, %v1889
          %v1924 = vadd.s32 %v1904, %v1890
          %v1925 = vadd.s32 %v1904, %v1891
          %v1926 = vadd.s32 %v1904, %v1892
          %v1927 = vadd.s32 %v1904, %v1893
          %v1928 = vadd.s32 %v1904, %v1894
          %v1929 = vadd.s32 %v1904, %v1895
          %v1930 = vadd.s32 %v1904, %v1896
          %v1931 = vadd.s32 %v1904, %v1897
          %v1932 = vadd.s32 %v1904, %v1898
          %v1933 = vadd.s32 %v1904, %v1899
          %v1934 = vadd.s32 %v1904, %v1900
          %v1935 = vadd.s32 %v1904, %v1901
          %v1936 = vadd.s32 %v1904, %v1902
          %v1937 = vadd.s32 %v1904, %v1903
          %vm1938 = vcmp.ge.s32.totalorder %v1905, 0
          %vm1939 = vcmp.ge.s32.totalorder %v1906, 0
          %vm1940 = vcmp.ge.s32.totalorder %v1907, 0
          %vm1941 = vcmp.ge.s32.totalorder %v1908, 0
          %vm1942 = vcmp.ge.s32.totalorder %v1909, 0
          %vm1943 = vcmp.ge.s32.totalorder %v1910, 0
          %vm1944 = vcmp.ge.s32.totalorder %v1911, 0
          %vm1945 = vcmp.ge.s32.totalorder %v1912, 0
          %vm1946 = vcmp.ge.s32.totalorder %v1913, 0
          %vm1947 = vcmp.ge.s32.totalorder %v1914, 0
          %vm1948 = vcmp.ge.s32.totalorder %v1915, 0
          %vm1949 = vcmp.ge.s32.totalorder %v1916, 0
          %vm1950 = vcmp.ge.s32.totalorder %v1917, 0
          %vm1951 = vcmp.ge.s32.totalorder %v1918, 0
          %vm1952 = vcmp.ge.s32.totalorder %v1919, 0
          %vm1953 = vcmp.ge.s32.totalorder %v1920, 0
          %vm1954 = vcmp.ge.s32.totalorder %v1921, 0
          %vm1955 = vcmp.ge.s32.totalorder %v1922, 0
          %vm1956 = vcmp.ge.s32.totalorder %v1923, 0
          %vm1957 = vcmp.ge.s32.totalorder %v1924, 0
          %vm1958 = vcmp.ge.s32.totalorder %v1925, 0
          %vm1959 = vcmp.ge.s32.totalorder %v1926, 0
          %vm1960 = vcmp.ge.s32.totalorder %v1927, 0
          %vm1961 = vcmp.ge.s32.totalorder %v1928, 0
          %vm1962 = vcmp.ge.s32.totalorder %v1929, 0
          %vm1963 = vcmp.ge.s32.totalorder %v1930, 0
          %vm1964 = vcmp.ge.s32.totalorder %v1931, 0
          %vm1965 = vcmp.ge.s32.totalorder %v1932, 0
          %vm1966 = vcmp.ge.s32.totalorder %v1933, 0
          %vm1967 = vcmp.ge.s32.totalorder %v1934, 0
          %vm1968 = vcmp.ge.s32.totalorder %v1935, 0
          %vm1969 = vcmp.ge.s32.totalorder %v1936, 0
          %vm1970 = vcmp.ge.s32.totalorder %v1937, 0
          %vm1971 = vcmp.lt.s32.totalorder %v1905, 64
          %vm1972 = vcmp.lt.s32.totalorder %v1906, 64
          %vm1973 = vcmp.lt.s32.totalorder %v1907, 64
          %vm1974 = vcmp.lt.s32.totalorder %v1908, 64
          %vm1975 = vcmp.lt.s32.totalorder %v1909, 64
          %vm1976 = vcmp.lt.s32.totalorder %v1910, 64
          %vm1977 = vcmp.lt.s32.totalorder %v1911, 64
          %vm1978 = vcmp.lt.s32.totalorder %v1912, 64
          %vm1979 = vcmp.lt.s32.totalorder %v1913, 64
          %vm1980 = vcmp.lt.s32.totalorder %v1914, 64
          %vm1981 = vcmp.lt.s32.totalorder %v1915, 64
          %vm1982 = vcmp.lt.s32.totalorder %v1916, 64
          %vm1983 = vcmp.lt.s32.totalorder %v1917, 64
          %vm1984 = vcmp.lt.s32.totalorder %v1918, 64
          %vm1985 = vcmp.lt.s32.totalorder %v1919, 64
          %vm1986 = vcmp.lt.s32.totalorder %v1920, 64
          %vm1987 = vcmp.lt.s32.totalorder %v1921, 64
          %vm1988 = vcmp.lt.s32.totalorder %v1922, 64
          %vm1989 = vcmp.lt.s32.totalorder %v1923, 64
          %vm1990 = vcmp.lt.s32.totalorder %v1924, 64
          %vm1991 = vcmp.lt.s32.totalorder %v1925, 64
          %vm1992 = vcmp.lt.s32.totalorder %v1926, 64
          %vm1993 = vcmp.lt.s32.totalorder %v1927, 64
          %vm1994 = vcmp.lt.s32.totalorder %v1928, 64
          %vm1995 = vcmp.lt.s32.totalorder %v1929, 64
          %vm1996 = vcmp.lt.s32.totalorder %v1930, 64
          %vm1997 = vcmp.lt.s32.totalorder %v1931, 64
          %vm1998 = vcmp.lt.s32.totalorder %v1932, 64
          %vm1999 = vcmp.lt.s32.totalorder %v1933, 64
          %vm2000 = vcmp.lt.s32.totalorder %v1934, 64
          %vm2001 = vcmp.lt.s32.totalorder %v1935, 64
          %vm2002 = vcmp.lt.s32.totalorder %v1936, 64
          %vm2003 = vcmp.lt.s32.totalorder %v1937, 64
          %vm2004 = vmand %vm1938, %vm1971
          %vm2005 = vmand %vm1939, %vm1972
          %vm2006 = vmand %vm1940, %vm1973
          %vm2007 = vmand %vm1941, %vm1974
          %vm2008 = vmand %vm1942, %vm1975
          %vm2009 = vmand %vm1943, %vm1976
          %vm2010 = vmand %vm1944, %vm1977
          %vm2011 = vmand %vm1945, %vm1978
          %vm2012 = vmand %vm1946, %vm1979
          %vm2013 = vmand %vm1947, %vm1980
          %vm2014 = vmand %vm1948, %vm1981
          %vm2015 = vmand %vm1949, %vm1982
          %vm2016 = vmand %vm1950, %vm1983
          %vm2017 = vmand %vm1951, %vm1984
          %vm2018 = vmand %vm1952, %vm1985
          %vm2019 = vmand %vm1953, %vm1986
          %vm2020 = vmand %vm1954, %vm1987
          %vm2021 = vmand %vm1955, %vm1988
          %vm2022 = vmand %vm1956, %vm1989
          %vm2023 = vmand %vm1957, %vm1990
          %vm2024 = vmand %vm1958, %vm1991
          %vm2025 = vmand %vm1959, %vm1992
          %vm2026 = vmand %vm1960, %vm1993
          %vm2027 = vmand %vm1961, %vm1994
          %vm2028 = vmand %vm1962, %vm1995
          %vm2029 = vmand %vm1963, %vm1996
          %vm2030 = vmand %vm1964, %vm1997
          %vm2031 = vmand %vm1965, %vm1998
          %vm2032 = vmand %vm1966, %vm1999
          %vm2033 = vmand %vm1967, %vm2000
          %vm2034 = vmand %vm1968, %vm2001
          %vm2035 = vmand %vm1969, %vm2002
          %vm2036 = vmand %vm1970, %vm2003
          %v2037 = vsel %vm2004, 1, 0
          %v2038 = vsel %vm2005, 1, 0
          %v2039 = vsel %vm2006, 1, 0
          %v2040 = vsel %vm2007, 1, 0
          %v2041 = vsel %vm2008, 1, 0
          %v2042 = vsel %vm2009, 1, 0
          %v2043 = vsel %vm2010, 1, 0
          %v2044 = vsel %vm2011, 1, 0
          %v2045 = vsel %vm2012, 1, 0
          %v2046 = vsel %vm2013, 1, 0
          %v2047 = vsel %vm2014, 1, 0
          %v2048 = vsel %vm2015, 1, 0
          %v2049 = vsel %vm2016, 1, 0
          %v2050 = vsel %vm2017, 1, 0
          %v2051 = vsel %vm2018, 1, 0
          %v2052 = vsel %vm2019, 1, 0
          %v2053 = vsel %vm2020, 1, 0
          %v2054 = vsel %vm2021, 1, 0
          %v2055 = vsel %vm2022, 1, 0
          %v2056 = vsel %vm2023, 1, 0
          %v2057 = vsel %vm2024, 1, 0
          %v2058 = vsel %vm2025, 1, 0
          %v2059 = vsel %vm2026, 1, 0
          %v2060 = vsel %vm2027, 1, 0
          %v2061 = vsel %vm2028, 1, 0
          %v2062 = vsel %vm2029, 1, 0
          %v2063 = vsel %vm2030, 1, 0
          %v2064 = vsel %vm2031, 1, 0
          %v2065 = vsel %vm2032, 1, 0
          %v2066 = vsel %vm2033, 1, 0
          %v2067 = vsel %vm2034, 1, 0
          %v2068 = vsel %vm2035, 1, 0
          %v2069 = vsel %vm2036, 1, 0
          %vm2070 = vcmp.eq.s32.totalorder %v2037, 1
          %vm2071 = vcmp.eq.s32.totalorder %v2038, 1
          %vm2072 = vcmp.eq.s32.totalorder %v2039, 1
          %vm2073 = vcmp.eq.s32.totalorder %v2040, 1
          %vm2074 = vcmp.eq.s32.totalorder %v2041, 1
          %vm2075 = vcmp.eq.s32.totalorder %v2042, 1
          %vm2076 = vcmp.eq.s32.totalorder %v2043, 1
          %vm2077 = vcmp.eq.s32.totalorder %v2044, 1
          %vm2078 = vcmp.eq.s32.totalorder %v2045, 1
          %vm2079 = vcmp.eq.s32.totalorder %v2046, 1
          %vm2080 = vcmp.eq.s32.totalorder %v2047, 1
          %vm2081 = vcmp.eq.s32.totalorder %v2048, 1
          %vm2082 = vcmp.eq.s32.totalorder %v2049, 1
          %vm2083 = vcmp.eq.s32.totalorder %v2050, 1
          %vm2084 = vcmp.eq.s32.totalorder %v2051, 1
          %vm2085 = vcmp.eq.s32.totalorder %v2052, 1
          %vm2086 = vcmp.eq.s32.totalorder %v2053, 1
          %vm2087 = vcmp.eq.s32.totalorder %v2054, 1
          %vm2088 = vcmp.eq.s32.totalorder %v2055, 1
          %vm2089 = vcmp.eq.s32.totalorder %v2056, 1
          %vm2090 = vcmp.eq.s32.totalorder %v2057, 1
          %vm2091 = vcmp.eq.s32.totalorder %v2058, 1
          %vm2092 = vcmp.eq.s32.totalorder %v2059, 1
          %vm2093 = vcmp.eq.s32.totalorder %v2060, 1
          %vm2094 = vcmp.eq.s32.totalorder %v2061, 1
          %vm2095 = vcmp.eq.s32.totalorder %v2062, 1
          %vm2096 = vcmp.eq.s32.totalorder %v2063, 1
          %vm2097 = vcmp.eq.s32.totalorder %v2064, 1
          %vm2098 = vcmp.eq.s32.totalorder %v2065, 1
          %vm2099 = vcmp.eq.s32.totalorder %v2066, 1
          %vm2100 = vcmp.eq.s32.totalorder %v2067, 1
          %vm2101 = vcmp.eq.s32.totalorder %v2068, 1
          %vm2102 = vcmp.eq.s32.totalorder %v2069, 1
          %v2103 = vsel %vm2070, %v1729, 0.0
          %v2104 = vsel %vm2071, %v1732, 0.0
          %v2105 = vsel %vm2072, %v1737, 0.0
          %v2106 = vsel %vm2073, %v1740, 0.0
          %v2107 = vsel %vm2074, %v1745, 0.0
          %v2108 = vsel %vm2075, %v1748, 0.0
          %v2109 = vsel %vm2076, %v1753, 0.0
          %v2110 = vsel %vm2077, %v1756, 0.0
          %v2111 = vsel %vm2078, %v1761, 0.0
          %v2112 = vsel %vm2079, %v1764, 0.0
          %v2113 = vsel %vm2080, %v1769, 0.0
          %v2114 = vsel %vm2081, %v1772, 0.0
          %v2115 = vsel %vm2082, %v1777, 0.0
          %v2116 = vsel %vm2083, %v1780, 0.0
          %v2117 = vsel %vm2084, %v1785, 0.0
          %v2118 = vsel %vm2085, %v1788, 0.0
          %v2119 = vsel %vm2086, %v1793, 0.0
          %v2120 = vsel %vm2087, %v1796, 0.0
          %v2121 = vsel %vm2088, %v1801, 0.0
          %v2122 = vsel %vm2089, %v1804, 0.0
          %v2123 = vsel %vm2090, %v1809, 0.0
          %v2124 = vsel %vm2091, %v1812, 0.0
          %v2125 = vsel %vm2092, %v1817, 0.0
          %v2126 = vsel %vm2093, %v1820, 0.0
          %v2127 = vsel %vm2094, %v1825, 0.0
          %v2128 = vsel %vm2095, %v1828, 0.0
          %v2129 = vsel %vm2096, %v1833, 0.0
          %v2130 = vsel %vm2097, %v1836, 0.0
          %v2131 = vsel %vm2098, %v1841, 0.0
          %v2132 = vsel %vm2099, %v1844, 0.0
          %v2133 = vsel %vm2100, %v1849, 0.0
          %v2134 = vsel %vm2101, %v1852, 0.0
          %v2135 = vsel %vm2102, %v1857, 0.0
          %2136 = vst.msk [vmem:[#allocation2] sm:$0xff] %vm1642, %v2103
          %2137 = vst.msk [vmem:[#allocation2 + $0x8] sm:$0xff] %vm1642, %v2104
          %2138 = vst.msk [vmem:[#allocation2 + $0x10] sm:$0xff] %vm1642, %v2105
          %2139 = vst.msk [vmem:[#allocation2 + $0x18] sm:$0xff] %vm1642, %v2106
          %2140 = vst.msk [vmem:[#allocation2 + $0x20] sm:$0xff] %vm1642, %v2107
          %2141 = vst.msk [vmem:[#allocation2 + $0x28] sm:$0xff] %vm1642, %v2108
          %2142 = vst.msk [vmem:[#allocation2 + $0x30] sm:$0xff] %vm1642, %v2109
          %2143 = vst.msk [vmem:[#allocation2 + $0x38] sm:$0xff] %vm1642, %v2110
          %2144 = vst.msk [vmem:[#allocation2 + $0x40] sm:$0xff] %vm1642, %v2111
          %2145 = vst.msk [vmem:[#allocation2 + $0x48] sm:$0xff] %vm1642, %v2112
          %2146 = vst.msk [vmem:[#allocation2 + $0x50] sm:$0xff] %vm1642, %v2113
          %2147 = vst.msk [vmem:[#allocation2 + $0x58] sm:$0xff] %vm1642, %v2114
          %2148 = vst.msk [vmem:[#allocation2 + $0x60] sm:$0xff] %vm1642, %v2115
          %2149 = vst.msk [vmem:[#allocation2 + $0x68] sm:$0xff] %vm1642, %v2116
          %2150 = vst.msk [vmem:[#allocation2 + $0x70] sm:$0xff] %vm1642, %v2117
          %2151 = vst.msk [vmem:[#allocation2 + $0x78] sm:$0xff] %vm1642, %v2118
          %2152 = vst.msk [vmem:[#allocation2 + $0x80] sm:$0xff] %vm1642, %v2119
          %2153 = vst.msk [vmem:[#allocation2 + $0x88] sm:$0xff] %vm1642, %v2120
          %2154 = vst.msk [vmem:[#allocation2 + $0x90] sm:$0xff] %vm1642, %v2121
          %2155 = vst.msk [vmem:[#allocation2 + $0x98] sm:$0xff] %vm1642, %v2122
          %2156 = vst.msk [vmem:[#allocation2 + $0xa0] sm:$0xff] %vm1642, %v2123
          %2157 = vst.msk [vmem:[#allocation2 + $0xa8] sm:$0xff] %vm1642, %v2124
          %2158 = vst.msk [vmem:[#allocation2 + $0xb0] sm:$0xff] %vm1642, %v2125
          %2159 = vst.msk [vmem:[#allocation2 + $0xb8] sm:$0xff] %vm1642, %v2126
          %2160 = vst.msk [vmem:[#allocation2 + $0xc0] sm:$0xff] %vm1642, %v2127
          %2161 = vst.msk [vmem:[#allocation2 + $0xc8] sm:$0xff] %vm1642, %v2128
          %2162 = vst.msk [vmem:[#allocation2 + $0xd0] sm:$0xff] %vm1642, %v2129
          %2163 = vst.msk [vmem:[#allocation2 + $0xd8] sm:$0xff] %vm1642, %v2130
          %2164 = vst.msk [vmem:[#allocation2 + $0xe0] sm:$0xff] %vm1642, %v2131
          %2165 = vst.msk [vmem:[#allocation2 + $0xe8] sm:$0xff] %vm1642, %v2132
          %2166 = vst.msk [vmem:[#allocation2 + $0xf0] sm:$0xff] %vm1642, %v2133
          %2167 = vst.msk [vmem:[#allocation2 + $0xf8] sm:$0xff] %vm1642, %v2134
          %2168 = vst.msk [vmem:[#allocation2 + $0x100] sm:$0xff] %vm1642, %v2135
        $region44: #{tpu_custom_call.1} parent=39 // pred_fallthru
          _
        %p2169 = pneg %p1866
        // Predicated region
        $region45: #{tpu_custom_call.1} parent=39 // pred_check
          _
        $region46: #{tpu_custom_call.1} parent=39 // pred_check_branch
          %2171 = sbr.rel (%p1866) target = $region48
        $region47: #{tpu_custom_call.1} parent=39 // pred_region
          %2172 = vst.msk [vmem:[#allocation2] sm:$0xff] %vm1642, %v1729
          %2173 = vst.msk [vmem:[#allocation2 + $0x8] sm:$0xff] %vm1642, %v1732
          %2174 = vst.msk [vmem:[#allocation2 + $0x10] sm:$0xff] %vm1642, %v1737
          %2175 = vst.msk [vmem:[#allocation2 + $0x18] sm:$0xff] %vm1642, %v1740
          %2176 = vst.msk [vmem:[#allocation2 + $0x20] sm:$0xff] %vm1642, %v1745
          %2177 = vst.msk [vmem:[#allocation2 + $0x28] sm:$0xff] %vm1642, %v1748
          %2178 = vst.msk [vmem:[#allocation2 + $0x30] sm:$0xff] %vm1642, %v1753
          %2179 = vst.msk [vmem:[#allocation2 + $0x38] sm:$0xff] %vm1642, %v1756
          %2180 = vst.msk [vmem:[#allocation2 + $0x40] sm:$0xff] %vm1642, %v1761
          %2181 = vst.msk [vmem:[#allocation2 + $0x48] sm:$0xff] %vm1642, %v1764
          %2182 = vst.msk [vmem:[#allocation2 + $0x50] sm:$0xff] %vm1642, %v1769
          %2183 = vst.msk [vmem:[#allocation2 + $0x58] sm:$0xff] %vm1642, %v1772
          %2184 = vst.msk [vmem:[#allocation2 + $0x60] sm:$0xff] %vm1642, %v1777
          %2185 = vst.msk [vmem:[#allocation2 + $0x68] sm:$0xff] %vm1642, %v1780
          %2186 = vst.msk [vmem:[#allocation2 + $0x70] sm:$0xff] %vm1642, %v1785
          %2187 = vst.msk [vmem:[#allocation2 + $0x78] sm:$0xff] %vm1642, %v1788
          %2188 = vst.msk [vmem:[#allocation2 + $0x80] sm:$0xff] %vm1642, %v1793
          %2189 = vst.msk [vmem:[#allocation2 + $0x88] sm:$0xff] %vm1642, %v1796
          %2190 = vst.msk [vmem:[#allocation2 + $0x90] sm:$0xff] %vm1642, %v1801
          %2191 = vst.msk [vmem:[#allocation2 + $0x98] sm:$0xff] %vm1642, %v1804
          %2192 = vst.msk [vmem:[#allocation2 + $0xa0] sm:$0xff] %vm1642, %v1809
          %2193 = vst.msk [vmem:[#allocation2 + $0xa8] sm:$0xff] %vm1642, %v1812
          %2194 = vst.msk [vmem:[#allocation2 + $0xb0] sm:$0xff] %vm1642, %v1817
          %2195 = vst.msk [vmem:[#allocation2 + $0xb8] sm:$0xff] %vm1642, %v1820
          %2196 = vst.msk [vmem:[#allocation2 + $0xc0] sm:$0xff] %vm1642, %v1825
          %2197 = vst.msk [vmem:[#allocation2 + $0xc8] sm:$0xff] %vm1642, %v1828
          %2198 = vst.msk [vmem:[#allocation2 + $0xd0] sm:$0xff] %vm1642, %v1833
          %2199 = vst.msk [vmem:[#allocation2 + $0xd8] sm:$0xff] %vm1642, %v1836
          %2200 = vst.msk [vmem:[#allocation2 + $0xe0] sm:$0xff] %vm1642, %v1841
          %2201 = vst.msk [vmem:[#allocation2 + $0xe8] sm:$0xff] %vm1642, %v1844
          %2202 = vst.msk [vmem:[#allocation2 + $0xf0] sm:$0xff] %vm1642, %v1849
          %2203 = vst.msk [vmem:[#allocation2 + $0xf8] sm:$0xff] %vm1642, %v1852
          %2204 = vst.msk [vmem:[#allocation2 + $0x100] sm:$0xff] %vm1642, %v1857
        $region48: #{tpu_custom_call.1} parent=39 // pred_fallthru
          _
        %s2205 = scalar_lea.vmem [#allocation2], 3
        %v2206 = vld [vmem:[%s2205] ss:$2 sm:$0xff]
        %s2207 = scalar_lea.vmem [#allocation2], 19
        %v2208 = vld [vmem:[%s2207] ss:$2 sm:$0xff]
        %s2209 = scalar_lea.vmem [#allocation2], 35
        %v2210 = vld [vmem:[%s2209] ss:$2 sm:$0xff]
        %s2211 = scalar_lea.vmem [#allocation2], 51
        %v2212 = vld [vmem:[%s2211] ss:$2 sm:$0xff]
        %s2213 = scalar_lea.vmem [#allocation2], 67
        %v2214 = vld [vmem:[%s2213] ss:$2 sm:$0xff]
        %s2215 = scalar_lea.vmem [#allocation2], 83
        %v2216 = vld [vmem:[%s2215] ss:$2 sm:$0xff]
        %s2217 = scalar_lea.vmem [#allocation2], 99
        %v2218 = vld [vmem:[%s2217] ss:$2 sm:$0xff]
        %s2219 = scalar_lea.vmem [#allocation2], 115
        %v2220 = vld [vmem:[%s2219] ss:$2 sm:$0xff]
        %s2221 = scalar_lea.vmem [#allocation2], 131
        %v2222 = vld [vmem:[%s2221] ss:$2 sm:$0xff]
        %s2223 = scalar_lea.vmem [#allocation2], 147
        %v2224 = vld [vmem:[%s2223] ss:$2 sm:$0xff]
        %s2225 = scalar_lea.vmem [#allocation2], 163
        %v2226 = vld [vmem:[%s2225] ss:$2 sm:$0xff]
        %s2227 = scalar_lea.vmem [#allocation2], 179
        %v2228 = vld [vmem:[%s2227] ss:$2 sm:$0xff]
        %s2229 = scalar_lea.vmem [#allocation2], 195
        %v2230 = vld [vmem:[%s2229] ss:$2 sm:$0xff]
        %s2231 = scalar_lea.vmem [#allocation2], 211
        %v2232 = vld [vmem:[%s2231] ss:$2 sm:$0xff]
        %s2233 = scalar_lea.vmem [#allocation2], 227
        %v2234 = vld [vmem:[%s2233] ss:$2 sm:$0xff]
        %s2235 = scalar_lea.vmem [#allocation2], 243
        %v2236 = vld [vmem:[%s2235] ss:$2 sm:$0xff]
        %s2237 = scalar_lea.vmem [#allocation2], 4
        %v2238 = vld [vmem:[%s2237] ss:$2 sm:$0xff]
        %s2239 = scalar_lea.vmem [#allocation2], 20
        %v2240 = vld [vmem:[%s2239] ss:$2 sm:$0xff]
        %s2241 = scalar_lea.vmem [#allocation2], 36
        %v2242 = vld [vmem:[%s2241] ss:$2 sm:$0xff]
        %s2243 = scalar_lea.vmem [#allocation2], 52
        %v2244 = vld [vmem:[%s2243] ss:$2 sm:$0xff]
        %s2245 = scalar_lea.vmem [#allocation2], 68
        %v2246 = vld [vmem:[%s2245] ss:$2 sm:$0xff]
        %s2247 = scalar_lea.vmem [#allocation2], 84
        %v2248 = vld [vmem:[%s2247] ss:$2 sm:$0xff]
        %s2249 = scalar_lea.vmem [#allocation2], 100
        %v2250 = vld [vmem:[%s2249] ss:$2 sm:$0xff]
        %s2251 = scalar_lea.vmem [#allocation2], 116
        %v2252 = vld [vmem:[%s2251] ss:$2 sm:$0xff]
        %s2253 = scalar_lea.vmem [#allocation2], 132
        %v2254 = vld [vmem:[%s2253] ss:$2 sm:$0xff]
        %s2255 = scalar_lea.vmem [#allocation2], 148
        %v2256 = vld [vmem:[%s2255] ss:$2 sm:$0xff]
        %s2257 = scalar_lea.vmem [#allocation2], 164
        %v2258 = vld [vmem:[%s2257] ss:$2 sm:$0xff]
        %s2259 = scalar_lea.vmem [#allocation2], 180
        %v2260 = vld [vmem:[%s2259] ss:$2 sm:$0xff]
        %s2261 = scalar_lea.vmem [#allocation2], 196
        %v2262 = vld [vmem:[%s2261] ss:$2 sm:$0xff]
        %s2263 = scalar_lea.vmem [#allocation2], 212
        %v2264 = vld [vmem:[%s2263] ss:$2 sm:$0xff]
        %s2265 = scalar_lea.vmem [#allocation2], 228
        %v2266 = vld [vmem:[%s2265] ss:$2 sm:$0xff]
        %s2267 = scalar_lea.vmem [#allocation2], 244
        %v2268 = vld [vmem:[%s2267] ss:$2 sm:$0xff]
        %v2269 = vmax.f32 %v2206, %v2238
        %v2270 = vmax.f32 %v2208, %v2240
        %v2271 = vmax.f32 %v2210, %v2242
        %v2272 = vmax.f32 %v2212, %v2244
        %v2273 = vmax.f32 %v2214, %v2246
        %v2274 = vmax.f32 %v2216, %v2248
        %v2275 = vmax.f32 %v2218, %v2250
        %v2276 = vmax.f32 %v2220, %v2252
        %v2277 = vmax.f32 %v2222, %v2254
        %v2278 = vmax.f32 %v2224, %v2256
        %v2279 = vmax.f32 %v2226, %v2258
        %v2280 = vmax.f32 %v2228, %v2260
        %v2281 = vmax.f32 %v2230, %v2262
        %v2282 = vmax.f32 %v2232, %v2264
        %v2283 = vmax.f32 %v2234, %v2266
        %v2284 = vmax.f32 %v2236, %v2268
        %v2285 = vmax.f32 %v2269, 0.0
        %v2286 = vmax.f32 %v2270, 0.0
        %v2287 = vmax.f32 %v2271, 0.0
        %v2288 = vmax.f32 %v2272, 0.0
        %v2289 = vmax.f32 %v2273, 0.0
        %v2290 = vmax.f32 %v2274, 0.0
        %v2291 = vmax.f32 %v2275, 0.0
        %v2292 = vmax.f32 %v2276, 0.0
        %v2293 = vmax.f32 %v2277, 0.0
        %v2294 = vmax.f32 %v2278, 0.0
        %v2295 = vmax.f32 %v2279, 0.0
        %v2296 = vmax.f32 %v2280, 0.0
        %v2297 = vmax.f32 %v2281, 0.0
        %v2298 = vmax.f32 %v2282, 0.0
        %v2299 = vmax.f32 %v2283, 0.0
        %v2300 = vmax.f32 %v2284, 0.0
        %2301 = vxpose.xlu0.b32.start [1/16] %v2285, 128
        %2302 = vxpose.xlu0.b32.cont [2/16] %v2286, 128
        %2303 = vxpose.xlu0.b32.cont [3/16] %v2287, 128
        %2304 = vxpose.xlu0.b32.cont [4/16] %v2288, 128
        %2305 = vxpose.xlu0.b32.cont [5/16] %v2289, 128
        %2306 = vxpose.xlu0.b32.cont [6/16] %v2290, 128
        %2307 = vxpose.xlu0.b32.cont [7/16] %v2291, 128
        %2308 = vxpose.xlu0.b32.cont [8/16] %v2292, 128
        %2309 = vxpose.xlu0.b32.cont [9/16] %v2293, 128
        %2310 = vxpose.xlu0.b32.cont [10/16] %v2294, 128
        %2311 = vxpose.xlu0.b32.cont [11/16] %v2295, 128
        %2312 = vxpose.xlu0.b32.cont [12/16] %v2296, 128
        %2313 = vxpose.xlu0.b32.cont [13/16] %v2297, 128
        %2314 = vxpose.xlu0.b32.cont [14/16] %v2298, 128
        %2315 = vxpose.xlu0.b32.cont [15/16] %v2299, 128
        %2316 = vxpose.xlu0.b32.end [16/16] %v2300, 128
        %v2317 = vpop.trf.xlu0
        %v2318 = vpop.trf.xlu0
        %v2319 = vpop.trf.xlu0
        %v2320 = vpop.trf.xlu0
        %v2321 = vpop.trf.xlu0
        %v2322 = vpop.trf.xlu0
        %v2323 = vpop.trf.xlu0
        %v2324 = vpop.trf.xlu0
        %v2325 = vpop.trf.xlu0
        %v2326 = vpop.trf.xlu0
        %v2327 = vpop.trf.xlu0
        %v2328 = vpop.trf.xlu0
        %v2329 = vpop.trf.xlu0
        %v2330 = vpop.trf.xlu0
        %v2331 = vpop.trf.xlu0
        %v2332 = vpop.trf.xlu0
        %2333 = vst [vmem:[%s241] sm:$0xff] %v2317
        %2334 = vst [vmem:[%s241 + $0x8] sm:$0xff] %v2318
        %2335 = vst [vmem:[%s241 + $0x10] sm:$0xff] %v2319
        %2336 = vst [vmem:[%s241 + $0x18] sm:$0xff] %v2320
        %v2337 = vld [vmem:[#allocation2] sm:$0xff]
        %v2338 = vld [vmem:[#allocation2 + $0x8] sm:$0xff]
        %v2339 = vld [vmem:[#allocation2 + $0x10] sm:$0xff]
        %v2340 = vld [vmem:[#allocation2 + $0x18] sm:$0xff]
        %v2341 = vld [vmem:[#allocation2 + $0x20] sm:$0xff]
        %v2342 = vld [vmem:[#allocation2 + $0x28] sm:$0xff]
        %v2343 = vld [vmem:[#allocation2 + $0x30] sm:$0xff]
        %v2344 = vld [vmem:[#allocation2 + $0x38] sm:$0xff]
        %v2345 = vld [vmem:[#allocation2 + $0x40] sm:$0xff]
        %v2346 = vld [vmem:[#allocation2 + $0x48] sm:$0xff]
        %v2347 = vld [vmem:[#allocation2 + $0x50] sm:$0xff]
        %v2348 = vld [vmem:[#allocation2 + $0x58] sm:$0xff]
        %v2349 = vld [vmem:[#allocation2 + $0x60] sm:$0xff]
        %v2350 = vld [vmem:[#allocation2 + $0x68] sm:$0xff]
        %v2351 = vld [vmem:[#allocation2 + $0x70] sm:$0xff]
        %v2352 = vld [vmem:[#allocation2 + $0x78] sm:$0xff]
        %v2353 = vld [vmem:[#allocation2 + $0x80] sm:$0xff]
        %v2354 = vld [vmem:[#allocation2 + $0x88] sm:$0xff]
        %v2355 = vld [vmem:[#allocation2 + $0x90] sm:$0xff]
        %v2356 = vld [vmem:[#allocation2 + $0x98] sm:$0xff]
        %v2357 = vld [vmem:[#allocation2 + $0xa0] sm:$0xff]
        %v2358 = vld [vmem:[#allocation2 + $0xa8] sm:$0xff]
        %v2359 = vld [vmem:[#allocation2 + $0xb0] sm:$0xff]
        %v2360 = vld [vmem:[#allocation2 + $0xb8] sm:$0xff]
        %v2361 = vld [vmem:[#allocation2 + $0xc0] sm:$0xff]
        %v2362 = vld [vmem:[#allocation2 + $0xc8] sm:$0xff]
        %v2363 = vld [vmem:[#allocation2 + $0xd0] sm:$0xff]
        %v2364 = vld [vmem:[#allocation2 + $0xd8] sm:$0xff]
        %v2365 = vld [vmem:[#allocation2 + $0xe0] sm:$0xff]
        %v2366 = vld [vmem:[#allocation2 + $0xe8] sm:$0xff]
        %v2367 = vld [vmem:[#allocation2 + $0xf0] sm:$0xff]
        %v2368 = vld [vmem:[#allocation2 + $0xf8] sm:$0xff]
        %v2369 = vpack.c.bf16 %v2338, %v2337
        %v2370 = vpack.c.bf16 %v2340, %v2339
        %v2371 = vpack.c.bf16 %v2342, %v2341
        %v2372 = vpack.c.bf16 %v2344, %v2343
        %v2373 = vpack.c.bf16 %v2346, %v2345
        %v2374 = vpack.c.bf16 %v2348, %v2347
        %v2375 = vpack.c.bf16 %v2350, %v2349
        %v2376 = vpack.c.bf16 %v2352, %v2351
        %v2377 = vpack.c.bf16 %v2354, %v2353
        %v2378 = vpack.c.bf16 %v2356, %v2355
        %v2379 = vpack.c.bf16 %v2358, %v2357
        %v2380 = vpack.c.bf16 %v2360, %v2359
        %v2381 = vpack.c.bf16 %v2362, %v2361
        %v2382 = vpack.c.bf16 %v2364, %v2363
        %v2383 = vpack.c.bf16 %v2366, %v2365
        %v2384 = vpack.c.bf16 %v2368, %v2367
        %v2385 = vld [vmem:[#allocation2 + $0x1] sm:$0xff]
        %v2386 = vld [vmem:[#allocation2 + $0x9] sm:$0xff]
        %v2387 = vld [vmem:[#allocation2 + $0x11] sm:$0xff]
        %v2388 = vld [vmem:[#allocation2 + $0x19] sm:$0xff]
        %v2389 = vld [vmem:[#allocation2 + $0x21] sm:$0xff]
        %v2390 = vld [vmem:[#allocation2 + $0x29] sm:$0xff]
        %v2391 = vld [vmem:[#allocation2 + $0x31] sm:$0xff]
        %v2392 = vld [vmem:[#allocation2 + $0x39] sm:$0xff]
        %v2393 = vld [vmem:[#allocation2 + $0x41] sm:$0xff]
        %v2394 = vld [vmem:[#allocation2 + $0x49] sm:$0xff]
        %v2395 = vld [vmem:[#allocation2 + $0x51] sm:$0xff]
        %v2396 = vld [vmem:[#allocation2 + $0x59] sm:$0xff]
        %v2397 = vld [vmem:[#allocation2 + $0x61] sm:$0xff]
        %v2398 = vld [vmem:[#allocation2 + $0x69] sm:$0xff]
        %v2399 = vld [vmem:[#allocation2 + $0x71] sm:$0xff]
        %v2400 = vld [vmem:[#allocation2 + $0x79] sm:$0xff]
        %v2401 = vld [vmem:[#allocation2 + $0x81] sm:$0xff]
        %v2402 = vld [vmem:[#allocation2 + $0x89] sm:$0xff]
        %v2403 = vld [vmem:[#allocation2 + $0x91] sm:$0xff]
        %v2404 = vld [vmem:[#allocation2 + $0x99] sm:$0xff]
        %v2405 = vld [vmem:[#allocation2 + $0xa1] sm:$0xff]
        %v2406 = vld [vmem:[#allocation2 + $0xa9] sm:$0xff]
        %v2407 = vld [vmem:[#allocation2 + $0xb1] sm:$0xff]
        %v2408 = vld [vmem:[#allocation2 + $0xb9] sm:$0xff]
        %v2409 = vld [vmem:[#allocation2 + $0xc1] sm:$0xff]
        %v2410 = vld [vmem:[#allocation2 + $0xc9] sm:$0xff]
        %v2411 = vld [vmem:[#allocation2 + $0xd1] sm:$0xff]
        %v2412 = vld [vmem:[#allocation2 + $0xd9] sm:$0xff]
        %v2413 = vld [vmem:[#allocation2 + $0xe1] sm:$0xff]
        %v2414 = vld [vmem:[#allocation2 + $0xe9] sm:$0xff]
        %v2415 = vld [vmem:[#allocation2 + $0xf1] sm:$0xff]
        %v2416 = vld [vmem:[#allocation2 + $0xf9] sm:$0xff]
        %v2417 = vpack.c.bf16 %v2386, %v2385
        %v2418 = vpack.c.bf16 %v2388, %v2387
        %v2419 = vpack.c.bf16 %v2390, %v2389
        %v2420 = vpack.c.bf16 %v2392, %v2391
        %v2421 = vpack.c.bf16 %v2394, %v2393
        %v2422 = vpack.c.bf16 %v2396, %v2395
        %v2423 = vpack.c.bf16 %v2398, %v2397
        %v2424 = vpack.c.bf16 %v2400, %v2399
        %v2425 = vpack.c.bf16 %v2402, %v2401
        %v2426 = vpack.c.bf16 %v2404, %v2403
        %v2427 = vpack.c.bf16 %v2406, %v2405
        %v2428 = vpack.c.bf16 %v2408, %v2407
        %v2429 = vpack.c.bf16 %v2410, %v2409
        %v2430 = vpack.c.bf16 %v2412, %v2411
        %v2431 = vpack.c.bf16 %v2414, %v2413
        %v2432 = vpack.c.bf16 %v2416, %v2415
        %v2433 = vld [vmem:[#allocation2 + $0x2] sm:$0xff]
        %v2434 = vld [vmem:[#allocation2 + $0xa] sm:$0xff]
        %v2435 = vld [vmem:[#allocation2 + $0x12] sm:$0xff]
        %v2436 = vld [vmem:[#allocation2 + $0x1a] sm:$0xff]
        %v2437 = vld [vmem:[#allocation2 + $0x22] sm:$0xff]
        %v2438 = vld [vmem:[#allocation2 + $0x2a] sm:$0xff]
        %v2439 = vld [vmem:[#allocation2 + $0x32] sm:$0xff]
        %v2440 = vld [vmem:[#allocation2 + $0x3a] sm:$0xff]
        %v2441 = vld [vmem:[#allocation2 + $0x42] sm:$0xff]
        %v2442 = vld [vmem:[#allocation2 + $0x4a] sm:$0xff]
        %v2443 = vld [vmem:[#allocation2 + $0x52] sm:$0xff]
        %v2444 = vld [vmem:[#allocation2 + $0x5a] sm:$0xff]
        %v2445 = vld [vmem:[#allocation2 + $0x62] sm:$0xff]
        %v2446 = vld [vmem:[#allocation2 + $0x6a] sm:$0xff]
        %v2447 = vld [vmem:[#allocation2 + $0x72] sm:$0xff]
        %v2448 = vld [vmem:[#allocation2 + $0x7a] sm:$0xff]
        %v2449 = vld [vmem:[#allocation2 + $0x82] sm:$0xff]
        %v2450 = vld [vmem:[#allocation2 + $0x8a] sm:$0xff]
        %v2451 = vld [vmem:[#allocation2 + $0x92] sm:$0xff]
        %v2452 = vld [vmem:[#allocation2 + $0x9a] sm:$0xff]
        %v2453 = vld [vmem:[#allocation2 + $0xa2] sm:$0xff]
        %v2454 = vld [vmem:[#allocation2 + $0xaa] sm:$0xff]
        %v2455 = vld [vmem:[#allocation2 + $0xb2] sm:$0xff]
        %v2456 = vld [vmem:[#allocation2 + $0xba] sm:$0xff]
        %v2457 = vld [vmem:[#allocation2 + $0xc2] sm:$0xff]
        %v2458 = vld [vmem:[#allocation2 + $0xca] sm:$0xff]
        %v2459 = vld [vmem:[#allocation2 + $0xd2] sm:$0xff]
        %v2460 = vld [vmem:[#allocation2 + $0xda] sm:$0xff]
        %v2461 = vld [vmem:[#allocation2 + $0xe2] sm:$0xff]
        %v2462 = vld [vmem:[#allocation2 + $0xea] sm:$0xff]
        %v2463 = vld [vmem:[#allocation2 + $0xf2] sm:$0xff]
        %v2464 = vld [vmem:[#allocation2 + $0xfa] sm:$0xff]
        %v2465 = vpack.c.bf16 %v2434, %v2433
        %v2466 = vpack.c.bf16 %v2436, %v2435
        %v2467 = vpack.c.bf16 %v2438, %v2437
        %v2468 = vpack.c.bf16 %v2440, %v2439
        %v2469 = vpack.c.bf16 %v2442, %v2441
        %v2470 = vpack.c.bf16 %v2444, %v2443
        %v2471 = vpack.c.bf16 %v2446, %v2445
        %v2472 = vpack.c.bf16 %v2448, %v2447
        %v2473 = vpack.c.bf16 %v2450, %v2449
        %v2474 = vpack.c.bf16 %v2452, %v2451
        %v2475 = vpack.c.bf16 %v2454, %v2453
        %v2476 = vpack.c.bf16 %v2456, %v2455
        %v2477 = vpack.c.bf16 %v2458, %v2457
        %v2478 = vpack.c.bf16 %v2460, %v2459
        %v2479 = vpack.c.bf16 %v2462, %v2461
        %v2480 = vpack.c.bf16 %v2464, %v2463
        %v2481 = vld [vmem:[#allocation2 + $0x3] sm:$0xff]
        %v2482 = vld [vmem:[#allocation2 + $0xb] sm:$0xff]
        %v2483 = vld [vmem:[#allocation2 + $0x13] sm:$0xff]
        %v2484 = vld [vmem:[#allocation2 + $0x1b] sm:$0xff]
        %v2485 = vld [vmem:[#allocation2 + $0x23] sm:$0xff]
        %v2486 = vld [vmem:[#allocation2 + $0x2b] sm:$0xff]
        %v2487 = vld [vmem:[#allocation2 + $0x33] sm:$0xff]
        %v2488 = vld [vmem:[#allocation2 + $0x3b] sm:$0xff]
        %v2489 = vld [vmem:[#allocation2 + $0x43] sm:$0xff]
        %v2490 = vld [vmem:[#allocation2 + $0x4b] sm:$0xff]
        %v2491 = vld [vmem:[#allocation2 + $0x53] sm:$0xff]
        %v2492 = vld [vmem:[#allocation2 + $0x5b] sm:$0xff]
        %v2493 = vld [vmem:[#allocation2 + $0x63] sm:$0xff]
        %v2494 = vld [vmem:[#allocation2 + $0x6b] sm:$0xff]
        %v2495 = vld [vmem:[#allocation2 + $0x73] sm:$0xff]
        %v2496 = vld [vmem:[#allocation2 + $0x7b] sm:$0xff]
        %v2497 = vld [vmem:[#allocation2 + $0x83] sm:$0xff]
        %v2498 = vld [vmem:[#allocation2 + $0x8b] sm:$0xff]
        %v2499 = vld [vmem:[#allocation2 + $0x93] sm:$0xff]
        %v2500 = vld [vmem:[#allocation2 + $0x9b] sm:$0xff]
        %v2501 = vld [vmem:[#allocation2 + $0xa3] sm:$0xff]
        %v2502 = vld [vmem:[#allocation2 + $0xab] sm:$0xff]
        %v2503 = vld [vmem:[#allocation2 + $0xb3] sm:$0xff]
        %v2504 = vld [vmem:[#allocation2 + $0xbb] sm:$0xff]
        %v2505 = vld [vmem:[#allocation2 + $0xc3] sm:$0xff]
        %v2506 = vld [vmem:[#allocation2 + $0xcb] sm:$0xff]
        %v2507 = vld [vmem:[#allocation2 + $0xd3] sm:$0xff]
        %v2508 = vld [vmem:[#allocation2 + $0xdb] sm:$0xff]
        %v2509 = vld [vmem:[#allocation2 + $0xe3] sm:$0xff]
        %v2510 = vld [vmem:[#allocation2 + $0xeb] sm:$0xff]
        %v2511 = vld [vmem:[#allocation2 + $0xf3] sm:$0xff]
        %v2512 = vld [vmem:[#allocation2 + $0xfb] sm:$0xff]
        %v2513 = vpack.c.bf16 %v2482, %v2481
        %v2514 = vpack.c.bf16 %v2484, %v2483
        %v2515 = vpack.c.bf16 %v2486, %v2485
        %v2516 = vpack.c.bf16 %v2488, %v2487
        %v2517 = vpack.c.bf16 %v2490, %v2489
        %v2518 = vpack.c.bf16 %v2492, %v2491
        %v2519 = vpack.c.bf16 %v2494, %v2493
        %v2520 = vpack.c.bf16 %v2496, %v2495
        %v2521 = vpack.c.bf16 %v2498, %v2497
        %v2522 = vpack.c.bf16 %v2500, %v2499
        %v2523 = vpack.c.bf16 %v2502, %v2501
        %v2524 = vpack.c.bf16 %v2504, %v2503
        %v2525 = vpack.c.bf16 %v2506, %v2505
        %v2526 = vpack.c.bf16 %v2508, %v2507
        %v2527 = vpack.c.bf16 %v2510, %v2509
        %v2528 = vpack.c.bf16 %v2512, %v2511
        %2545 = vrot.lane.b32.xlu0 %v2417, 32
        %v2546 = vpop.permute.xlu0 %2545
        %2547 = vrot.lane.b32.xlu0 %v2418, 32
        %v2548 = vpop.permute.xlu0 %2547
        %2549 = vrot.lane.b32.xlu0 %v2419, 32
        %v2550 = vpop.permute.xlu0 %2549
        %2551 = vrot.lane.b32.xlu0 %v2420, 32
        %v2552 = vpop.permute.xlu0 %2551
        %2553 = vrot.lane.b32.xlu0 %v2421, 32
        %v2554 = vpop.permute.xlu0 %2553
        %2555 = vrot.lane.b32.xlu0 %v2422, 32
        %v2556 = vpop.permute.xlu0 %2555
        %2557 = vrot.lane.b32.xlu0 %v2423, 32
        %v2558 = vpop.permute.xlu0 %2557
        %2559 = vrot.lane.b32.xlu0 %v2424, 32
        %v2560 = vpop.permute.xlu0 %2559
        %2561 = vrot.lane.b32.xlu0 %v2425, 32
        %v2562 = vpop.permute.xlu0 %2561
        %2563 = vrot.lane.b32.xlu0 %v2426, 32
        %v2564 = vpop.permute.xlu0 %2563
        %2565 = vrot.lane.b32.xlu0 %v2427, 32
        %v2566 = vpop.permute.xlu0 %2565
        %2567 = vrot.lane.b32.xlu0 %v2428, 32
        %v2568 = vpop.permute.xlu0 %2567
        %2569 = vrot.lane.b32.xlu0 %v2429, 32
        %v2570 = vpop.permute.xlu0 %2569
        %2571 = vrot.lane.b32.xlu0 %v2430, 32
        %v2572 = vpop.permute.xlu0 %2571
        %2573 = vrot.lane.b32.xlu0 %v2431, 32
        %v2574 = vpop.permute.xlu0 %2573
        %2575 = vrot.lane.b32.xlu0 %v2432, 32
        %v2576 = vpop.permute.xlu0 %2575
        %2593 = vrot.lane.b32.xlu0 %v2465, 64
        %v2594 = vpop.permute.xlu0 %2593
        %2595 = vrot.lane.b32.xlu0 %v2466, 64
        %v2596 = vpop.permute.xlu0 %2595
        %2597 = vrot.lane.b32.xlu0 %v2467, 64
        %v2598 = vpop.permute.xlu0 %2597
        %2599 = vrot.lane.b32.xlu0 %v2468, 64
        %v2600 = vpop.permute.xlu0 %2599
        %2601 = vrot.lane.b32.xlu0 %v2469, 64
        %v2602 = vpop.permute.xlu0 %2601
        %2603 = vrot.lane.b32.xlu0 %v2470, 64
        %v2604 = vpop.permute.xlu0 %2603
        %2605 = vrot.lane.b32.xlu0 %v2471, 64
        %v2606 = vpop.permute.xlu0 %2605
        %2607 = vrot.lane.b32.xlu0 %v2472, 64
        %v2608 = vpop.permute.xlu0 %2607
        %2609 = vrot.lane.b32.xlu0 %v2473, 64
        %v2610 = vpop.permute.xlu0 %2609
        %2611 = vrot.lane.b32.xlu0 %v2474, 64
        %v2612 = vpop.permute.xlu0 %2611
        %2613 = vrot.lane.b32.xlu0 %v2475, 64
        %v2614 = vpop.permute.xlu0 %2613
        %2615 = vrot.lane.b32.xlu0 %v2476, 64
        %v2616 = vpop.permute.xlu0 %2615
        %2617 = vrot.lane.b32.xlu0 %v2477, 64
        %v2618 = vpop.permute.xlu0 %2617
        %2619 = vrot.lane.b32.xlu0 %v2478, 64
        %v2620 = vpop.permute.xlu0 %2619
        %2621 = vrot.lane.b32.xlu0 %v2479, 64
        %v2622 = vpop.permute.xlu0 %2621
        %2623 = vrot.lane.b32.xlu0 %v2480, 64
        %v2624 = vpop.permute.xlu0 %2623
        %2641 = vrot.lane.b32.xlu0 %v2513, 96
        %v2642 = vpop.permute.xlu0 %2641
        %2643 = vrot.lane.b32.xlu0 %v2514, 96
        %v2644 = vpop.permute.xlu0 %2643
        %2645 = vrot.lane.b32.xlu0 %v2515, 96
        %v2646 = vpop.permute.xlu0 %2645
        %2647 = vrot.lane.b32.xlu0 %v2516, 96
        %v2648 = vpop.permute.xlu0 %2647
        %2649 = vrot.lane.b32.xlu0 %v2517, 96
        %v2650 = vpop.permute.xlu0 %2649
        %2651 = vrot.lane.b32.xlu0 %v2518, 96
        %v2652 = vpop.permute.xlu0 %2651
        %2653 = vrot.lane.b32.xlu0 %v2519, 96
        %v2654 = vpop.permute.xlu0 %2653
        %2655 = vrot.lane.b32.xlu0 %v2520, 96
        %v2656 = vpop.permute.xlu0 %2655
        %2657 = vrot.lane.b32.xlu0 %v2521, 96
        %v2658 = vpop.permute.xlu0 %2657
        %2659 = vrot.lane.b32.xlu0 %v2522, 96
        %v2660 = vpop.permute.xlu0 %2659
        %2661 = vrot.lane.b32.xlu0 %v2523, 96
        %v2662 = vpop.permute.xlu0 %2661
        %2663 = vrot.lane.b32.xlu0 %v2524, 96
        %v2664 = vpop.permute.xlu0 %2663
        %2665 = vrot.lane.b32.xlu0 %v2525, 96
        %v2666 = vpop.permute.xlu0 %2665
        %2667 = vrot.lane.b32.xlu0 %v2526, 96
        %v2668 = vpop.permute.xlu0 %2667
        %2669 = vrot.lane.b32.xlu0 %v2527, 96
        %v2670 = vpop.permute.xlu0 %2669
        %2671 = vrot.lane.b32.xlu0 %v2528, 96
        %v2672 = vpop.permute.xlu0 %2671
        %v2675 = vsel %vm1642, %v2369, %v2546
        %v2678 = vsel %vm1642, %v2370, %v2548
        %v2681 = vsel %vm1642, %v2371, %v2550
        %v2684 = vsel %vm1642, %v2372, %v2552
        %v2687 = vsel %vm1642, %v2373, %v2554
        %v2690 = vsel %vm1642, %v2374, %v2556
        %v2693 = vsel %vm1642, %v2375, %v2558
        %v2696 = vsel %vm1642, %v2376, %v2560
        %v2699 = vsel %vm1642, %v2377, %v2562
        %v2702 = vsel %vm1642, %v2378, %v2564
        %v2705 = vsel %vm1642, %v2379, %v2566
        %v2708 = vsel %vm1642, %v2380, %v2568
        %v2711 = vsel %vm1642, %v2381, %v2570
        %v2714 = vsel %vm1642, %v2382, %v2572
        %v2717 = vsel %vm1642, %v2383, %v2574
        %v2720 = vsel %vm1642, %v2384, %v2576
        %vm2721 = vcmask 523264
        %v2723 = vsel %vm2721, %v2675, %v2594
        %v2725 = vsel %vm2721, %v2678, %v2596
        %v2727 = vsel %vm2721, %v2681, %v2598
        %v2729 = vsel %vm2721, %v2684, %v2600
        %v2731 = vsel %vm2721, %v2687, %v2602
        %v2733 = vsel %vm2721, %v2690, %v2604
        %v2735 = vsel %vm2721, %v2693, %v2606
        %v2737 = vsel %vm2721, %v2696, %v2608
        %v2739 = vsel %vm2721, %v2699, %v2610
        %v2741 = vsel %vm2721, %v2702, %v2612
        %v2743 = vsel %vm2721, %v2705, %v2614
        %v2745 = vsel %vm2721, %v2708, %v2616
        %v2747 = vsel %vm2721, %v2711, %v2618
        %v2749 = vsel %vm2721, %v2714, %v2620
        %v2751 = vsel %vm2721, %v2717, %v2622
        %v2753 = vsel %vm2721, %v2720, %v2624
        %vm2754 = vcmask 785408
        %v2756 = vsel %vm2754, %v2723, %v2642
        %v2758 = vsel %vm2754, %v2725, %v2644
        %v2760 = vsel %vm2754, %v2727, %v2646
        %v2762 = vsel %vm2754, %v2729, %v2648
        %v2764 = vsel %vm2754, %v2731, %v2650
        %v2766 = vsel %vm2754, %v2733, %v2652
        %v2768 = vsel %vm2754, %v2735, %v2654
        %v2770 = vsel %vm2754, %v2737, %v2656
        %v2772 = vsel %vm2754, %v2739, %v2658
        %v2774 = vsel %vm2754, %v2741, %v2660
        %v2776 = vsel %vm2754, %v2743, %v2662
        %v2778 = vsel %vm2754, %v2745, %v2664
        %v2780 = vsel %vm2754, %v2747, %v2666
        %v2782 = vsel %vm2754, %v2749, %v2668
        %v2784 = vsel %vm2754, %v2751, %v2670
        %v2786 = vsel %vm2754, %v2753, %v2672
        %v2803 = vunpack.c.l.b16 %v2756
        %v2804 = vunpack.c.h.b16 %v2756
        %v2805 = vunpack.c.l.b16 %v2758
        %v2806 = vunpack.c.h.b16 %v2758
        %v2807 = vunpack.c.l.b16 %v2760
        %v2808 = vunpack.c.h.b16 %v2760
        %v2809 = vunpack.c.l.b16 %v2762
        %v2810 = vunpack.c.h.b16 %v2762
        %v2811 = vunpack.c.l.b16 %v2764
        %v2812 = vunpack.c.h.b16 %v2764
        %v2813 = vunpack.c.l.b16 %v2766
        %v2814 = vunpack.c.h.b16 %v2766
        %v2815 = vunpack.c.l.b16 %v2768
        %v2816 = vunpack.c.h.b16 %v2768
        %v2817 = vunpack.c.l.b16 %v2770
        %v2818 = vunpack.c.h.b16 %v2770
        %v2819 = vunpack.c.l.b16 %v2772
        %v2820 = vunpack.c.h.b16 %v2772
        %v2821 = vunpack.c.l.b16 %v2774
        %v2822 = vunpack.c.h.b16 %v2774
        %v2823 = vunpack.c.l.b16 %v2776
        %v2824 = vunpack.c.h.b16 %v2776
        %v2825 = vunpack.c.l.b16 %v2778
        %v2826 = vunpack.c.h.b16 %v2778
        %v2827 = vunpack.c.l.b16 %v2780
        %v2828 = vunpack.c.h.b16 %v2780
        %v2829 = vunpack.c.l.b16 %v2782
        %v2830 = vunpack.c.h.b16 %v2782
        %v2831 = vunpack.c.l.b16 %v2784
        %v2832 = vunpack.c.h.b16 %v2784
        %v2833 = vunpack.c.l.b16 %v2786
        %v2834 = vunpack.c.h.b16 %v2786
        %v2835 = vpack.c.b16 %v2803, %v2803
        %v2836 = vpack.c.b16 %v2804, %v2804
        %v2837 = vpack.c.b16 %v2805, %v2805
        %v2838 = vpack.c.b16 %v2806, %v2806
        %v2839 = vpack.c.b16 %v2807, %v2807
        %v2840 = vpack.c.b16 %v2808, %v2808
        %v2841 = vpack.c.b16 %v2809, %v2809
        %v2842 = vpack.c.b16 %v2810, %v2810
        %v2843 = vpack.c.b16 %v2811, %v2811
        %v2844 = vpack.c.b16 %v2812, %v2812
        %v2845 = vpack.c.b16 %v2813, %v2813
        %v2846 = vpack.c.b16 %v2814, %v2814
        %v2847 = vpack.c.b16 %v2815, %v2815
        %v2848 = vpack.c.b16 %v2816, %v2816
        %v2849 = vpack.c.b16 %v2817, %v2817
        %v2850 = vpack.c.b16 %v2818, %v2818
        %v2851 = vpack.c.b16 %v2819, %v2819
        %v2852 = vpack.c.b16 %v2820, %v2820
        %v2853 = vpack.c.b16 %v2821, %v2821
        %v2854 = vpack.c.b16 %v2822, %v2822
        %v2855 = vpack.c.b16 %v2823, %v2823
        %v2856 = vpack.c.b16 %v2824, %v2824
        %v2857 = vpack.c.b16 %v2825, %v2825
        %v2858 = vpack.c.b16 %v2826, %v2826
        %v2859 = vpack.c.b16 %v2827, %v2827
        %v2860 = vpack.c.b16 %v2828, %v2828
        %v2861 = vpack.c.b16 %v2829, %v2829
        %v2862 = vpack.c.b16 %v2830, %v2830
        %v2863 = vpack.c.b16 %v2831, %v2831
        %v2864 = vpack.c.b16 %v2832, %v2832
        %v2865 = vpack.c.b16 %v2833, %v2833
        %v2866 = vpack.c.b16 %v2834, %v2834
        %2899 = vst [vmem:[#allocation3] sm:$0xf] %v2835
        %2900 = vst [vmem:[#allocation3 + $0x8] sm:$0xf] %v2836
        %2901 = vst [vmem:[#allocation3 + $0x10] sm:$0xf] %v2837
        %2902 = vst [vmem:[#allocation3 + $0x18] sm:$0xf] %v2838
        %2903 = vst [vmem:[#allocation3 + $0x20] sm:$0xf] %v2839
        %2904 = vst [vmem:[#allocation3 + $0x28] sm:$0xf] %v2840
        %2905 = vst [vmem:[#allocation3 + $0x30] sm:$0xf] %v2841
        %2906 = vst [vmem:[#allocation3 + $0x38] sm:$0xf] %v2842
        %2907 = vst [vmem:[#allocation3 + $0x40] sm:$0xf] %v2843
        %2908 = vst [vmem:[#allocation3 + $0x48] sm:$0xf] %v2844
        %2909 = vst [vmem:[#allocation3 + $0x50] sm:$0xf] %v2845
        %2910 = vst [vmem:[#allocation3 + $0x58] sm:$0xf] %v2846
        %2911 = vst [vmem:[#allocation3 + $0x60] sm:$0xf] %v2847
        %2912 = vst [vmem:[#allocation3 + $0x68] sm:$0xf] %v2848
        %2913 = vst [vmem:[#allocation3 + $0x70] sm:$0xf] %v2849
        %2914 = vst [vmem:[#allocation3 + $0x78] sm:$0xf] %v2850
        %2915 = vst [vmem:[#allocation3 + $0x80] sm:$0xf] %v2851
        %2916 = vst [vmem:[#allocation3 + $0x88] sm:$0xf] %v2852
        %2917 = vst [vmem:[#allocation3 + $0x90] sm:$0xf] %v2853
        %2918 = vst [vmem:[#allocation3 + $0x98] sm:$0xf] %v2854
        %2919 = vst [vmem:[#allocation3 + $0xa0] sm:$0xf] %v2855
        %2920 = vst [vmem:[#allocation3 + $0xa8] sm:$0xf] %v2856
        %2921 = vst [vmem:[#allocation3 + $0xb0] sm:$0xf] %v2857
        %2922 = vst [vmem:[#allocation3 + $0xb8] sm:$0xf] %v2858
        %2923 = vst [vmem:[#allocation3 + $0xc0] sm:$0xf] %v2859
        %2924 = vst [vmem:[#allocation3 + $0xc8] sm:$0xf] %v2860
        %2925 = vst [vmem:[#allocation3 + $0xd0] sm:$0xf] %v2861
        %2926 = vst [vmem:[#allocation3 + $0xd8] sm:$0xf] %v2862
        %2927 = vst [vmem:[#allocation3 + $0xe0] sm:$0xf] %v2863
        %2928 = vst [vmem:[#allocation3 + $0xe8] sm:$0xf] %v2864
        %2929 = vst [vmem:[#allocation3 + $0xf0] sm:$0xf] %v2865
        %2930 = vst [vmem:[#allocation3 + $0xf8] sm:$0xf] %v2866
        %v2931 = vld [vmem:[#allocation2 + $0x4] sm:$0xff]
        %v2932 = vld [vmem:[#allocation2 + $0xc] sm:$0xff]
        %v2933 = vld [vmem:[#allocation2 + $0x14] sm:$0xff]
        %v2934 = vld [vmem:[#allocation2 + $0x1c] sm:$0xff]
        %v2935 = vld [vmem:[#allocation2 + $0x24] sm:$0xff]
        %v2936 = vld [vmem:[#allocation2 + $0x2c] sm:$0xff]
        %v2937 = vld [vmem:[#allocation2 + $0x34] sm:$0xff]
        %v2938 = vld [vmem:[#allocation2 + $0x3c] sm:$0xff]
        %v2939 = vld [vmem:[#allocation2 + $0x44] sm:$0xff]
        %v2940 = vld [vmem:[#allocation2 + $0x4c] sm:$0xff]
        %v2941 = vld [vmem:[#allocation2 + $0x54] sm:$0xff]
        %v2942 = vld [vmem:[#allocation2 + $0x5c] sm:$0xff]
        %v2943 = vld [vmem:[#allocation2 + $0x64] sm:$0xff]
        %v2944 = vld [vmem:[#allocation2 + $0x6c] sm:$0xff]
        %v2945 = vld [vmem:[#allocation2 + $0x74] sm:$0xff]
        %v2946 = vld [vmem:[#allocation2 + $0x7c] sm:$0xff]
        %v2947 = vld [vmem:[#allocation2 + $0x84] sm:$0xff]
        %v2948 = vld [vmem:[#allocation2 + $0x8c] sm:$0xff]
        %v2949 = vld [vmem:[#allocation2 + $0x94] sm:$0xff]
        %v2950 = vld [vmem:[#allocation2 + $0x9c] sm:$0xff]
        %v2951 = vld [vmem:[#allocation2 + $0xa4] sm:$0xff]
        %v2952 = vld [vmem:[#allocation2 + $0xac] sm:$0xff]
        %v2953 = vld [vmem:[#allocation2 + $0xb4] sm:$0xff]
        %v2954 = vld [vmem:[#allocation2 + $0xbc] sm:$0xff]
        %v2955 = vld [vmem:[#allocation2 + $0xc4] sm:$0xff]
        %v2956 = vld [vmem:[#allocation2 + $0xcc] sm:$0xff]
        %v2957 = vld [vmem:[#allocation2 + $0xd4] sm:$0xff]
        %v2958 = vld [vmem:[#allocation2 + $0xdc] sm:$0xff]
        %v2959 = vld [vmem:[#allocation2 + $0xe4] sm:$0xff]
        %v2960 = vld [vmem:[#allocation2 + $0xec] sm:$0xff]
        %v2961 = vld [vmem:[#allocation2 + $0xf4] sm:$0xff]
        %v2962 = vld [vmem:[#allocation2 + $0xfc] sm:$0xff]
        %v2963 = vpack.c.bf16 %v2932, %v2931
        %v2964 = vpack.c.bf16 %v2934, %v2933
        %v2965 = vpack.c.bf16 %v2936, %v2935
        %v2966 = vpack.c.bf16 %v2938, %v2937
        %v2967 = vpack.c.bf16 %v2940, %v2939
        %v2968 = vpack.c.bf16 %v2942, %v2941
        %v2969 = vpack.c.bf16 %v2944, %v2943
        %v2970 = vpack.c.bf16 %v2946, %v2945
        %v2971 = vpack.c.bf16 %v2948, %v2947
        %v2972 = vpack.c.bf16 %v2950, %v2949
        %v2973 = vpack.c.bf16 %v2952, %v2951
        %v2974 = vpack.c.bf16 %v2954, %v2953
        %v2975 = vpack.c.bf16 %v2956, %v2955
        %v2976 = vpack.c.bf16 %v2958, %v2957
        %v2977 = vpack.c.bf16 %v2960, %v2959
        %v2978 = vpack.c.bf16 %v2962, %v2961
        %v2979 = vld [vmem:[#allocation2 + $0x5] sm:$0xff]
        %v2980 = vld [vmem:[#allocation2 + $0xd] sm:$0xff]
        %v2981 = vld [vmem:[#allocation2 + $0x15] sm:$0xff]
        %v2982 = vld [vmem:[#allocation2 + $0x1d] sm:$0xff]
        %v2983 = vld [vmem:[#allocation2 + $0x25] sm:$0xff]
        %v2984 = vld [vmem:[#allocation2 + $0x2d] sm:$0xff]
        %v2985 = vld [vmem:[#allocation2 + $0x35] sm:$0xff]
        %v2986 = vld [vmem:[#allocation2 + $0x3d] sm:$0xff]
        %v2987 = vld [vmem:[#allocation2 + $0x45] sm:$0xff]
        %v2988 = vld [vmem:[#allocation2 + $0x4d] sm:$0xff]
        %v2989 = vld [vmem:[#allocation2 + $0x55] sm:$0xff]
        %v2990 = vld [vmem:[#allocation2 + $0x5d] sm:$0xff]
        %v2991 = vld [vmem:[#allocation2 + $0x65] sm:$0xff]
        %v2992 = vld [vmem:[#allocation2 + $0x6d] sm:$0xff]
        %v2993 = vld [vmem:[#allocation2 + $0x75] sm:$0xff]
        %v2994 = vld [vmem:[#allocation2 + $0x7d] sm:$0xff]
        %v2995 = vld [vmem:[#allocation2 + $0x85] sm:$0xff]
        %v2996 = vld [vmem:[#allocation2 + $0x8d] sm:$0xff]
        %v2997 = vld [vmem:[#allocation2 + $0x95] sm:$0xff]
        %v2998 = vld [vmem:[#allocation2 + $0x9d] sm:$0xff]
        %v2999 = vld [vmem:[#allocation2 + $0xa5] sm:$0xff]
        %v3000 = vld [vmem:[#allocation2 + $0xad] sm:$0xff]
        %v3001 = vld [vmem:[#allocation2 + $0xb5] sm:$0xff]
        %v3002 = vld [vmem:[#allocation2 + $0xbd] sm:$0xff]
        %v3003 = vld [vmem:[#allocation2 + $0xc5] sm:$0xff]
        %v3004 = vld [vmem:[#allocation2 + $0xcd] sm:$0xff]
        %v3005 = vld [vmem:[#allocation2 + $0xd5] sm:$0xff]
        %v3006 = vld [vmem:[#allocation2 + $0xdd] sm:$0xff]
        %v3007 = vld [vmem:[#allocation2 + $0xe5] sm:$0xff]
        %v3008 = vld [vmem:[#allocation2 + $0xed] sm:$0xff]
        %v3009 = vld [vmem:[#allocation2 + $0xf5] sm:$0xff]
        %v3010 = vld [vmem:[#allocation2 + $0xfd] sm:$0xff]
        %v3011 = vpack.c.bf16 %v2980, %v2979
        %v3012 = vpack.c.bf16 %v2982, %v2981
        %v3013 = vpack.c.bf16 %v2984, %v2983
        %v3014 = vpack.c.bf16 %v2986, %v2985
        %v3015 = vpack.c.bf16 %v2988, %v2987
        %v3016 = vpack.c.bf16 %v2990, %v2989
        %v3017 = vpack.c.bf16 %v2992, %v2991
        %v3018 = vpack.c.bf16 %v2994, %v2993
        %v3019 = vpack.c.bf16 %v2996, %v2995
        %v3020 = vpack.c.bf16 %v2998, %v2997
        %v3021 = vpack.c.bf16 %v3000, %v2999
        %v3022 = vpack.c.bf16 %v3002, %v3001
        %v3023 = vpack.c.bf16 %v3004, %v3003
        %v3024 = vpack.c.bf16 %v3006, %v3005
        %v3025 = vpack.c.bf16 %v3008, %v3007
        %v3026 = vpack.c.bf16 %v3010, %v3009
        %v3027 = vld [vmem:[#allocation2 + $0x6] sm:$0xff]
        %v3028 = vld [vmem:[#allocation2 + $0xe] sm:$0xff]
        %v3029 = vld [vmem:[#allocation2 + $0x16] sm:$0xff]
        %v3030 = vld [vmem:[#allocation2 + $0x1e] sm:$0xff]
        %v3031 = vld [vmem:[#allocation2 + $0x26] sm:$0xff]
        %v3032 = vld [vmem:[#allocation2 + $0x2e] sm:$0xff]
        %v3033 = vld [vmem:[#allocation2 + $0x36] sm:$0xff]
        %v3034 = vld [vmem:[#allocation2 + $0x3e] sm:$0xff]
        %v3035 = vld [vmem:[#allocation2 + $0x46] sm:$0xff]
        %v3036 = vld [vmem:[#allocation2 + $0x4e] sm:$0xff]
        %v3037 = vld [vmem:[#allocation2 + $0x56] sm:$0xff]
        %v3038 = vld [vmem:[#allocation2 + $0x5e] sm:$0xff]
        %v3039 = vld [vmem:[#allocation2 + $0x66] sm:$0xff]
        %v3040 = vld [vmem:[#allocation2 + $0x6e] sm:$0xff]
        %v3041 = vld [vmem:[#allocation2 + $0x76] sm:$0xff]
        %v3042 = vld [vmem:[#allocation2 + $0x7e] sm:$0xff]
        %v3043 = vld [vmem:[#allocation2 + $0x86] sm:$0xff]
        %v3044 = vld [vmem:[#allocation2 + $0x8e] sm:$0xff]
        %v3045 = vld [vmem:[#allocation2 + $0x96] sm:$0xff]
        %v3046 = vld [vmem:[#allocation2 + $0x9e] sm:$0xff]
        %v3047 = vld [vmem:[#allocation2 + $0xa6] sm:$0xff]
        %v3048 = vld [vmem:[#allocation2 + $0xae] sm:$0xff]
        %v3049 = vld [vmem:[#allocation2 + $0xb6] sm:$0xff]
        %v3050 = vld [vmem:[#allocation2 + $0xbe] sm:$0xff]
        %v3051 = vld [vmem:[#allocation2 + $0xc6] sm:$0xff]
        %v3052 = vld [vmem:[#allocation2 + $0xce] sm:$0xff]
        %v3053 = vld [vmem:[#allocation2 + $0xd6] sm:$0xff]
        %v3054 = vld [vmem:[#allocation2 + $0xde] sm:$0xff]
        %v3055 = vld [vmem:[#allocation2 + $0xe6] sm:$0xff]
        %v3056 = vld [vmem:[#allocation2 + $0xee] sm:$0xff]
        %v3057 = vld [vmem:[#allocation2 + $0xf6] sm:$0xff]
        %v3058 = vld [vmem:[#allocation2 + $0xfe] sm:$0xff]
        %v3059 = vpack.c.bf16 %v3028, %v3027
        %v3060 = vpack.c.bf16 %v3030, %v3029
        %v3061 = vpack.c.bf16 %v3032, %v3031
        %v3062 = vpack.c.bf16 %v3034, %v3033
        %v3063 = vpack.c.bf16 %v3036, %v3035
        %v3064 = vpack.c.bf16 %v3038, %v3037
        %v3065 = vpack.c.bf16 %v3040, %v3039
        %v3066 = vpack.c.bf16 %v3042, %v3041
        %v3067 = vpack.c.bf16 %v3044, %v3043
        %v3068 = vpack.c.bf16 %v3046, %v3045
        %v3069 = vpack.c.bf16 %v3048, %v3047
        %v3070 = vpack.c.bf16 %v3050, %v3049
        %v3071 = vpack.c.bf16 %v3052, %v3051
        %v3072 = vpack.c.bf16 %v3054, %v3053
        %v3073 = vpack.c.bf16 %v3056, %v3055
        %v3074 = vpack.c.bf16 %v3058, %v3057
        %v3075 = vld [vmem:[#allocation2 + $0x7] sm:$0xff]
        %v3076 = vld [vmem:[#allocation2 + $0xf] sm:$0xff]
        %v3077 = vld [vmem:[#allocation2 + $0x17] sm:$0xff]
        %v3078 = vld [vmem:[#allocation2 + $0x1f] sm:$0xff]
        %v3079 = vld [vmem:[#allocation2 + $0x27] sm:$0xff]
        %v3080 = vld [vmem:[#allocation2 + $0x2f] sm:$0xff]
        %v3081 = vld [vmem:[#allocation2 + $0x37] sm:$0xff]
        %v3082 = vld [vmem:[#allocation2 + $0x3f] sm:$0xff]
        %v3083 = vld [vmem:[#allocation2 + $0x47] sm:$0xff]
        %v3084 = vld [vmem:[#allocation2 + $0x4f] sm:$0xff]
        %v3085 = vld [vmem:[#allocation2 + $0x57] sm:$0xff]
        %v3086 = vld [vmem:[#allocation2 + $0x5f] sm:$0xff]
        %v3087 = vld [vmem:[#allocation2 + $0x67] sm:$0xff]
        %v3088 = vld [vmem:[#allocation2 + $0x6f] sm:$0xff]
        %v3089 = vld [vmem:[#allocation2 + $0x77] sm:$0xff]
        %v3090 = vld [vmem:[#allocation2 + $0x7f] sm:$0xff]
        %v3091 = vld [vmem:[#allocation2 + $0x87] sm:$0xff]
        %v3092 = vld [vmem:[#allocation2 + $0x8f] sm:$0xff]
        %v3093 = vld [vmem:[#allocation2 + $0x97] sm:$0xff]
        %v3094 = vld [vmem:[#allocation2 + $0x9f] sm:$0xff]
        %v3095 = vld [vmem:[#allocation2 + $0xa7] sm:$0xff]
        %v3096 = vld [vmem:[#allocation2 + $0xaf] sm:$0xff]
        %v3097 = vld [vmem:[#allocation2 + $0xb7] sm:$0xff]
        %v3098 = vld [vmem:[#allocation2 + $0xbf] sm:$0xff]
        %v3099 = vld [vmem:[#allocation2 + $0xc7] sm:$0xff]
        %v3100 = vld [vmem:[#allocation2 + $0xcf] sm:$0xff]
        %v3101 = vld [vmem:[#allocation2 + $0xd7] sm:$0xff]
        %v3102 = vld [vmem:[#allocation2 + $0xdf] sm:$0xff]
        %v3103 = vld [vmem:[#allocation2 + $0xe7] sm:$0xff]
        %v3104 = vld [vmem:[#allocation2 + $0xef] sm:$0xff]
        %v3105 = vld [vmem:[#allocation2 + $0xf7] sm:$0xff]
        %v3106 = vld [vmem:[#allocation2 + $0xff] sm:$0xff]
        %v3107 = vpack.c.bf16 %v3076, %v3075
        %v3108 = vpack.c.bf16 %v3078, %v3077
        %v3109 = vpack.c.bf16 %v3080, %v3079
        %v3110 = vpack.c.bf16 %v3082, %v3081
        %v3111 = vpack.c.bf16 %v3084, %v3083
        %v3112 = vpack.c.bf16 %v3086, %v3085
        %v3113 = vpack.c.bf16 %v3088, %v3087
        %v3114 = vpack.c.bf16 %v3090, %v3089
        %v3115 = vpack.c.bf16 %v3092, %v3091
        %v3116 = vpack.c.bf16 %v3094, %v3093
        %v3117 = vpack.c.bf16 %v3096, %v3095
        %v3118 = vpack.c.bf16 %v3098, %v3097
        %v3119 = vpack.c.bf16 %v3100, %v3099
        %v3120 = vpack.c.bf16 %v3102, %v3101
        %v3121 = vpack.c.bf16 %v3104, %v3103
        %v3122 = vpack.c.bf16 %v3106, %v3105
        %3139 = vrot.lane.b32.xlu0 %v3011, 32
        %v3140 = vpop.permute.xlu0 %3139
        %3141 = vrot.lane.b32.xlu0 %v3012, 32
        %v3142 = vpop.permute.xlu0 %3141
        %3143 = vrot.lane.b32.xlu0 %v3013, 32
        %v3144 = vpop.permute.xlu0 %3143
        %3145 = vrot.lane.b32.xlu0 %v3014, 32
        %v3146 = vpop.permute.xlu0 %3145
        %3147 = vrot.lane.b32.xlu0 %v3015, 32
        %v3148 = vpop.permute.xlu0 %3147
        %3149 = vrot.lane.b32.xlu0 %v3016, 32
        %v3150 = vpop.permute.xlu0 %3149
        %3151 = vrot.lane.b32.xlu0 %v3017, 32
        %v3152 = vpop.permute.xlu0 %3151
        %3153 = vrot.lane.b32.xlu0 %v3018, 32
        %v3154 = vpop.permute.xlu0 %3153
        %3155 = vrot.lane.b32.xlu0 %v3019, 32
        %v3156 = vpop.permute.xlu0 %3155
        %3157 = vrot.lane.b32.xlu0 %v3020, 32
        %v3158 = vpop.permute.xlu0 %3157
        %3159 = vrot.lane.b32.xlu0 %v3021, 32
        %v3160 = vpop.permute.xlu0 %3159
        %3161 = vrot.lane.b32.xlu0 %v3022, 32
        %v3162 = vpop.permute.xlu0 %3161
        %3163 = vrot.lane.b32.xlu0 %v3023, 32
        %v3164 = vpop.permute.xlu0 %3163
        %3165 = vrot.lane.b32.xlu0 %v3024, 32
        %v3166 = vpop.permute.xlu0 %3165
        %3167 = vrot.lane.b32.xlu0 %v3025, 32
        %v3168 = vpop.permute.xlu0 %3167
        %3169 = vrot.lane.b32.xlu0 %v3026, 32
        %v3170 = vpop.permute.xlu0 %3169
        %3187 = vrot.lane.b32.xlu0 %v3059, 64
        %v3188 = vpop.permute.xlu0 %3187
        %3189 = vrot.lane.b32.xlu0 %v3060, 64
        %v3190 = vpop.permute.xlu0 %3189
        %3191 = vrot.lane.b32.xlu0 %v3061, 64
        %v3192 = vpop.permute.xlu0 %3191
        %3193 = vrot.lane.b32.xlu0 %v3062, 64
        %v3194 = vpop.permute.xlu0 %3193
        %3195 = vrot.lane.b32.xlu0 %v3063, 64
        %v3196 = vpop.permute.xlu0 %3195
        %3197 = vrot.lane.b32.xlu0 %v3064, 64
        %v3198 = vpop.permute.xlu0 %3197
        %3199 = vrot.lane.b32.xlu0 %v3065, 64
        %v3200 = vpop.permute.xlu0 %3199
        %3201 = vrot.lane.b32.xlu0 %v3066, 64
        %v3202 = vpop.permute.xlu0 %3201
        %3203 = vrot.lane.b32.xlu0 %v3067, 64
        %v3204 = vpop.permute.xlu0 %3203
        %3205 = vrot.lane.b32.xlu0 %v3068, 64
        %v3206 = vpop.permute.xlu0 %3205
        %3207 = vrot.lane.b32.xlu0 %v3069, 64
        %v3208 = vpop.permute.xlu0 %3207
        %3209 = vrot.lane.b32.xlu0 %v3070, 64
        %v3210 = vpop.permute.xlu0 %3209
        %3211 = vrot.lane.b32.xlu0 %v3071, 64
        %v3212 = vpop.permute.xlu0 %3211
        %3213 = vrot.lane.b32.xlu0 %v3072, 64
        %v3214 = vpop.permute.xlu0 %3213
        %3215 = vrot.lane.b32.xlu0 %v3073, 64
        %v3216 = vpop.permute.xlu0 %3215
        %3217 = vrot.lane.b32.xlu0 %v3074, 64
        %v3218 = vpop.permute.xlu0 %3217
        %3235 = vrot.lane.b32.xlu0 %v3107, 96
        %v3236 = vpop.permute.xlu0 %3235
        %3237 = vrot.lane.b32.xlu0 %v3108, 96
        %v3238 = vpop.permute.xlu0 %3237
        %3239 = vrot.lane.b32.xlu0 %v3109, 96
        %v3240 = vpop.permute.xlu0 %3239
        %3241 = vrot.lane.b32.xlu0 %v3110, 96
        %v3242 = vpop.permute.xlu0 %3241
        %3243 = vrot.lane.b32.xlu0 %v3111, 96
        %v3244 = vpop.permute.xlu0 %3243
        %3245 = vrot.lane.b32.xlu0 %v3112, 96
        %v3246 = vpop.permute.xlu0 %3245
        %3247 = vrot.lane.b32.xlu0 %v3113, 96
        %v3248 = vpop.permute.xlu0 %3247
        %3249 = vrot.lane.b32.xlu0 %v3114, 96
        %v3250 = vpop.permute.xlu0 %3249
        %3251 = vrot.lane.b32.xlu0 %v3115, 96
        %v3252 = vpop.permute.xlu0 %3251
        %3253 = vrot.lane.b32.xlu0 %v3116, 96
        %v3254 = vpop.permute.xlu0 %3253
        %3255 = vrot.lane.b32.xlu0 %v3117, 96
        %v3256 = vpop.permute.xlu0 %3255
        %3257 = vrot.lane.b32.xlu0 %v3118, 96
        %v3258 = vpop.permute.xlu0 %3257
        %3259 = vrot.lane.b32.xlu0 %v3119, 96
        %v3260 = vpop.permute.xlu0 %3259
        %3261 = vrot.lane.b32.xlu0 %v3120, 96
        %v3262 = vpop.permute.xlu0 %3261
        %3263 = vrot.lane.b32.xlu0 %v3121, 96
        %v3264 = vpop.permute.xlu0 %3263
        %3265 = vrot.lane.b32.xlu0 %v3122, 96
        %v3266 = vpop.permute.xlu0 %3265
        %v3269 = vsel %vm1642, %v2963, %v3140
        %v3272 = vsel %vm1642, %v2964, %v3142
        %v3275 = vsel %vm1642, %v2965, %v3144
        %v3278 = vsel %vm1642, %v2966, %v3146
        %v3281 = vsel %vm1642, %v2967, %v3148
        %v3284 = vsel %vm1642, %v2968, %v3150
        %v3287 = vsel %vm1642, %v2969, %v3152
        %v3290 = vsel %vm1642, %v2970, %v3154
        %v3293 = vsel %vm1642, %v2971, %v3156
        %v3296 = vsel %vm1642, %v2972, %v3158
        %v3299 = vsel %vm1642, %v2973, %v3160
        %v3302 = vsel %vm1642, %v2974, %v3162
        %v3305 = vsel %vm1642, %v2975, %v3164
        %v3308 = vsel %vm1642, %v2976, %v3166
        %v3311 = vsel %vm1642, %v2977, %v3168
        %v3314 = vsel %vm1642, %v2978, %v3170
        %v3316 = vsel %vm2721, %v3269, %v3188
        %v3318 = vsel %vm2721, %v3272, %v3190
        %v3320 = vsel %vm2721, %v3275, %v3192
        %v3322 = vsel %vm2721, %v3278, %v3194
        %v3324 = vsel %vm2721, %v3281, %v3196
        %v3326 = vsel %vm2721, %v3284, %v3198
        %v3328 = vsel %vm2721, %v3287, %v3200
        %v3330 = vsel %vm2721, %v3290, %v3202
        %v3332 = vsel %vm2721, %v3293, %v3204
        %v3334 = vsel %vm2721, %v3296, %v3206
        %v3336 = vsel %vm2721, %v3299, %v3208
        %v3338 = vsel %vm2721, %v3302, %v3210
        %v3340 = vsel %vm2721, %v3305, %v3212
        %v3342 = vsel %vm2721, %v3308, %v3214
        %v3344 = vsel %vm2721, %v3311, %v3216
        %v3346 = vsel %vm2721, %v3314, %v3218
        %v3348 = vsel %vm2754, %v3316, %v3236
        %v3350 = vsel %vm2754, %v3318, %v3238
        %v3352 = vsel %vm2754, %v3320, %v3240
        %v3354 = vsel %vm2754, %v3322, %v3242
        %v3356 = vsel %vm2754, %v3324, %v3244
        %v3358 = vsel %vm2754, %v3326, %v3246
        %v3360 = vsel %vm2754, %v3328, %v3248
        %v3362 = vsel %vm2754, %v3330, %v3250
        %v3364 = vsel %vm2754, %v3332, %v3252
        %v3366 = vsel %vm2754, %v3334, %v3254
        %v3368 = vsel %vm2754, %v3336, %v3256
        %v3370 = vsel %vm2754, %v3338, %v3258
        %v3372 = vsel %vm2754, %v3340, %v3260
        %v3374 = vsel %vm2754, %v3342, %v3262
        %v3376 = vsel %vm2754, %v3344, %v3264
        %v3378 = vsel %vm2754, %v3346, %v3266
        %v3395 = vunpack.c.l.b16 %v3348
        %v3396 = vunpack.c.h.b16 %v3348
        %v3397 = vunpack.c.l.b16 %v3350
        %v3398 = vunpack.c.h.b16 %v3350
        %v3399 = vunpack.c.l.b16 %v3352
        %v3400 = vunpack.c.h.b16 %v3352
        %v3401 = vunpack.c.l.b16 %v3354
        %v3402 = vunpack.c.h.b16 %v3354
        %v3403 = vunpack.c.l.b16 %v3356
        %v3404 = vunpack.c.h.b16 %v3356
        %v3405 = vunpack.c.l.b16 %v3358
        %v3406 = vunpack.c.h.b16 %v3358
        %v3407 = vunpack.c.l.b16 %v3360
        %v3408 = vunpack.c.h.b16 %v3360
        %v3409 = vunpack.c.l.b16 %v3362
        %v3410 = vunpack.c.h.b16 %v3362
        %v3411 = vunpack.c.l.b16 %v3364
        %v3412 = vunpack.c.h.b16 %v3364
        %v3413 = vunpack.c.l.b16 %v3366
        %v3414 = vunpack.c.h.b16 %v3366
        %v3415 = vunpack.c.l.b16 %v3368
        %v3416 = vunpack.c.h.b16 %v3368
        %v3417 = vunpack.c.l.b16 %v3370
        %v3418 = vunpack.c.h.b16 %v3370
        %v3419 = vunpack.c.l.b16 %v3372
        %v3420 = vunpack.c.h.b16 %v3372
        %v3421 = vunpack.c.l.b16 %v3374
        %v3422 = vunpack.c.h.b16 %v3374
        %v3423 = vunpack.c.l.b16 %v3376
        %v3424 = vunpack.c.h.b16 %v3376
        %v3425 = vunpack.c.l.b16 %v3378
        %v3426 = vunpack.c.h.b16 %v3378
        %v3427 = vpack.c.b16 %v3395, %v3395
        %v3428 = vpack.c.b16 %v3396, %v3396
        %v3429 = vpack.c.b16 %v3397, %v3397
        %v3430 = vpack.c.b16 %v3398, %v3398
        %v3431 = vpack.c.b16 %v3399, %v3399
        %v3432 = vpack.c.b16 %v3400, %v3400
        %v3433 = vpack.c.b16 %v3401, %v3401
        %v3434 = vpack.c.b16 %v3402, %v3402
        %v3435 = vpack.c.b16 %v3403, %v3403
        %v3436 = vpack.c.b16 %v3404, %v3404
        %v3437 = vpack.c.b16 %v3405, %v3405
        %v3438 = vpack.c.b16 %v3406, %v3406
        %v3439 = vpack.c.b16 %v3407, %v3407
        %v3440 = vpack.c.b16 %v3408, %v3408
        %v3441 = vpack.c.b16 %v3409, %v3409
        %v3442 = vpack.c.b16 %v3410, %v3410
        %v3443 = vpack.c.b16 %v3411, %v3411
        %v3444 = vpack.c.b16 %v3412, %v3412
        %v3445 = vpack.c.b16 %v3413, %v3413
        %v3446 = vpack.c.b16 %v3414, %v3414
        %v3447 = vpack.c.b16 %v3415, %v3415
        %v3448 = vpack.c.b16 %v3416, %v3416
        %v3449 = vpack.c.b16 %v3417, %v3417
        %v3450 = vpack.c.b16 %v3418, %v3418
        %v3451 = vpack.c.b16 %v3419, %v3419
        %v3452 = vpack.c.b16 %v3420, %v3420
        %v3453 = vpack.c.b16 %v3421, %v3421
        %v3454 = vpack.c.b16 %v3422, %v3422
        %v3455 = vpack.c.b16 %v3423, %v3423
        %v3456 = vpack.c.b16 %v3424, %v3424
        %v3457 = vpack.c.b16 %v3425, %v3425
        %v3458 = vpack.c.b16 %v3426, %v3426
        %3491 = vst [vmem:[#allocation3 + $0x4] sm:$0xf] %v3427
        %3492 = vst [vmem:[#allocation3 + $0xc] sm:$0xf] %v3428
        %3493 = vst [vmem:[#allocation3 + $0x14] sm:$0xf] %v3429
        %3494 = vst [vmem:[#allocation3 + $0x1c] sm:$0xf] %v3430
        %3495 = vst [vmem:[#allocation3 + $0x24] sm:$0xf] %v3431
        %3496 = vst [vmem:[#allocation3 + $0x2c] sm:$0xf] %v3432
        %3497 = vst [vmem:[#allocation3 + $0x34] sm:$0xf] %v3433
        %3498 = vst [vmem:[#allocation3 + $0x3c] sm:$0xf] %v3434
        %3499 = vst [vmem:[#allocation3 + $0x44] sm:$0xf] %v3435
        %3500 = vst [vmem:[#allocation3 + $0x4c] sm:$0xf] %v3436
        %3501 = vst [vmem:[#allocation3 + $0x54] sm:$0xf] %v3437
        %3502 = vst [vmem:[#allocation3 + $0x5c] sm:$0xf] %v3438
        %3503 = vst [vmem:[#allocation3 + $0x64] sm:$0xf] %v3439
        %3504 = vst [vmem:[#allocation3 + $0x6c] sm:$0xf] %v3440
        %3505 = vst [vmem:[#allocation3 + $0x74] sm:$0xf] %v3441
        %3506 = vst [vmem:[#allocation3 + $0x7c] sm:$0xf] %v3442
        %3507 = vst [vmem:[#allocation3 + $0x84] sm:$0xf] %v3443
        %3508 = vst [vmem:[#allocation3 + $0x8c] sm:$0xf] %v3444
        %3509 = vst [vmem:[#allocation3 + $0x94] sm:$0xf] %v3445
        %3510 = vst [vmem:[#allocation3 + $0x9c] sm:$0xf] %v3446
        %3511 = vst [vmem:[#allocation3 + $0xa4] sm:$0xf] %v3447
        %3512 = vst [vmem:[#allocation3 + $0xac] sm:$0xf] %v3448
        %3513 = vst [vmem:[#allocation3 + $0xb4] sm:$0xf] %v3449
        %3514 = vst [vmem:[#allocation3 + $0xbc] sm:$0xf] %v3450
        %3515 = vst [vmem:[#allocation3 + $0xc4] sm:$0xf] %v3451
        %3516 = vst [vmem:[#allocation3 + $0xcc] sm:$0xf] %v3452
        %3517 = vst [vmem:[#allocation3 + $0xd4] sm:$0xf] %v3453
        %3518 = vst [vmem:[#allocation3 + $0xdc] sm:$0xf] %v3454
        %3519 = vst [vmem:[#allocation3 + $0xe4] sm:$0xf] %v3455
        %3520 = vst [vmem:[#allocation3 + $0xec] sm:$0xf] %v3456
        %3521 = vst [vmem:[#allocation3 + $0xf4] sm:$0xf] %v3457
        %3522 = vst [vmem:[#allocation3 + $0xfc] sm:$0xf] %v3458
        %v3523 = vld [vmem:[#allocation3] sm:$0xff]
        %v3524 = vld [vmem:[#allocation3 + $0x8] sm:$0xff]
        %v3525 = vld [vmem:[#allocation3 + $0x10] sm:$0xff]
        %v3526 = vld [vmem:[#allocation3 + $0x18] sm:$0xff]
        %v3527 = vld [vmem:[#allocation3 + $0x20] sm:$0xff]
        %v3528 = vld [vmem:[#allocation3 + $0x28] sm:$0xff]
        %v3529 = vld [vmem:[#allocation3 + $0x30] sm:$0xff]
        %v3530 = vld [vmem:[#allocation3 + $0x38] sm:$0xff]
        %v3531 = vld [vmem:[#allocation3 + $0x40] sm:$0xff]
        %v3532 = vld [vmem:[#allocation3 + $0x48] sm:$0xff]
        %v3533 = vld [vmem:[#allocation3 + $0x50] sm:$0xff]
        %v3534 = vld [vmem:[#allocation3 + $0x58] sm:$0xff]
        %v3535 = vld [vmem:[#allocation3 + $0x60] sm:$0xff]
        %v3536 = vld [vmem:[#allocation3 + $0x68] sm:$0xff]
        %v3537 = vld [vmem:[#allocation3 + $0x70] sm:$0xff]
        %v3538 = vld [vmem:[#allocation3 + $0x78] sm:$0xff]
        %v3539 = vld [vmem:[#allocation3 + $0x80] sm:$0xff]
        %v3540 = vld [vmem:[#allocation3 + $0x88] sm:$0xff]
        %v3541 = vld [vmem:[#allocation3 + $0x90] sm:$0xff]
        %v3542 = vld [vmem:[#allocation3 + $0x98] sm:$0xff]
        %v3543 = vld [vmem:[#allocation3 + $0xa0] sm:$0xff]
        %v3544 = vld [vmem:[#allocation3 + $0xa8] sm:$0xff]
        %v3545 = vld [vmem:[#allocation3 + $0xb0] sm:$0xff]
        %v3546 = vld [vmem:[#allocation3 + $0xb8] sm:$0xff]
        %v3547 = vld [vmem:[#allocation3 + $0xc0] sm:$0xff]
        %v3548 = vld [vmem:[#allocation3 + $0xc8] sm:$0xff]
        %v3549 = vld [vmem:[#allocation3 + $0xd0] sm:$0xff]
        %v3550 = vld [vmem:[#allocation3 + $0xd8] sm:$0xff]
        %v3551 = vld [vmem:[#allocation3 + $0xe0] sm:$0xff]
        %v3552 = vld [vmem:[#allocation3 + $0xe8] sm:$0xff]
        %v3553 = vld [vmem:[#allocation3 + $0xf0] sm:$0xff]
        %v3554 = vld [vmem:[#allocation3 + $0xf8] sm:$0xff]
        %v3555 = vld [vmem:[%s3] sm:$0xf]
        %v3556 = vld [vmem:[%s3 + $0x4] sm:$0xf]
        %v3557 = vld [vmem:[%s3 + $0x8] sm:$0xf]
        %v3558 = vld [vmem:[%s3 + $0xc] sm:$0xf]
        %v3559 = vld [vmem:[%s3 + $0x10] sm:$0xf]
        %v3560 = vld [vmem:[%s3 + $0x14] sm:$0xf]
        %v3561 = vld [vmem:[%s3 + $0x18] sm:$0xf]
        %v3562 = vld [vmem:[%s3 + $0x1c] sm:$0xf]
        %v3563 = vld [vmem:[%s3 + $0x20] sm:$0xf]
        %v3564 = vld [vmem:[%s3 + $0x24] sm:$0xf]
        %v3565 = vld [vmem:[%s3 + $0x28] sm:$0xf]
        %v3566 = vld [vmem:[%s3 + $0x2c] sm:$0xf]
        %v3567 = vld [vmem:[%s3 + $0x30] sm:$0xf]
        %v3568 = vld [vmem:[%s3 + $0x34] sm:$0xf]
        %v3569 = vld [vmem:[%s3 + $0x38] sm:$0xf]
        %v3570 = vld [vmem:[%s3 + $0x3c] sm:$0xf]
        %v3571 = vld [vmem:[%s3 + $0x40] sm:$0xf]
        %v3572 = vld [vmem:[%s3 + $0x44] sm:$0xf]
        %v3573 = vld [vmem:[%s3 + $0x48] sm:$0xf]
        %v3574 = vld [vmem:[%s3 + $0x4c] sm:$0xf]
        %v3575 = vld [vmem:[%s3 + $0x50] sm:$0xf]
        %v3576 = vld [vmem:[%s3 + $0x54] sm:$0xf]
        %v3577 = vld [vmem:[%s3 + $0x58] sm:$0xf]
        %v3578 = vld [vmem:[%s3 + $0x5c] sm:$0xf]
        %v3579 = vld [vmem:[%s3 + $0x60] sm:$0xf]
        %v3580 = vld [vmem:[%s3 + $0x64] sm:$0xf]
        %v3581 = vld [vmem:[%s3 + $0x68] sm:$0xf]
        %v3582 = vld [vmem:[%s3 + $0x6c] sm:$0xf]
        %v3583 = vld [vmem:[%s3 + $0x70] sm:$0xf]
        %v3584 = vld [vmem:[%s3 + $0x74] sm:$0xf]
        %v3585 = vld [vmem:[%s3 + $0x78] sm:$0xf]
        %v3586 = vld [vmem:[%s3 + $0x7c] sm:$0xf]
        %v3587 = vld [vmem:[%s4] sm:$0x1]
        %v3589 = vlaneseq
        %v3590 = vshrl.u32 %v3589, 7
        %v3591 = vsub.s32 0, %v3590
        %v3592 = vrot.slane %v3587, %v3591
        %v3626 = vunpack.c.l.b16 %v3523
        %v3627 = vunpack.c.h.b16 %v3523
        %v3628 = vunpack.c.l.b16 %v3524
        %v3629 = vunpack.c.h.b16 %v3524
        %v3630 = vunpack.c.l.b16 %v3525
        %v3631 = vunpack.c.h.b16 %v3525
        %v3632 = vunpack.c.l.b16 %v3526
        %v3633 = vunpack.c.h.b16 %v3526
        %v3634 = vunpack.c.l.b16 %v3527
        %v3635 = vunpack.c.h.b16 %v3527
        %v3636 = vunpack.c.l.b16 %v3528
        %v3637 = vunpack.c.h.b16 %v3528
        %v3638 = vunpack.c.l.b16 %v3529
        %v3639 = vunpack.c.h.b16 %v3529
        %v3640 = vunpack.c.l.b16 %v3530
        %v3641 = vunpack.c.h.b16 %v3530
        %v3642 = vunpack.c.l.b16 %v3531
        %v3643 = vunpack.c.h.b16 %v3531
        %v3644 = vunpack.c.l.b16 %v3532
        %v3645 = vunpack.c.h.b16 %v3532
        %v3646 = vunpack.c.l.b16 %v3533
        %v3647 = vunpack.c.h.b16 %v3533
        %v3648 = vunpack.c.l.b16 %v3534
        %v3649 = vunpack.c.h.b16 %v3534
        %v3650 = vunpack.c.l.b16 %v3535
        %v3651 = vunpack.c.h.b16 %v3535
        %v3652 = vunpack.c.l.b16 %v3536
        %v3653 = vunpack.c.h.b16 %v3536
        %v3654 = vunpack.c.l.b16 %v3537
        %v3655 = vunpack.c.h.b16 %v3537
        %v3656 = vunpack.c.l.b16 %v3538
        %v3657 = vunpack.c.h.b16 %v3538
        %v3658 = vunpack.c.l.b16 %v3539
        %v3659 = vunpack.c.h.b16 %v3539
        %v3660 = vunpack.c.l.b16 %v3540
        %v3661 = vunpack.c.h.b16 %v3540
        %v3662 = vunpack.c.l.b16 %v3541
        %v3663 = vunpack.c.h.b16 %v3541
        %v3664 = vunpack.c.l.b16 %v3542
        %v3665 = vunpack.c.h.b16 %v3542
        %v3666 = vunpack.c.l.b16 %v3543
        %v3667 = vunpack.c.h.b16 %v3543
        %v3668 = vunpack.c.l.b16 %v3544
        %v3669 = vunpack.c.h.b16 %v3544
        %v3670 = vunpack.c.l.b16 %v3545
        %v3671 = vunpack.c.h.b16 %v3545
        %v3672 = vunpack.c.l.b16 %v3546
        %v3673 = vunpack.c.h.b16 %v3546
        %v3674 = vunpack.c.l.b16 %v3547
        %v3675 = vunpack.c.h.b16 %v3547
        %v3676 = vunpack.c.l.b16 %v3548
        %v3677 = vunpack.c.h.b16 %v3548
        %v3678 = vunpack.c.l.b16 %v3549
        %v3679 = vunpack.c.h.b16 %v3549
        %v3680 = vunpack.c.l.b16 %v3550
        %v3681 = vunpack.c.h.b16 %v3550
        %v3682 = vunpack.c.l.b16 %v3551
        %v3683 = vunpack.c.h.b16 %v3551
        %v3684 = vunpack.c.l.b16 %v3552
        %v3685 = vunpack.c.h.b16 %v3552
        %v3686 = vunpack.c.l.b16 %v3553
        %v3687 = vunpack.c.h.b16 %v3553
        %v3688 = vunpack.c.l.b16 %v3554
        %v3689 = vunpack.c.h.b16 %v3554
        %v3690 = vpack.c.b16 %v3628, %v3626
        %v3691 = vpack.c.b16 %v3629, %v3627
        %v3692 = vpack.c.b16 %v3632, %v3630
        %v3693 = vpack.c.b16 %v3633, %v3631
        %v3694 = vpack.c.b16 %v3636, %v3634
        %v3695 = vpack.c.b16 %v3637, %v3635
        %v3696 = vpack.c.b16 %v3640, %v3638
        %v3697 = vpack.c.b16 %v3641, %v3639
        %v3698 = vpack.c.b16 %v3644, %v3642
        %v3699 = vpack.c.b16 %v3645, %v3643
        %v3700 = vpack.c.b16 %v3648, %v3646
        %v3701 = vpack.c.b16 %v3649, %v3647
        %v3702 = vpack.c.b16 %v3652, %v3650
        %v3703 = vpack.c.b16 %v3653, %v3651
        %v3704 = vpack.c.b16 %v3656, %v3654
        %v3705 = vpack.c.b16 %v3657, %v3655
        %v3706 = vpack.c.b16 %v3660, %v3658
        %v3707 = vpack.c.b16 %v3661, %v3659
        %v3708 = vpack.c.b16 %v3664, %v3662
        %v3709 = vpack.c.b16 %v3665, %v3663
        %v3710 = vpack.c.b16 %v3668, %v3666
        %v3711 = vpack.c.b16 %v3669, %v3667
        %v3712 = vpack.c.b16 %v3672, %v3670
        %v3713 = vpack.c.b16 %v3673, %v3671
        %v3714 = vpack.c.b16 %v3676, %v3674
        %v3715 = vpack.c.b16 %v3677, %v3675
        %v3716 = vpack.c.b16 %v3680, %v3678
        %v3717 = vpack.c.b16 %v3681, %v3679
        %v3718 = vpack.c.b16 %v3684, %v3682
        %v3719 = vpack.c.b16 %v3685, %v3683
        %v3720 = vpack.c.b16 %v3688, %v3686
        %v3721 = vpack.c.b16 %v3689, %v3687
        %v3786 = vunpack.c.l.b16 %v3555
        %v3787 = vunpack.c.l.b16 %v3556
        %v3788 = vunpack.c.l.b16 %v3557
        %v3789 = vunpack.c.l.b16 %v3558
        %v3790 = vunpack.c.l.b16 %v3559
        %v3791 = vunpack.c.l.b16 %v3560
        %v3792 = vunpack.c.l.b16 %v3561
        %v3793 = vunpack.c.l.b16 %v3562
        %v3794 = vunpack.c.l.b16 %v3563
        %v3795 = vunpack.c.l.b16 %v3564
        %v3796 = vunpack.c.l.b16 %v3565
        %v3797 = vunpack.c.l.b16 %v3566
        %v3798 = vunpack.c.l.b16 %v3567
        %v3799 = vunpack.c.l.b16 %v3568
        %v3800 = vunpack.c.l.b16 %v3569
        %v3801 = vunpack.c.l.b16 %v3570
        %v3802 = vunpack.c.l.b16 %v3571
        %v3803 = vunpack.c.l.b16 %v3572
        %v3804 = vunpack.c.l.b16 %v3573
        %v3805 = vunpack.c.l.b16 %v3574
        %v3806 = vunpack.c.l.b16 %v3575
        %v3807 = vunpack.c.l.b16 %v3576
        %v3808 = vunpack.c.l.b16 %v3577
        %v3809 = vunpack.c.l.b16 %v3578
        %v3810 = vunpack.c.l.b16 %v3579
        %v3811 = vunpack.c.l.b16 %v3580
        %v3812 = vunpack.c.l.b16 %v3581
        %v3813 = vunpack.c.l.b16 %v3582
        %v3814 = vunpack.c.l.b16 %v3583
        %v3815 = vunpack.c.l.b16 %v3584
        %v3816 = vunpack.c.l.b16 %v3585
        %v3817 = vunpack.c.l.b16 %v3586
        %v3818 = vpack.c.b16 %v3787, %v3786
        %v3819 = vpack.c.b16 %v3789, %v3788
        %v3820 = vpack.c.b16 %v3791, %v3790
        %v3821 = vpack.c.b16 %v3793, %v3792
        %v3822 = vpack.c.b16 %v3795, %v3794
        %v3823 = vpack.c.b16 %v3797, %v3796
        %v3824 = vpack.c.b16 %v3799, %v3798
        %v3825 = vpack.c.b16 %v3801, %v3800
        %v3826 = vpack.c.b16 %v3803, %v3802
        %v3827 = vpack.c.b16 %v3805, %v3804
        %v3828 = vpack.c.b16 %v3807, %v3806
        %v3829 = vpack.c.b16 %v3809, %v3808
        %v3830 = vpack.c.b16 %v3811, %v3810
        %v3831 = vpack.c.b16 %v3813, %v3812
        %v3832 = vpack.c.b16 %v3815, %v3814
        %v3833 = vpack.c.b16 %v3817, %v3816
        %3850 = vmatprep.subr.bf16.mxu0 0
        %3851 = vmatpush1.bf16.msra.mxu0 %v3825
        %3852 = vmatprep.subr.bf16.mxu0 0
        %3853 = vmatpush1.bf16.msra.mxu0 %v3824
        %3854 = vmatprep.subr.bf16.mxu0 0
        %3855 = vmatpush1.bf16.msra.mxu0 %v3823
        %3856 = vmatprep.subr.bf16.mxu0 0
        %3857 = vmatpush1.bf16.msra.mxu0 %v3822
        %3858 = vmatprep.subr.bf16.mxu0 0
        %3859 = vmatpush1.bf16.msra.mxu0 %v3821
        %3860 = vmatprep.subr.bf16.mxu0 0
        %3861 = vmatpush1.bf16.msra.mxu0 %v3820
        %3862 = vmatprep.subr.bf16.mxu0 0
        %3863 = vmatpush1.bf16.msra.mxu0 %v3819
        %3864 = vmatprep.subr.bf16.mxu0 0
        %3865 = vmatpush1.bf16.msra.mxu0 %v3818
        %3866 = vmatprep.subr.bf16.mxu0 0
        %3867 = vmatpush2.bf16.msra.mxu0 %v3833
        %3868 = vmatprep.subr.bf16.mxu0 0
        %3869 = vmatpush2.bf16.msra.mxu0 %v3832
        %3870 = vmatprep.subr.bf16.mxu0 0
        %3871 = vmatpush2.bf16.msra.mxu0 %v3831
        %3872 = vmatprep.subr.bf16.mxu0 0
        %3873 = vmatpush2.bf16.msra.mxu0 %v3830
        %3874 = vmatprep.subr.bf16.mxu0 0
        %3875 = vmatpush2.bf16.msra.mxu0 %v3829
        %3876 = vmatprep.subr.bf16.mxu0 0
        %3877 = vmatpush2.bf16.msra.mxu0 %v3828
        %3878 = vmatprep.subr.bf16.mxu0 0
        %3879 = vmatpush2.bf16.msra.mxu0 %v3827
        %3880 = vmatprep.subr.bf16.mxu0 0
        %3881 = vmatpush2.bf16.msra.mxu0 %v3826
        %3882 = vmatprep.mubr.bf16.mxu0 %v3691
        %3883 = vmatmul.mubr.bf16.gmra.mxu0 %v3690
        %v3884 = vpop.f32.mrf.mxu0
        %v3885 = vadd.f32 %v3592, %v3884
        %v3886 = vpop.f32.mrf.mxu0
        %v3887 = vpop.f32.mrf.mxu0
        %v3888 = vadd.f32 %v3592, %v3887
        %v3889 = vpop.f32.mrf.mxu0
        %3890 = vmatprep.mubr.bf16.mxu0 %v3693
        %3891 = vmatmul.mubr.bf16.gmra.mxu0 %v3692
        %v3892 = vpop.f32.mrf.mxu0
        %v3893 = vadd.f32 %v3592, %v3892
        %v3894 = vpop.f32.mrf.mxu0
        %v3895 = vpop.f32.mrf.mxu0
        %v3896 = vadd.f32 %v3592, %v3895
        %v3897 = vpop.f32.mrf.mxu0
        %3898 = vmatprep.mubr.bf16.mxu0 %v3695
        %3899 = vmatmul.mubr.bf16.gmra.mxu0 %v3694
        %v3900 = vpop.f32.mrf.mxu0
        %v3901 = vadd.f32 %v3592, %v3900
        %v3902 = vpop.f32.mrf.mxu0
        %v3903 = vpop.f32.mrf.mxu0
        %v3904 = vadd.f32 %v3592, %v3903
        %v3905 = vpop.f32.mrf.mxu0
        %3906 = vmatprep.mubr.bf16.mxu0 %v3697
        %3907 = vmatmul.mubr.bf16.gmra.mxu0 %v3696
        %v3908 = vpop.f32.mrf.mxu0
        %v3909 = vadd.f32 %v3592, %v3908
        %v3910 = vpop.f32.mrf.mxu0
        %v3911 = vpop.f32.mrf.mxu0
        %v3912 = vadd.f32 %v3592, %v3911
        %v3913 = vpop.f32.mrf.mxu0
        %3914 = vmatprep.mubr.bf16.mxu0 %v3699
        %3915 = vmatmul.mubr.bf16.gmra.mxu0 %v3698
        %v3916 = vpop.f32.mrf.mxu0
        %v3917 = vadd.f32 %v3592, %v3916
        %v3918 = vpop.f32.mrf.mxu0
        %v3919 = vpop.f32.mrf.mxu0
        %v3920 = vadd.f32 %v3592, %v3919
        %v3921 = vpop.f32.mrf.mxu0
        %3922 = vmatprep.mubr.bf16.mxu0 %v3701
        %3923 = vmatmul.mubr.bf16.gmra.mxu0 %v3700
        %v3924 = vpop.f32.mrf.mxu0
        %v3925 = vadd.f32 %v3592, %v3924
        %v3926 = vpop.f32.mrf.mxu0
        %v3927 = vpop.f32.mrf.mxu0
        %v3928 = vadd.f32 %v3592, %v3927
        %v3929 = vpop.f32.mrf.mxu0
        %3930 = vmatprep.mubr.bf16.mxu0 %v3703
        %3931 = vmatmul.mubr.bf16.gmra.mxu0 %v3702
        %v3932 = vpop.f32.mrf.mxu0
        %v3933 = vadd.f32 %v3592, %v3932
        %v3934 = vpop.f32.mrf.mxu0
        %v3935 = vpop.f32.mrf.mxu0
        %v3936 = vadd.f32 %v3592, %v3935
        %v3937 = vpop.f32.mrf.mxu0
        %3938 = vmatprep.mubr.bf16.mxu0 %v3705
        %3939 = vmatmul.mubr.bf16.gmra.mxu0 %v3704
        %v3940 = vpop.f32.mrf.mxu0
        %v3941 = vadd.f32 %v3592, %v3940
        %v3942 = vpop.f32.mrf.mxu0
        %v3943 = vpop.f32.mrf.mxu0
        %v3944 = vadd.f32 %v3592, %v3943
        %v3945 = vpop.f32.mrf.mxu0
        %3946 = vmatprep.mubr.bf16.mxu0 %v3707
        %3947 = vmatmul.mubr.bf16.gmra.mxu0 %v3706
        %v3948 = vpop.f32.mrf.mxu0
        %v3949 = vadd.f32 %v3592, %v3948
        %v3950 = vpop.f32.mrf.mxu0
        %v3951 = vpop.f32.mrf.mxu0
        %v3952 = vadd.f32 %v3592, %v3951
        %v3953 = vpop.f32.mrf.mxu0
        %3954 = vmatprep.mubr.bf16.mxu0 %v3709
        %3955 = vmatmul.mubr.bf16.gmra.mxu0 %v3708
        %v3956 = vpop.f32.mrf.mxu0
        %v3957 = vadd.f32 %v3592, %v3956
        %v3958 = vpop.f32.mrf.mxu0
        %v3959 = vpop.f32.mrf.mxu0
        %v3960 = vadd.f32 %v3592, %v3959
        %v3961 = vpop.f32.mrf.mxu0
        %3962 = vmatprep.mubr.bf16.mxu0 %v3711
        %3963 = vmatmul.mubr.bf16.gmra.mxu0 %v3710
        %v3964 = vpop.f32.mrf.mxu0
        %v3965 = vadd.f32 %v3592, %v3964
        %v3966 = vpop.f32.mrf.mxu0
        %v3967 = vpop.f32.mrf.mxu0
        %v3968 = vadd.f32 %v3592, %v3967
        %v3969 = vpop.f32.mrf.mxu0
        %3970 = vmatprep.mubr.bf16.mxu0 %v3713
        %3971 = vmatmul.mubr.bf16.gmra.mxu0 %v3712
        %v3972 = vpop.f32.mrf.mxu0
        %v3973 = vadd.f32 %v3592, %v3972
        %v3974 = vpop.f32.mrf.mxu0
        %v3975 = vpop.f32.mrf.mxu0
        %v3976 = vadd.f32 %v3592, %v3975
        %v3977 = vpop.f32.mrf.mxu0
        %3978 = vmatprep.mubr.bf16.mxu0 %v3715
        %3979 = vmatmul.mubr.bf16.gmra.mxu0 %v3714
        %v3980 = vpop.f32.mrf.mxu0
        %v3981 = vadd.f32 %v3592, %v3980
        %v3982 = vpop.f32.mrf.mxu0
        %v3983 = vpop.f32.mrf.mxu0
        %v3984 = vadd.f32 %v3592, %v3983
        %v3985 = vpop.f32.mrf.mxu0
        %3986 = vmatprep.mubr.bf16.mxu0 %v3717
        %3987 = vmatmul.mubr.bf16.gmra.mxu0 %v3716
        %v3988 = vpop.f32.mrf.mxu0
        %v3989 = vadd.f32 %v3592, %v3988
        %v3990 = vpop.f32.mrf.mxu0
        %v3991 = vpop.f32.mrf.mxu0
        %v3992 = vadd.f32 %v3592, %v3991
        %v3993 = vpop.f32.mrf.mxu0
        %3994 = vmatprep.mubr.bf16.mxu0 %v3719
        %3995 = vmatmul.mubr.bf16.gmra.mxu0 %v3718
        %v3996 = vpop.f32.mrf.mxu0
        %v3997 = vadd.f32 %v3592, %v3996
        %v3998 = vpop.f32.mrf.mxu0
        %v3999 = vpop.f32.mrf.mxu0
        %v4000 = vadd.f32 %v3592, %v3999
        %v4001 = vpop.f32.mrf.mxu0
        %4002 = vmatprep.mubr.bf16.mxu0 %v3721
        %4003 = vmatmul.mubr.bf16.gmra.mxu0 %v3720
        %v4004 = vpop.f32.mrf.mxu0
        %v4005 = vadd.f32 %v3592, %v4004
        %v4006 = vpop.f32.mrf.mxu0
        %v4007 = vpop.f32.mrf.mxu0
        %v4008 = vadd.f32 %v3592, %v4007
        %v4009 = vpop.f32.mrf.mxu0
        %4010 = vdwg.mxu0
        %p4011 = scmp.lt.s32.totalorder %s252, 0
        %s4012 = sadd.s32 %s252, 256
        %p4013 = scmp.gt.s32.totalorder %s4012, 64
        %p4014 = por %p4011, %p4013
        // Predicated region
        $region49: #{tpu_custom_call.1} parent=39 // pred_check
          %p4015 = pneg %p4014
        $region50: #{tpu_custom_call.1} parent=39 // pred_check_branch
          %4017 = sbr.rel (%p4015) target = $region52
        $region51: #{tpu_custom_call.1} parent=39 // pred_region
          %v4018 = vlaneseq
          %v4019 = vshrl.u32 %v4018, 7
          %v4020 = vadd.s32 %v4019, 8
          %v4021 = vadd.s32 %v4019, 16
          %v4022 = vadd.s32 %v4019, 24
          %v4023 = vadd.s32 %v4019, 32
          %v4024 = vadd.s32 %v4019, 40
          %v4025 = vadd.s32 %v4019, 48
          %v4026 = vadd.s32 %v4019, 56
          %v4027 = vadd.s32 %v4019, 64
          %v4028 = vadd.s32 %v4019, 72
          %v4029 = vadd.s32 %v4019, 80
          %v4030 = vadd.s32 %v4019, 88
          %v4031 = vadd.s32 %v4019, 96
          %v4032 = vadd.s32 %v4019, 104
          %v4033 = vadd.s32 %v4019, 112
          %v4034 = vadd.s32 %v4019, 120
          %v4035 = vadd.s32 %v4019, 128
          %v4036 = vadd.s32 %v4019, 136
          %v4037 = vadd.s32 %v4019, 144
          %v4038 = vadd.s32 %v4019, 152
          %v4039 = vadd.s32 %v4019, 160
          %v4040 = vadd.s32 %v4019, 168
          %v4041 = vadd.s32 %v4019, 176
          %v4042 = vadd.s32 %v4019, 184
          %v4043 = vadd.s32 %v4019, 192
          %v4044 = vadd.s32 %v4019, 200
          %v4045 = vadd.s32 %v4019, 208
          %v4046 = vadd.s32 %v4019, 216
          %v4047 = vadd.s32 %v4019, 224
          %v4048 = vadd.s32 %v4019, 232
          %v4049 = vadd.s32 %v4019, 240
          %v4050 = vadd.s32 %v4019, 248
          %v4051 = vstv %s252
          %v4052 = vadd.s32 %v4051, %v4019
          %v4053 = vadd.s32 %v4051, %v4020
          %v4054 = vadd.s32 %v4051, %v4021
          %v4055 = vadd.s32 %v4051, %v4022
          %v4056 = vadd.s32 %v4051, %v4023
          %v4057 = vadd.s32 %v4051, %v4024
          %v4058 = vadd.s32 %v4051, %v4025
          %v4059 = vadd.s32 %v4051, %v4026
          %v4060 = vadd.s32 %v4051, %v4027
          %v4061 = vadd.s32 %v4051, %v4028
          %v4062 = vadd.s32 %v4051, %v4029
          %v4063 = vadd.s32 %v4051, %v4030
          %v4064 = vadd.s32 %v4051, %v4031
          %v4065 = vadd.s32 %v4051, %v4032
          %v4066 = vadd.s32 %v4051, %v4033
          %v4067 = vadd.s32 %v4051, %v4034
          %v4068 = vadd.s32 %v4051, %v4035
          %v4069 = vadd.s32 %v4051, %v4036
          %v4070 = vadd.s32 %v4051, %v4037
          %v4071 = vadd.s32 %v4051, %v4038
          %v4072 = vadd.s32 %v4051, %v4039
          %v4073 = vadd.s32 %v4051, %v4040
          %v4074 = vadd.s32 %v4051, %v4041
          %v4075 = vadd.s32 %v4051, %v4042
          %v4076 = vadd.s32 %v4051, %v4043
          %v4077 = vadd.s32 %v4051, %v4044
          %v4078 = vadd.s32 %v4051, %v4045
          %v4079 = vadd.s32 %v4051, %v4046
          %v4080 = vadd.s32 %v4051, %v4047
          %v4081 = vadd.s32 %v4051, %v4048
          %v4082 = vadd.s32 %v4051, %v4049
          %v4083 = vadd.s32 %v4051, %v4050
          %vm4084 = vcmp.ge.s32.totalorder %v4052, 0
          %vm4085 = vcmp.ge.s32.totalorder %v4053, 0
          %vm4086 = vcmp.ge.s32.totalorder %v4054, 0
          %vm4087 = vcmp.ge.s32.totalorder %v4055, 0
          %vm4088 = vcmp.ge.s32.totalorder %v4056, 0
          %vm4089 = vcmp.ge.s32.totalorder %v4057, 0
          %vm4090 = vcmp.ge.s32.totalorder %v4058, 0
          %vm4091 = vcmp.ge.s32.totalorder %v4059, 0
          %vm4092 = vcmp.ge.s32.totalorder %v4060, 0
          %vm4093 = vcmp.ge.s32.totalorder %v4061, 0
          %vm4094 = vcmp.ge.s32.totalorder %v4062, 0
          %vm4095 = vcmp.ge.s32.totalorder %v4063, 0
          %vm4096 = vcmp.ge.s32.totalorder %v4064, 0
          %vm4097 = vcmp.ge.s32.totalorder %v4065, 0
          %vm4098 = vcmp.ge.s32.totalorder %v4066, 0
          %vm4099 = vcmp.ge.s32.totalorder %v4067, 0
          %vm4100 = vcmp.ge.s32.totalorder %v4068, 0
          %vm4101 = vcmp.ge.s32.totalorder %v4069, 0
          %vm4102 = vcmp.ge.s32.totalorder %v4070, 0
          %vm4103 = vcmp.ge.s32.totalorder %v4071, 0
          %vm4104 = vcmp.ge.s32.totalorder %v4072, 0
          %vm4105 = vcmp.ge.s32.totalorder %v4073, 0
          %vm4106 = vcmp.ge.s32.totalorder %v4074, 0
          %vm4107 = vcmp.ge.s32.totalorder %v4075, 0
          %vm4108 = vcmp.ge.s32.totalorder %v4076, 0
          %vm4109 = vcmp.ge.s32.totalorder %v4077, 0
          %vm4110 = vcmp.ge.s32.totalorder %v4078, 0
          %vm4111 = vcmp.ge.s32.totalorder %v4079, 0
          %vm4112 = vcmp.ge.s32.totalorder %v4080, 0
          %vm4113 = vcmp.ge.s32.totalorder %v4081, 0
          %vm4114 = vcmp.ge.s32.totalorder %v4082, 0
          %vm4115 = vcmp.ge.s32.totalorder %v4083, 0
          %vm4116 = vcmp.lt.s32.totalorder %v4052, 64
          %vm4117 = vcmp.lt.s32.totalorder %v4053, 64
          %vm4118 = vcmp.lt.s32.totalorder %v4054, 64
          %vm4119 = vcmp.lt.s32.totalorder %v4055, 64
          %vm4120 = vcmp.lt.s32.totalorder %v4056, 64
          %vm4121 = vcmp.lt.s32.totalorder %v4057, 64
          %vm4122 = vcmp.lt.s32.totalorder %v4058, 64
          %vm4123 = vcmp.lt.s32.totalorder %v4059, 64
          %vm4124 = vcmp.lt.s32.totalorder %v4060, 64
          %vm4125 = vcmp.lt.s32.totalorder %v4061, 64
          %vm4126 = vcmp.lt.s32.totalorder %v4062, 64
          %vm4127 = vcmp.lt.s32.totalorder %v4063, 64
          %vm4128 = vcmp.lt.s32.totalorder %v4064, 64
          %vm4129 = vcmp.lt.s32.totalorder %v4065, 64
          %vm4130 = vcmp.lt.s32.totalorder %v4066, 64
          %vm4131 = vcmp.lt.s32.totalorder %v4067, 64
          %vm4132 = vcmp.lt.s32.totalorder %v4068, 64
          %vm4133 = vcmp.lt.s32.totalorder %v4069, 64
          %vm4134 = vcmp.lt.s32.totalorder %v4070, 64
          %vm4135 = vcmp.lt.s32.totalorder %v4071, 64
          %vm4136 = vcmp.lt.s32.totalorder %v4072, 64
          %vm4137 = vcmp.lt.s32.totalorder %v4073, 64
          %vm4138 = vcmp.lt.s32.totalorder %v4074, 64
          %vm4139 = vcmp.lt.s32.totalorder %v4075, 64
          %vm4140 = vcmp.lt.s32.totalorder %v4076, 64
          %vm4141 = vcmp.lt.s32.totalorder %v4077, 64
          %vm4142 = vcmp.lt.s32.totalorder %v4078, 64
          %vm4143 = vcmp.lt.s32.totalorder %v4079, 64
          %vm4144 = vcmp.lt.s32.totalorder %v4080, 64
          %vm4145 = vcmp.lt.s32.totalorder %v4081, 64
          %vm4146 = vcmp.lt.s32.totalorder %v4082, 64
          %vm4147 = vcmp.lt.s32.totalorder %v4083, 64
          %vm4148 = vmand %vm4084, %vm4116
          %vm4149 = vmand %vm4085, %vm4117
          %vm4150 = vmand %vm4086, %vm4118
          %vm4151 = vmand %vm4087, %vm4119
          %vm4152 = vmand %vm4088, %vm4120
          %vm4153 = vmand %vm4089, %vm4121
          %vm4154 = vmand %vm4090, %vm4122
          %vm4155 = vmand %vm4091, %vm4123
          %vm4156 = vmand %vm4092, %vm4124
          %vm4157 = vmand %vm4093, %vm4125
          %vm4158 = vmand %vm4094, %vm4126
          %vm4159 = vmand %vm4095, %vm4127
          %vm4160 = vmand %vm4096, %vm4128
          %vm4161 = vmand %vm4097, %vm4129
          %vm4162 = vmand %vm4098, %vm4130
          %vm4163 = vmand %vm4099, %vm4131
          %vm4164 = vmand %vm4100, %vm4132
          %vm4165 = vmand %vm4101, %vm4133
          %vm4166 = vmand %vm4102, %vm4134
          %vm4167 = vmand %vm4103, %vm4135
          %vm4168 = vmand %vm4104, %vm4136
          %vm4169 = vmand %vm4105, %vm4137
          %vm4170 = vmand %vm4106, %vm4138
          %vm4171 = vmand %vm4107, %vm4139
          %vm4172 = vmand %vm4108, %vm4140
          %vm4173 = vmand %vm4109, %vm4141
          %vm4174 = vmand %vm4110, %vm4142
          %vm4175 = vmand %vm4111, %vm4143
          %vm4176 = vmand %vm4112, %vm4144
          %vm4177 = vmand %vm4113, %vm4145
          %vm4178 = vmand %vm4114, %vm4146
          %vm4179 = vmand %vm4115, %vm4147
          %v4180 = vsel %vm4148, 1, 0
          %v4181 = vsel %vm4149, 1, 0
          %v4182 = vsel %vm4150, 1, 0
          %v4183 = vsel %vm4151, 1, 0
          %v4184 = vsel %vm4152, 1, 0
          %v4185 = vsel %vm4153, 1, 0
          %v4186 = vsel %vm4154, 1, 0
          %v4187 = vsel %vm4155, 1, 0
          %v4188 = vsel %vm4156, 1, 0
          %v4189 = vsel %vm4157, 1, 0
          %v4190 = vsel %vm4158, 1, 0
          %v4191 = vsel %vm4159, 1, 0
          %v4192 = vsel %vm4160, 1, 0
          %v4193 = vsel %vm4161, 1, 0
          %v4194 = vsel %vm4162, 1, 0
          %v4195 = vsel %vm4163, 1, 0
          %v4196 = vsel %vm4164, 1, 0
          %v4197 = vsel %vm4165, 1, 0
          %v4198 = vsel %vm4166, 1, 0
          %v4199 = vsel %vm4167, 1, 0
          %v4200 = vsel %vm4168, 1, 0
          %v4201 = vsel %vm4169, 1, 0
          %v4202 = vsel %vm4170, 1, 0
          %v4203 = vsel %vm4171, 1, 0
          %v4204 = vsel %vm4172, 1, 0
          %v4205 = vsel %vm4173, 1, 0
          %v4206 = vsel %vm4174, 1, 0
          %v4207 = vsel %vm4175, 1, 0
          %v4208 = vsel %vm4176, 1, 0
          %v4209 = vsel %vm4177, 1, 0
          %v4210 = vsel %vm4178, 1, 0
          %v4211 = vsel %vm4179, 1, 0
          %vm4212 = vcmp.eq.s32.totalorder %v4180, 1
          %vm4213 = vcmp.eq.s32.totalorder %v4181, 1
          %vm4214 = vcmp.eq.s32.totalorder %v4182, 1
          %vm4215 = vcmp.eq.s32.totalorder %v4183, 1
          %vm4216 = vcmp.eq.s32.totalorder %v4184, 1
          %vm4217 = vcmp.eq.s32.totalorder %v4185, 1
          %vm4218 = vcmp.eq.s32.totalorder %v4186, 1
          %vm4219 = vcmp.eq.s32.totalorder %v4187, 1
          %vm4220 = vcmp.eq.s32.totalorder %v4188, 1
          %vm4221 = vcmp.eq.s32.totalorder %v4189, 1
          %vm4222 = vcmp.eq.s32.totalorder %v4190, 1
          %vm4223 = vcmp.eq.s32.totalorder %v4191, 1
          %vm4224 = vcmp.eq.s32.totalorder %v4192, 1
          %vm4225 = vcmp.eq.s32.totalorder %v4193, 1
          %vm4226 = vcmp.eq.s32.totalorder %v4194, 1
          %vm4227 = vcmp.eq.s32.totalorder %v4195, 1
          %vm4228 = vcmp.eq.s32.totalorder %v4196, 1
          %vm4229 = vcmp.eq.s32.totalorder %v4197, 1
          %vm4230 = vcmp.eq.s32.totalorder %v4198, 1
          %vm4231 = vcmp.eq.s32.totalorder %v4199, 1
          %vm4232 = vcmp.eq.s32.totalorder %v4200, 1
          %vm4233 = vcmp.eq.s32.totalorder %v4201, 1
          %vm4234 = vcmp.eq.s32.totalorder %v4202, 1
          %vm4235 = vcmp.eq.s32.totalorder %v4203, 1
          %vm4236 = vcmp.eq.s32.totalorder %v4204, 1
          %vm4237 = vcmp.eq.s32.totalorder %v4205, 1
          %vm4238 = vcmp.eq.s32.totalorder %v4206, 1
          %vm4239 = vcmp.eq.s32.totalorder %v4207, 1
          %vm4240 = vcmp.eq.s32.totalorder %v4208, 1
          %vm4241 = vcmp.eq.s32.totalorder %v4209, 1
          %vm4242 = vcmp.eq.s32.totalorder %v4210, 1
          %vm4243 = vcmp.eq.s32.totalorder %v4211, 1
          %v4244 = vsel %vm4212, %v3885, 0.0
          %v4245 = vsel %vm4213, %v3888, 0.0
          %v4246 = vsel %vm4214, %v3893, 0.0
          %v4247 = vsel %vm4215, %v3896, 0.0
          %v4248 = vsel %vm4216, %v3901, 0.0
          %v4249 = vsel %vm4217, %v3904, 0.0
          %v4250 = vsel %vm4218, %v3909, 0.0
          %v4251 = vsel %vm4219, %v3912, 0.0
          %v4252 = vsel %vm4220, %v3917, 0.0
          %v4253 = vsel %vm4221, %v3920, 0.0
          %v4254 = vsel %vm4222, %v3925, 0.0
          %v4255 = vsel %vm4223, %v3928, 0.0
          %v4256 = vsel %vm4224, %v3933, 0.0
          %v4257 = vsel %vm4225, %v3936, 0.0
          %v4258 = vsel %vm4226, %v3941, 0.0
          %v4259 = vsel %vm4227, %v3944, 0.0
          %v4260 = vsel %vm4228, %v3949, 0.0
          %v4261 = vsel %vm4229, %v3952, 0.0
          %v4262 = vsel %vm4230, %v3957, 0.0
          %v4263 = vsel %vm4231, %v3960, 0.0
          %v4264 = vsel %vm4232, %v3965, 0.0
          %v4265 = vsel %vm4233, %v3968, 0.0
          %v4266 = vsel %vm4234, %v3973, 0.0
          %v4267 = vsel %vm4235, %v3976, 0.0
          %v4268 = vsel %vm4236, %v3981, 0.0
          %v4269 = vsel %vm4237, %v3984, 0.0
          %v4270 = vsel %vm4238, %v3989, 0.0
          %v4271 = vsel %vm4239, %v3992, 0.0
          %v4272 = vsel %vm4240, %v3997, 0.0
          %v4273 = vsel %vm4241, %v4000, 0.0
          %v4274 = vsel %vm4242, %v4005, 0.0
          %v4275 = vsel %vm4243, %v4008, 0.0
          %4276 = vst.msk [vmem:[#allocation2] sm:$0xff] %vm1642, %v4244
          %4277 = vst.msk [vmem:[#allocation2 + $0x8] sm:$0xff] %vm1642, %v4245
          %4278 = vst.msk [vmem:[#allocation2 + $0x10] sm:$0xff] %vm1642, %v4246
          %4279 = vst.msk [vmem:[#allocation2 + $0x18] sm:$0xff] %vm1642, %v4247
          %4280 = vst.msk [vmem:[#allocation2 + $0x20] sm:$0xff] %vm1642, %v4248
          %4281 = vst.msk [vmem:[#allocation2 + $0x28] sm:$0xff] %vm1642, %v4249
          %4282 = vst.msk [vmem:[#allocation2 + $0x30] sm:$0xff] %vm1642, %v4250
          %4283 = vst.msk [vmem:[#allocation2 + $0x38] sm:$0xff] %vm1642, %v4251
          %4284 = vst.msk [vmem:[#allocation2 + $0x40] sm:$0xff] %vm1642, %v4252
          %4285 = vst.msk [vmem:[#allocation2 + $0x48] sm:$0xff] %vm1642, %v4253
          %4286 = vst.msk [vmem:[#allocation2 + $0x50] sm:$0xff] %vm1642, %v4254
          %4287 = vst.msk [vmem:[#allocation2 + $0x58] sm:$0xff] %vm1642, %v4255
          %4288 = vst.msk [vmem:[#allocation2 + $0x60] sm:$0xff] %vm1642, %v4256
          %4289 = vst.msk [vmem:[#allocation2 + $0x68] sm:$0xff] %vm1642, %v4257
          %4290 = vst.msk [vmem:[#allocation2 + $0x70] sm:$0xff] %vm1642, %v4258
          %4291 = vst.msk [vmem:[#allocation2 + $0x78] sm:$0xff] %vm1642, %v4259
          %4292 = vst.msk [vmem:[#allocation2 + $0x80] sm:$0xff] %vm1642, %v4260
          %4293 = vst.msk [vmem:[#allocation2 + $0x88] sm:$0xff] %vm1642, %v4261
          %4294 = vst.msk [vmem:[#allocation2 + $0x90] sm:$0xff] %vm1642, %v4262
          %4295 = vst.msk [vmem:[#allocation2 + $0x98] sm:$0xff] %vm1642, %v4263
          %4296 = vst.msk [vmem:[#allocation2 + $0xa0] sm:$0xff] %vm1642, %v4264
          %4297 = vst.msk [vmem:[#allocation2 + $0xa8] sm:$0xff] %vm1642, %v4265
          %4298 = vst.msk [vmem:[#allocation2 + $0xb0] sm:$0xff] %vm1642, %v4266
          %4299 = vst.msk [vmem:[#allocation2 + $0xb8] sm:$0xff] %vm1642, %v4267
          %4300 = vst.msk [vmem:[#allocation2 + $0xc0] sm:$0xff] %vm1642, %v4268
          %4301 = vst.msk [vmem:[#allocation2 + $0xc8] sm:$0xff] %vm1642, %v4269
          %4302 = vst.msk [vmem:[#allocation2 + $0xd0] sm:$0xff] %vm1642, %v4270
          %4303 = vst.msk [vmem:[#allocation2 + $0xd8] sm:$0xff] %vm1642, %v4271
          %4304 = vst.msk [vmem:[#allocation2 + $0xe0] sm:$0xff] %vm1642, %v4272
          %4305 = vst.msk [vmem:[#allocation2 + $0xe8] sm:$0xff] %vm1642, %v4273
          %4306 = vst.msk [vmem:[#allocation2 + $0xf0] sm:$0xff] %vm1642, %v4274
          %4307 = vst.msk [vmem:[#allocation2 + $0xf8] sm:$0xff] %vm1642, %v4275
        $region52: #{tpu_custom_call.1} parent=39 // pred_fallthru
          _
        %p4308 = pneg %p4014
        // Predicated region
        $region53: #{tpu_custom_call.1} parent=39 // pred_check
          _
        $region54: #{tpu_custom_call.1} parent=39 // pred_check_branch
          %4310 = sbr.rel (%p4014) target = $region56
        $region55: #{tpu_custom_call.1} parent=39 // pred_region
          %4311 = vst.msk [vmem:[#allocation2] sm:$0xff] %vm1642, %v3885
          %4312 = vst.msk [vmem:[#allocation2 + $0x8] sm:$0xff] %vm1642, %v3888
          %4313 = vst.msk [vmem:[#allocation2 + $0x10] sm:$0xff] %vm1642, %v3893
          %4314 = vst.msk [vmem:[#allocation2 + $0x18] sm:$0xff] %vm1642, %v3896
          %4315 = vst.msk [vmem:[#allocation2 + $0x20] sm:$0xff] %vm1642, %v3901
          %4316 = vst.msk [vmem:[#allocation2 + $0x28] sm:$0xff] %vm1642, %v3904
          %4317 = vst.msk [vmem:[#allocation2 + $0x30] sm:$0xff] %vm1642, %v3909
          %4318 = vst.msk [vmem:[#allocation2 + $0x38] sm:$0xff] %vm1642, %v3912
          %4319 = vst.msk [vmem:[#allocation2 + $0x40] sm:$0xff] %vm1642, %v3917
          %4320 = vst.msk [vmem:[#allocation2 + $0x48] sm:$0xff] %vm1642, %v3920
          %4321 = vst.msk [vmem:[#allocation2 + $0x50] sm:$0xff] %vm1642, %v3925
          %4322 = vst.msk [vmem:[#allocation2 + $0x58] sm:$0xff] %vm1642, %v3928
          %4323 = vst.msk [vmem:[#allocation2 + $0x60] sm:$0xff] %vm1642, %v3933
          %4324 = vst.msk [vmem:[#allocation2 + $0x68] sm:$0xff] %vm1642, %v3936
          %4325 = vst.msk [vmem:[#allocation2 + $0x70] sm:$0xff] %vm1642, %v3941
          %4326 = vst.msk [vmem:[#allocation2 + $0x78] sm:$0xff] %vm1642, %v3944
          %4327 = vst.msk [vmem:[#allocation2 + $0x80] sm:$0xff] %vm1642, %v3949
          %4328 = vst.msk [vmem:[#allocation2 + $0x88] sm:$0xff] %vm1642, %v3952
          %4329 = vst.msk [vmem:[#allocation2 + $0x90] sm:$0xff] %vm1642, %v3957
          %4330 = vst.msk [vmem:[#allocation2 + $0x98] sm:$0xff] %vm1642, %v3960
          %4331 = vst.msk [vmem:[#allocation2 + $0xa0] sm:$0xff] %vm1642, %v3965
          %4332 = vst.msk [vmem:[#allocation2 + $0xa8] sm:$0xff] %vm1642, %v3968
          %4333 = vst.msk [vmem:[#allocation2 + $0xb0] sm:$0xff] %vm1642, %v3973
          %4334 = vst.msk [vmem:[#allocation2 + $0xb8] sm:$0xff] %vm1642, %v3976
          %4335 = vst.msk [vmem:[#allocation2 + $0xc0] sm:$0xff] %vm1642, %v3981
          %4336 = vst.msk [vmem:[#allocation2 + $0xc8] sm:$0xff] %vm1642, %v3984
          %4337 = vst.msk [vmem:[#allocation2 + $0xd0] sm:$0xff] %vm1642, %v3989
          %4338 = vst.msk [vmem:[#allocation2 + $0xd8] sm:$0xff] %vm1642, %v3992
          %4339 = vst.msk [vmem:[#allocation2 + $0xe0] sm:$0xff] %vm1642, %v3997
          %4340 = vst.msk [vmem:[#allocation2 + $0xe8] sm:$0xff] %vm1642, %v4000
          %4341 = vst.msk [vmem:[#allocation2 + $0xf0] sm:$0xff] %vm1642, %v4005
          %4342 = vst.msk [vmem:[#allocation2 + $0xf8] sm:$0xff] %vm1642, %v4008
        $region56: #{tpu_custom_call.1} parent=39 // pred_fallthru
          _
        %v4343 = vld [vmem:[#allocation2] ss:$2 sm:$0xff]
        %s4344 = scalar_lea.vmem [#allocation2], 16
        %v4345 = vld [vmem:[%s4344] ss:$2 sm:$0xff]
        %s4346 = scalar_lea.vmem [#allocation2], 32
        %v4347 = vld [vmem:[%s4346] ss:$2 sm:$0xff]
        %s4348 = scalar_lea.vmem [#allocation2], 48
        %v4349 = vld [vmem:[%s4348] ss:$2 sm:$0xff]
        %s4350 = scalar_lea.vmem [#allocation2], 64
        %v4351 = vld [vmem:[%s4350] ss:$2 sm:$0xff]
        %s4352 = scalar_lea.vmem [#allocation2], 80
        %v4353 = vld [vmem:[%s4352] ss:$2 sm:$0xff]
        %s4354 = scalar_lea.vmem [#allocation2], 96
        %v4355 = vld [vmem:[%s4354] ss:$2 sm:$0xff]
        %s4356 = scalar_lea.vmem [#allocation2], 112
        %v4357 = vld [vmem:[%s4356] ss:$2 sm:$0xff]
        %s4358 = scalar_lea.vmem [#allocation2], 128
        %v4359 = vld [vmem:[%s4358] ss:$2 sm:$0xff]
        %s4360 = scalar_lea.vmem [#allocation2], 144
        %v4361 = vld [vmem:[%s4360] ss:$2 sm:$0xff]
        %s4362 = scalar_lea.vmem [#allocation2], 160
        %v4363 = vld [vmem:[%s4362] ss:$2 sm:$0xff]
        %s4364 = scalar_lea.vmem [#allocation2], 176
        %v4365 = vld [vmem:[%s4364] ss:$2 sm:$0xff]
        %s4366 = scalar_lea.vmem [#allocation2], 192
        %v4367 = vld [vmem:[%s4366] ss:$2 sm:$0xff]
        %s4368 = scalar_lea.vmem [#allocation2], 208
        %v4369 = vld [vmem:[%s4368] ss:$2 sm:$0xff]
        %s4370 = scalar_lea.vmem [#allocation2], 224
        %v4371 = vld [vmem:[%s4370] ss:$2 sm:$0xff]
        %s4372 = scalar_lea.vmem [#allocation2], 240
        %v4373 = vld [vmem:[%s4372] ss:$2 sm:$0xff]
        %s4374 = scalar_lea.vmem [#allocation2], 1
        %v4375 = vld [vmem:[%s4374] ss:$2 sm:$0xff]
        %s4376 = scalar_lea.vmem [#allocation2], 17
        %v4377 = vld [vmem:[%s4376] ss:$2 sm:$0xff]
        %s4378 = scalar_lea.vmem [#allocation2], 33
        %v4379 = vld [vmem:[%s4378] ss:$2 sm:$0xff]
        %s4380 = scalar_lea.vmem [#allocation2], 49
        %v4381 = vld [vmem:[%s4380] ss:$2 sm:$0xff]
        %s4382 = scalar_lea.vmem [#allocation2], 65
        %v4383 = vld [vmem:[%s4382] ss:$2 sm:$0xff]
        %s4384 = scalar_lea.vmem [#allocation2], 81
        %v4385 = vld [vmem:[%s4384] ss:$2 sm:$0xff]
        %s4386 = scalar_lea.vmem [#allocation2], 97
        %v4387 = vld [vmem:[%s4386] ss:$2 sm:$0xff]
        %s4388 = scalar_lea.vmem [#allocation2], 113
        %v4389 = vld [vmem:[%s4388] ss:$2 sm:$0xff]
        %s4390 = scalar_lea.vmem [#allocation2], 129
        %v4391 = vld [vmem:[%s4390] ss:$2 sm:$0xff]
        %s4392 = scalar_lea.vmem [#allocation2], 145
        %v4393 = vld [vmem:[%s4392] ss:$2 sm:$0xff]
        %s4394 = scalar_lea.vmem [#allocation2], 161
        %v4395 = vld [vmem:[%s4394] ss:$2 sm:$0xff]
        %s4396 = scalar_lea.vmem [#allocation2], 177
        %v4397 = vld [vmem:[%s4396] ss:$2 sm:$0xff]
        %s4398 = scalar_lea.vmem [#allocation2], 193
        %v4399 = vld [vmem:[%s4398] ss:$2 sm:$0xff]
        %s4400 = scalar_lea.vmem [#allocation2], 209
        %v4401 = vld [vmem:[%s4400] ss:$2 sm:$0xff]
        %s4402 = scalar_lea.vmem [#allocation2], 225
        %v4403 = vld [vmem:[%s4402] ss:$2 sm:$0xff]
        %s4404 = scalar_lea.vmem [#allocation2], 241
        %v4405 = vld [vmem:[%s4404] ss:$2 sm:$0xff]
        %v4406 = vmax.f32 %v4343, %v4375
        %v4407 = vmax.f32 %v4345, %v4377
        %v4408 = vmax.f32 %v4347, %v4379
        %v4409 = vmax.f32 %v4349, %v4381
        %v4410 = vmax.f32 %v4351, %v4383
        %v4411 = vmax.f32 %v4353, %v4385
        %v4412 = vmax.f32 %v4355, %v4387
        %v4413 = vmax.f32 %v4357, %v4389
        %v4414 = vmax.f32 %v4359, %v4391
        %v4415 = vmax.f32 %v4361, %v4393
        %v4416 = vmax.f32 %v4363, %v4395
        %v4417 = vmax.f32 %v4365, %v4397
        %v4418 = vmax.f32 %v4367, %v4399
        %v4419 = vmax.f32 %v4369, %v4401
        %v4420 = vmax.f32 %v4371, %v4403
        %v4421 = vmax.f32 %v4373, %v4405
        %v4422 = vmax.f32 %v4406, 0.0
        %v4423 = vmax.f32 %v4407, 0.0
        %v4424 = vmax.f32 %v4408, 0.0
        %v4425 = vmax.f32 %v4409, 0.0
        %v4426 = vmax.f32 %v4410, 0.0
        %v4427 = vmax.f32 %v4411, 0.0
        %v4428 = vmax.f32 %v4412, 0.0
        %v4429 = vmax.f32 %v4413, 0.0
        %v4430 = vmax.f32 %v4414, 0.0
        %v4431 = vmax.f32 %v4415, 0.0
        %v4432 = vmax.f32 %v4416, 0.0
        %v4433 = vmax.f32 %v4417, 0.0
        %v4434 = vmax.f32 %v4418, 0.0
        %v4435 = vmax.f32 %v4419, 0.0
        %v4436 = vmax.f32 %v4420, 0.0
        %v4437 = vmax.f32 %v4421, 0.0
        %4438 = vxpose.xlu0.b32.start [1/16] %v4422, 128
        %4439 = vxpose.xlu0.b32.cont [2/16] %v4423, 128
        %4440 = vxpose.xlu0.b32.cont [3/16] %v4424, 128
        %4441 = vxpose.xlu0.b32.cont [4/16] %v4425, 128
        %4442 = vxpose.xlu0.b32.cont [5/16] %v4426, 128
        %4443 = vxpose.xlu0.b32.cont [6/16] %v4427, 128
        %4444 = vxpose.xlu0.b32.cont [7/16] %v4428, 128
        %4445 = vxpose.xlu0.b32.cont [8/16] %v4429, 128
        %4446 = vxpose.xlu0.b32.cont [9/16] %v4430, 128
        %4447 = vxpose.xlu0.b32.cont [10/16] %v4431, 128
        %4448 = vxpose.xlu0.b32.cont [11/16] %v4432, 128
        %4449 = vxpose.xlu0.b32.cont [12/16] %v4433, 128
        %4450 = vxpose.xlu0.b32.cont [13/16] %v4434, 128
        %4451 = vxpose.xlu0.b32.cont [14/16] %v4435, 128
        %4452 = vxpose.xlu0.b32.cont [15/16] %v4436, 128
        %4453 = vxpose.xlu0.b32.end [16/16] %v4437, 128
        %v4454 = vpop.trf.xlu0
        %v4455 = vpop.trf.xlu0
        %v4456 = vpop.trf.xlu0
        %v4457 = vpop.trf.xlu0
        %v4458 = vpop.trf.xlu0
        %v4459 = vpop.trf.xlu0
        %v4460 = vpop.trf.xlu0
        %v4461 = vpop.trf.xlu0
        %v4462 = vpop.trf.xlu0
        %v4463 = vpop.trf.xlu0
        %v4464 = vpop.trf.xlu0
        %v4465 = vpop.trf.xlu0
        %v4466 = vpop.trf.xlu0
        %v4467 = vpop.trf.xlu0
        %v4468 = vpop.trf.xlu0
        %v4469 = vpop.trf.xlu0
        %4470 = vst [vmem:[%s241 + $0x20] sm:$0xff] %v4454
        %4471 = vst [vmem:[%s241 + $0x28] sm:$0xff] %v4455
        %4472 = vst [vmem:[%s241 + $0x30] sm:$0xff] %v4456
        %4473 = vst [vmem:[%s241 + $0x38] sm:$0xff] %v4457
        %s4474 = sand.u32 %s153, 1
        %s4475 = scalar_lea.sflag [#allocation5], %s4474
        %s4476 = sand.u32 %s153, 1
        %s4477 = smul.addr %s4476, 64
        %s4478 = scalar_lea.vmem [#allocation4], %s4477
        // Predicated region
        $region57: #{tpu_custom_call.1} parent=39 // pred_check
          %p4479 = pneg %p163
        $region58: #{tpu_custom_call.1} parent=39 // pred_check_branch
          %4481 = sbr.rel (%p4479) target = $region60
        $region59: #{tpu_custom_call.1} parent=39 // pred_region
          %s4483 = ssub.s32 1024, 1024
          %4484 = vsyncadd %s4475, %s4483
          %s4485 = smul.addr %s23, 8
          %s4486 = sadd.s32 %s24, %s4485
          %s4487 = smul.addr %s4486, 128
          %s4488 = scalar_lea.hbm %s5, %s4487
          %s4489 = sshll.u32 %s4478, 4
          %s4490 = int_to_ptr.vmem [resolvable:$true] %s4489
          %4495 = dma.vmem_to_hbm [thread:$0]  %s4490, 1024, %s4488, %s4475, 128, 128, 8
        $region60: #{tpu_custom_call.1} parent=39 // pred_fallthru
          _
      $region40: #{tpu_custom_call.1} parent=5 // pred_fallthru
        _
      %p4496 = scmp.le.s32.totalorder 2, %s14
      // Predicated region
      $region61: #{tpu_custom_call.1} parent=5 // pred_check
        %p4497 = pneg %p4496
      $region62: #{tpu_custom_call.1} parent=5 // pred_check_branch
        %4499 = sbr.rel (%p4497) target = $region64
      $region63: #{tpu_custom_call.1} parent=5 // pred_region
        %s4500 = ssub.s32 %s14, 2
        // Predicated region
        $region65: #{tpu_custom_call.1} parent=63 // pred_check
          %p4501 = pneg %p169
        $region66: #{tpu_custom_call.1} parent=63 // pred_check_branch
          %4503 = sbr.rel (%p4501) target = $region68
        $region67: #{tpu_custom_call.1} parent=63 // pred_region
          %s4504 = sand.u32 %s154, 1
          %s4505 = scalar_lea.sflag [#allocation5], %s4504
          %s4506 = sand.u32 %s154, 1
          %s4507 = smul.addr %s4506, 64
          %s4508 = scalar_lea.vmem [#allocation4], %s4507
          %4509 = dma.done %s4505, 1024
        $region68: #{tpu_custom_call.1} parent=63 // pred_fallthru
          _
      $region64: #{tpu_custom_call.1} parent=5 // pred_fallthru
        _
    $region6: #{tpu_custom_call.1} parent=1 // loop_footer
      %s18 = sadd.s32 1, %s14
    $region7: #{tpu_custom_call.1} parent=1 // loop_footer_branch
      %13 = sbr.rel target = $region3
    $region8: #{tpu_custom_call.1} parent=1 // loop_exit
      _
    %4510 = vsyncpa [#allocation5], 1
    %s4511 = scalar_lea.sflag [#allocation5], 1
    %4512 = vsyncpa %s4511, 1

</llo_original>
